<compile_context>
chip_gen: v7x
topology: tpu7x:2x2x1
jax: 0.10.0
libtpu: 0.0.40
codegen_flags: <defaults>
</compile_context>

<pallas_src>
import jax
import jax.numpy as jnp
from jax.experimental import pallas as pl
from jax.experimental.pallas import tpu as pltpu

# ----------------------------- small config ---------------------------------
# (VIMPAC-small: D=512, 6 layers, 8 heads, 16x16x5 token grid, vocab 8197;
#  scaled down here to a small runnable example)
B = 4                      # batch (folded into matmul rows per group)
L = 2                      # video length (frames)             (orig: 5)
C = 3                      # image channels
IMG = 16                   # frame height/width                (orig: 128)
PATCH = 8                  # VQVAE downsample factor
GH = IMG // PATCH          # token grid height                 (orig: 16)
GW = IMG // PATCH          # token grid width                  (orig: 16)
P_DIM = C * PATCH * PATCH  # flattened patch size (= 192)
VOCAB = 64                 # token vocab                       (orig: 8192 + 5)
VOCAB_PAD = ((VOCAB + 127) // 128) * 128
D = 64                     # hidden dim                        (orig: 512)
NUM_HEADS = 2              # heads                             (orig: 8)
HEAD_DIM = D // NUM_HEADS
MLP_DIM = 4 * D
LAYERS = 2                 # transformer layers                (orig: 6)
HEAD_HID = 128             # classifier hidden (orig: 128, lane aligned)
NUM_CLASSES = 10
NC_PAD = 128               # padded classifier width (lane-dense stores)
SEQ = 1 + L * GH * GW      # CLS token + video tokens (= 9)
SEQ_PAD = ((SEQ + 7) // 8) * 8   # pad to sublane multiple (= 16)
GROUPS = 2                 # batch groups = parallel grid axis (one per TC on v7x)
BG = B // GROUPS           # batches per group, stacked into matmul rows
R = BG * SEQ_PAD           # activation-slab rows per group
VQ_TILE = 128              # lane-dense tokenizer tile (>= 128 lanes)


# ------------------------------- kernels ------------------------------------
def _layer_norm(x, g, b, eps=1e-5):
    mu = jnp.mean(x, axis=-1, keepdims=True)
    var = jnp.mean(jnp.square(x - mu), axis=-1, keepdims=True)
    return (x - mu) * jax.lax.rsqrt(var + eps) * g + b


def vq_tokenize_kernel(patches_ref, codebook_ref, sqnorm_ref, out_ref):
    """Nearest-code assignment (true argmin ||p - c||^2), lane-dense output.

    patches_ref : (P_DIM, VQ_TILE) bf16, patch index on lanes
    codebook_ref: (VOCAB_PAD, P_DIM) bf16
    sqnorm_ref  : (VOCAB_PAD, 1) f32   -- 0.5 * ||c||^2 per code
    out_ref     : (1, VQ_TILE) int32
    """
    scores = jnp.dot(codebook_ref[...], patches_ref[...],
                     preferred_element_type=jnp.float32)        # (V_PAD, TILE)
    # argmin ||p-c||^2  ==  argmax (c.p - 0.5*||c||^2)
    scores = scores - sqnorm_ref[...]
    row = jax.lax.broadcasted_iota(jnp.int32, scores.shape, 0)  # code index
    valid = row < VOCAB
    scores = jnp.where(valid, scores, -1e30)                    # mask pad codes
    m = jnp.max(scores, axis=0, keepdims=True)                  # (1, TILE)
    # first index attaining the max (matches argmax tie-breaking)
    first = jnp.min(jnp.where((scores >= m) & valid, row, VOCAB_PAD),
                    axis=0, keepdims=True)
    out_ref[...] = first.astype(jnp.int32)


def backbone_kernel(x_ref, wqkv_ref, bqkv_ref, wo_ref, bo_ref,
                    ln1g_ref, ln1b_ref, w1_ref, b1_ref, w2_ref, b2_ref,
                    ln2g_ref, ln2b_ref,
                    hw1_ref, hb1_ref, hw2_ref, hb2_ref,
                    logits_ref, x_scratch):
    """Fused transformer stack + classifier head.

    grid = (GROUPS, LAYERS).  Activation (R, D) = (BG*SEQ_PAD, D) slab lives in
    f32 VMEM scratch across the layer axis; per-layer bf16 weights are indexed
    by the layer grid axis; logits are written only on the last layer.
    """
    layer = pl.program_id(1)

    @pl.when(layer == 0)
    def _init():
        x_scratch[...] = x_ref[...].reshape(R, D).astype(jnp.float32)

    x = x_scratch[...]                                   # (R, D) f32
    xb = x.astype(jnp.bfloat16)

    # ---- multi-head self-attention (post-LN, no dropout at inference) ----
    qkv = jnp.dot(xb, wqkv_ref[0],
                  preferred_element_type=jnp.float32) + bqkv_ref[0]   # (R, 3D)

    def to_heads(mat):
        # (R, D) -> (NUM_HEADS*BG, SEQ_PAD, HEAD_DIM); no cross-batch mixing.
        parts = [mat[:, h * HEAD_DIM:(h + 1) * HEAD_DIM] for h in range(NUM_HEADS)]
        hm = jnp.stack(parts, axis=0)                            # (H, R, HD)
        return hm.reshape(NUM_HEADS * BG, SEQ_PAD, HEAD_DIM)

    q = to_heads(qkv[:, 0 * D:1 * D]).astype(jnp.bfloat16)
    k = to_heads(qkv[:, 1 * D:2 * D]).astype(jnp.bfloat16)
    v = to_heads(qkv[:, 2 * D:3 * D]).astype(jnp.bfloat16)

    s = jnp.einsum('bqd,bkd->bqk', q, k,
                   preferred_element_type=jnp.float32) * (1.0 / HEAD_DIM ** 0.5)
    key_valid = jax.lax.broadcasted_iota(jnp.int32, (1, 1, SEQ_PAD), 2) < SEQ
    s = jnp.where(key_valid, s, -1e30)                   # mask padded keys
    s = s - jnp.max(s, axis=-1, keepdims=True)
    p = jnp.exp(s)
    p = p * pl.reciprocal(jnp.sum(p, axis=-1, keepdims=True), approx=True)
    hv = jnp.einsum('bqk,bkd->bqd', p.astype(jnp.bfloat16), v,
                    preferred_element_type=jnp.float32)  # (H*BG, S, HD)

    # reassemble heads along lanes and do ONE (R, D) @ (D, D) output projection
    hv = hv.reshape(NUM_HEADS, R, HEAD_DIM)
    merged = jnp.concatenate([hv[h] for h in range(NUM_HEADS)], axis=-1)  # (R, D)
    attn = jnp.dot(merged.astype(jnp.bfloat16), wo_ref[0],
                   preferred_element_type=jnp.float32) + bo_ref[0]

    h1 = _layer_norm(x + attn, ln1g_ref[0], ln1b_ref[0])

    # ---- MLP ----
    m = jnp.dot(h1.astype(jnp.bfloat16), w1_ref[0],
                preferred_element_type=jnp.float32) + b1_ref[0]
    # TODO(synk): PyTorch nn.GELU defaults to the exact erf form; tanh approx here.
    m = jax.nn.gelu(m, approximate=True)
    m = jnp.dot(m.astype(jnp.bfloat16), w2_ref[0],
                preferred_element_type=jnp.float32) + b2_ref[0]

    h2 = _layer_norm(h1 + m, ln2g_ref[0], ln2b_ref[0])
    x_scratch[...] = h2

    # ---- classifier head on the CLS tokens, only after the last layer ----
    # Dropout(0.3) is identity at inference.
    @pl.when(layer == LAYERS - 1)
    def _head():
        cls = h2.reshape(BG, SEQ_PAD, D)[:, 0, :]                 # (BG, D)
        hc = jnp.dot(cls.astype(jnp.bfloat16), hw1_ref[...],
                     preferred_element_type=jnp.float32) + hb1_ref[...]
        hc = jnp.maximum(hc, 0.0)
        out = jnp.dot(hc.astype(jnp.bfloat16), hw2_ref[...],
                      preferred_element_type=jnp.float32) + hb2_ref[...]
        logits_ref[...] = out.reshape(1, BG, NC_PAD)


# ------------------------------ wrappers -------------------------------------
def vq_tokenize(patches_t, codebook, code_sqnorm_half):
    """patches_t: (P_DIM, N) bf16 (N multiple of 128) -> (1, N) int32 tokens."""
    p_dim, n = patches_t.shape
    assert n % VQ_TILE == 0
    v_pad = codebook.shape[0]
    return pl.pallas_call(
        vq_tokenize_kernel,
        out_shape=jax.ShapeDtypeStruct((1, n), jnp.int32),
        grid=(n // VQ_TILE,),
        in_specs=[pl.BlockSpec((p_dim, VQ_TILE), lambda i: (0, i)),
                  pl.BlockSpec((v_pad, p_dim), lambda i: (0, 0)),
                  pl.BlockSpec((v_pad, 1), lambda i: (0, 0))],
        out_specs=pl.BlockSpec((1, VQ_TILE), lambda i: (0, i)),
        compiler_params=pltpu.CompilerParams(
            dimension_semantics=("parallel",)),
    )(patches_t, codebook, code_sqnorm_half)


def vimpac_backbone_head(x, params):
    """x: (B, SEQ_PAD, D) f32 -> padded logits (B, NC_PAD) f32."""
    lp = params["layers"]
    hp = params["head"]

    xmap = lambda g, li: (g, 0, 0)
    lmap = lambda g, li: (li, 0, 0)
    cmap = lambda g, li: (0, 0)
    layer_spec = lambda s: pl.BlockSpec((1,) + s, lmap)

    logits = pl.pallas_call(
        backbone_kernel,
        out_shape=jax.ShapeDtypeStruct((GROUPS, BG, NC_PAD), jnp.float32),
        grid=(GROUPS, LAYERS),
        in_specs=[
            pl.BlockSpec((BG, SEQ_PAD, D), xmap),
            layer_spec((D, 3 * D)), layer_spec((1, 3 * D)),
            layer_spec((D, D)), layer_spec((1, D)),
            layer_spec((1, D)), layer_spec((1, D)),
            layer_spec((D, MLP_DIM)), layer_spec((1, MLP_DIM)),
            layer_spec((MLP_DIM, D)), layer_spec((1, D)),
            layer_spec((1, D)), layer_spec((1, D)),
            pl.BlockSpec((D, HEAD_HID), cmap), pl.BlockSpec((1, HEAD_HID), cmap),
            pl.BlockSpec((HEAD_HID, NC_PAD), cmap), pl.BlockSpec((1, NC_PAD), cmap),
        ],
        out_specs=pl.BlockSpec((1, BG, NC_PAD), lambda g, li: (g, 0, 0)),
        scratch_shapes=[pltpu.VMEM((R, D), jnp.float32)],
        compiler_params=pltpu.CompilerParams(
            dimension_semantics=("parallel", "arbitrary"),
            vmem_limit_bytes=8 * 1024 * 1024),
    )(x,
      lp["wqkv"], lp["bqkv"], lp["wo"], lp["bo"],
      lp["ln1_g"], lp["ln1_b"], lp["w1"], lp["b1"], lp["w2"], lp["b2"],
      lp["ln2_g"], lp["ln2_b"],
      hp["w1"], hp["b1"], hp["w2"], hp["b2"])
    return logits.reshape(B, NC_PAD)


def vimpac_forward(video, params):
    """video: (B, L, C, IMG, IMG) float32  ->  logits (B, NUM_CLASSES)."""
    b, l, c, h, w = video.shape
    gh, gw = h // PATCH, w // PATCH
    n_tok = b * l * gh * gw
    n_pad = ((n_tok + VQ_TILE - 1) // VQ_TILE) * VQ_TILE

    # --- tokenize (glue patchify + Pallas VQ nearest-code kernel) ---
    p = video.reshape(b, l, c, gh, PATCH, gw, PATCH)
    p = p.transpose(0, 1, 3, 5, 2, 4, 6).reshape(n_tok, c * PATCH * PATCH)
    p_t = p.T                                                    # (P_DIM, N)
    if n_pad > n_tok:
        p_t = jnp.concatenate(
            [p_t, jnp.zeros((p_t.shape[0], n_pad - n_tok), p_t.dtype)], axis=1)
    tokens = vq_tokenize(p_t.astype(jnp.bfloat16), params["codebook"],
                         params["code_sqnorm_half"])[0, :n_tok]
    tokens = tokens.reshape(b, l * gh * gw)

    # --- embedding + T/H/W-separated positional embedding + CLS (glue) ---
    tok_emb = jnp.take(params["embedding"], tokens, axis=0)      # (B, Stok, D)
    pos = (params["pos_t"][:, None, None, :]
           + params["pos_h"][None, :, None, :]
           + params["pos_w"][None, None, :, :]).reshape(l * gh * gw, D)
    x_tok = tok_emb + pos[None]
    cls = jnp.broadcast_to(params["cls_token"] + params["cls_pos"], (b, 1, D))
    x = jnp.concatenate([cls, x_tok], axis=1)                    # (B, SEQ, D)
    if SEQ_PAD > SEQ:                                            # pad to x8
        x = jnp.concatenate(
            [x, jnp.zeros((b, SEQ_PAD - SEQ, D), x.dtype)], axis=1)

    # --- fused transformer stack + classifier head (single Pallas kernel) ---
    logits_pad = vimpac_backbone_head(x, params)                 # (B, NC_PAD)
    return logits_pad[:, :NUM_CLASSES]


# ------------------------------ parameters -----------------------------------
def init_params(key):
    keys = jax.random.split(key, 16)
    bf16 = jnp.bfloat16

    def n(k, shape, std=0.02, dtype=jnp.float32):
        return (jax.random.normal(k, shape, dtype=jnp.float32) * std).astype(dtype)

    codebook_f32 = jax.random.normal(keys[0], (VOCAB, P_DIM), dtype=jnp.float32)
    codebook_f32 = jnp.concatenate(
        [codebook_f32, jnp.zeros((VOCAB_PAD - VOCAB, P_DIM), jnp.float32)], axis=0)
    code_sqnorm_half = 0.5 * jnp.sum(jnp.square(codebook_f32), axis=1, keepdims=True)

    hw2 = n(keys[7], (HEAD_HID, NUM_CLASSES))
    hw2 = jnp.concatenate(
        [hw2, jnp.zeros((HEAD_HID, NC_PAD - NUM_CLASSES), jnp.float32)], axis=1)

    params = {
        "codebook": codebook_f32.astype(bf16),          # (V_PAD, P) bf16
        "code_sqnorm_half": code_sqnorm_half,           # (V_PAD, 1) f32
        "embedding": n(keys[1], (VOCAB, D)),
        "pos_t": n(keys[2], (L, D)),
        "pos_h": n(keys[3], (GH, D)),
        "pos_w": n(keys[4], (GW, D)),
        "cls_pos": n(keys[5], (1, D)),
        "cls_token": n(keys[6], (1, D)),
        "head": {
            "w1": n(keys[8], (D, HEAD_HID), dtype=bf16),
            "b1": jnp.zeros((1, HEAD_HID), jnp.float32),
            "w2": hw2.astype(bf16),
            "b2": jnp.zeros((1, NC_PAD), jnp.float32),
        },
        # per-layer weights stacked with a leading layer dim (bf16 matmul weights)
        "layers": {
            "wqkv": n(keys[9], (LAYERS, D, 3 * D), dtype=bf16),
            "bqkv": jnp.zeros((LAYERS, 1, 3 * D), jnp.float32),
            "wo":   n(keys[10], (LAYERS, D, D), dtype=bf16),
            "bo":   jnp.zeros((LAYERS, 1, D), jnp.float32),
            "ln1_g": jnp.ones((LAYERS, 1, D), jnp.float32),
            "ln1_b": jnp.zeros((LAYERS, 1, D), jnp.float32),
            "w1":   n(keys[11], (LAYERS, D, MLP_DIM), dtype=bf16),
            "b1":   jnp.zeros((LAYERS, 1, MLP_DIM), jnp.float32),
            "w2":   n(keys[12], (LAYERS, MLP_DIM, D), dtype=bf16),
            "b2":   jnp.zeros((LAYERS, 1, D), jnp.float32),
            "ln2_g": jnp.ones((LAYERS, 1, D), jnp.float32),
            "ln2_b": jnp.zeros((LAYERS, 1, D), jnp.float32),
        },
    }
    return params


# --------------------------------- main ---------------------------------------
if __name__ == "__main__":
    key = jax.random.PRNGKey(0)
    kv, kp = jax.random.split(key)
    video = jax.random.normal(kv, (B, L, C, IMG, IMG), dtype=jnp.float32)
    params = init_params(kp)

    logits = jax.jit(vimpac_forward)(video, params)
    jax.block_until_ready(logits)
    assert logits.shape == (B, NUM_CLASSES), logits.shape
    assert logits.dtype == jnp.float32
    assert bool(jnp.all(jnp.isfinite(logits)))
    print("KERNEL_OK")
</pallas_src>

<mosaic_0001>
module attributes {stable_mosaic.version = 11 : i64} {
  func.func @vq_tokenize_kernel(%arg0: i32, %arg1: memref<192x128xbf16, #tpu.memory_space<vmem>>, %arg2: memref<128x192xbf16, #tpu.memory_space<vmem>>, %arg3: memref<128x1xf32, #tpu.memory_space<vmem>>, %arg4: memref<1x128xi32, #tpu.memory_space<vmem>>) attributes {dimension_semantics = [#tpu.dimension_semantics<parallel>], iteration_bounds = array<i64: 1>, scalar_prefetch = 0 : i64, scratch_operands = 0 : i64, tpu.core_type = #tpu.core_type<tc>, window_params = [{transform_indices = @transform_0, window_bounds = array<i64: 192, 128>}, {pipeline_mode = #tpu.pipeline_mode<synchronous>, transform_indices = @transform_1, window_bounds = array<i64: 128, 192>}, {pipeline_mode = #tpu.pipeline_mode<synchronous>, transform_indices = @transform_2, window_bounds = array<i64: 128, 1>}, {transform_indices = @transform_3, window_bounds = array<i64: 1, 128>}]} {
    %c0 = arith.constant 0 : index
    %c0_0 = arith.constant 0 : index
    %0 = vector.load %arg2[%c0, %c0_0] : memref<128x192xbf16, #tpu.memory_space<vmem>>, vector<128x192xbf16>
    %c0_1 = arith.constant 0 : index
    %c0_2 = arith.constant 0 : index
    %1 = vector.load %arg1[%c0_1, %c0_2] : memref<192x128xbf16, #tpu.memory_space<vmem>>, vector<192x128xbf16>
    %cst = arith.constant dense<0.000000e+00> : vector<128x128xf32>
    %2 = tpu.matmul %0, %1, %cst {dimension_numbers = #tpu.dot_dimension_numbers<[1], [0], [0], [1], [0, 0, 1, 1], [], []>} : vector<128x192xbf16>, vector<192x128xbf16>, vector<128x128xf32> -> vector<128x128xf32>
    %c0_3 = arith.constant 0 : index
    %c0_4 = arith.constant 0 : index
    %3 = vector.load %arg3[%c0_3, %c0_4] : memref<128x1xf32, #tpu.memory_space<vmem>>, vector<128x1xf32>
    %4 = vector.broadcast %3 : vector<128x1xf32> to vector<128x128xf32>
    %5 = arith.subf %2, %4 : vector<128x128xf32>
    %6 = tpu.iota {dimensions = array<i32: 0>} : vector<128x128xi32>
    %c64_i32 = arith.constant 64 : i32
    %7 = vector.broadcast %c64_i32 : i32 to vector<128x128xi32>
    %8 = arith.cmpi slt, %6, %7 : vector<128x128xi32>
    %cst_5 = arith.constant -1.000000e+30 : f32
    %9 = vector.broadcast %cst_5 : f32 to vector<128x128xf32>
    %10 = arith.select %8, %5, %9 : vector<128x128xi1>, vector<128x128xf32>
    %cst_6 = arith.constant dense<0xFF800000> : vector<128xf32>
    %11 = vector.multi_reduction <maximumf>, %10, %cst_6 [0] : vector<128x128xf32> to vector<128xf32>
    %12 = vector.shape_cast %11 : vector<128xf32> to vector<1x128xf32>
    %13 = vector.broadcast %12 : vector<1x128xf32> to vector<128x128xf32>
    %14 = arith.cmpf oge, %10, %13 : vector<128x128xf32>
    %15 = arith.andi %14, %8 : vector<128x128xi1>
    %c128_i32 = arith.constant 128 : i32
    %16 = vector.broadcast %c128_i32 : i32 to vector<128x128xi32>
    %17 = arith.select %15, %6, %16 : vector<128x128xi1>, vector<128x128xi32>
    %cst_7 = arith.constant dense<2147483647> : vector<128xi32>
    %18 = vector.multi_reduction <minsi>, %17, %cst_7 [0] : vector<128x128xi32> to vector<128xi32>
    %19 = vector.shape_cast %18 : vector<128xi32> to vector<1x128xi32>
    %c0_8 = arith.constant 0 : index
    %c0_9 = arith.constant 0 : index
    %20 = vector.load %arg4[%c0_8, %c0_9] : memref<1x128xi32, #tpu.memory_space<vmem>>, vector<1x128xi32>
    tpu.vector_store %arg4[%c0_8, %c0_9], %19 {strides = array<i32>} : memref<1x128xi32, #tpu.memory_space<vmem>>, vector<1x128xi32>,
    return
  }
  func.func @transform_0(%arg0: i32) -> (i32, i32) {
    %c0_i32 = arith.constant 0 : i32
    %c0_i32_0 = arith.constant 0 : i32
    return %c0_i32, %arg0 : i32, i32
  }
  func.func @transform_1(%arg0: i32) -> (i32, i32) {
    %c0_i32 = arith.constant 0 : i32
    %c0_i32_0 = arith.constant 0 : i32
    %c0_i32_1 = arith.constant 0 : i32
    return %c0_i32, %c0_i32_0 : i32, i32
  }
  func.func @transform_2(%arg0: i32) -> (i32, i32) {
    %c0_i32 = arith.constant 0 : i32
    %c0_i32_0 = arith.constant 0 : i32
    %c0_i32_1 = arith.constant 0 : i32
    return %c0_i32, %c0_i32_0 : i32, i32
  }
  func.func @transform_3(%arg0: i32) -> (i32, i32) {
    %c0_i32 = arith.constant 0 : i32
    %c0_i32_0 = arith.constant 0 : i32
    return %c0_i32, %arg0 : i32, i32
  }
}

module attributes {stable_mosaic.version = 11 : i64} {
  func.func @backbone_kernel(%arg0: i32, %arg1: i32, %arg2: memref<2x16x64xf32, #tpu.memory_space<vmem>>, %arg3: memref<1x64x192xbf16, #tpu.memory_space<vmem>>, %arg4: memref<1x1x192xf32, #tpu.memory_space<vmem>>, %arg5: memref<1x64x64xbf16, #tpu.memory_space<vmem>>, %arg6: memref<1x1x64xf32, #tpu.memory_space<vmem>>, %arg7: memref<1x1x64xf32, #tpu.memory_space<vmem>>, %arg8: memref<1x1x64xf32, #tpu.memory_space<vmem>>, %arg9: memref<1x64x256xbf16, #tpu.memory_space<vmem>>, %arg10: memref<1x1x256xf32, #tpu.memory_space<vmem>>, %arg11: memref<1x256x64xbf16, #tpu.memory_space<vmem>>, %arg12: memref<1x1x64xf32, #tpu.memory_space<vmem>>, %arg13: memref<1x1x64xf32, #tpu.memory_space<vmem>>, %arg14: memref<1x1x64xf32, #tpu.memory_space<vmem>>, %arg15: memref<64x128xbf16, #tpu.memory_space<vmem>>, %arg16: memref<1x128xf32, #tpu.memory_space<vmem>>, %arg17: memref<128x128xbf16, #tpu.memory_space<vmem>>, %arg18: memref<1x128xf32, #tpu.memory_space<vmem>>, %arg19: memref<1x2x128xf32, #tpu.memory_space<vmem>>, %arg20: memref<32x64xf32, #tpu.memory_space<vmem>>) attributes {dimension_semantics = [#tpu.dimension_semantics<parallel>, #tpu.dimension_semantics<arbitrary>], iteration_bounds = array<i64: 2, 2>, scalar_prefetch = 0 : i64, scratch_operands = 1 : i64, tpu.core_type = #tpu.core_type<tc>, window_params = [{transform_indices = @transform_0, window_bounds = array<i64: 2, 16, 64>}, {transform_indices = @transform_1, window_bounds = array<i64: 1, 64, 192>}, {transform_indices = @transform_2, window_bounds = array<i64: 1, 1, 192>}, {transform_indices = @transform_3, window_bounds = array<i64: 1, 64, 64>}, {transform_indices = @transform_4, window_bounds = array<i64: 1, 1, 64>}, {transform_indices = @transform_5, window_bounds = array<i64: 1, 1, 64>}, {transform_indices = @transform_6, window_bounds = array<i64: 1, 1, 64>}, {transform_indices = @transform_7, window_bounds = array<i64: 1, 64, 256>}, {transform_indices = @transform_8, window_bounds = array<i64: 1, 1, 256>}, {transform_indices = @transform_9, window_bounds = array<i64: 1, 256, 64>}, {transform_indices = @transform_10, window_bounds = array<i64: 1, 1, 64>}, {transform_indices = @transform_11, window_bounds = array<i64: 1, 1, 64>}, {transform_indices = @transform_12, window_bounds = array<i64: 1, 1, 64>}, {pipeline_mode = #tpu.pipeline_mode<synchronous>, transform_indices = @transform_13, window_bounds = array<i64: 64, 128>}, {pipeline_mode = #tpu.pipeline_mode<synchronous>, transform_indices = @transform_14, window_bounds = array<i64: 1, 128>}, {pipeline_mode = #tpu.pipeline_mode<synchronous>, transform_indices = @transform_15, window_bounds = array<i64: 128, 128>}, {pipeline_mode = #tpu.pipeline_mode<synchronous>, transform_indices = @transform_16, window_bounds = array<i64: 1, 128>}, {transform_indices = @transform_17, window_bounds = array<i64: 1, 2, 128>}]} {
    %c0_i32 = arith.constant 0 : i32
    %0 = arith.cmpi eq, %arg1, %c0_i32 : i32
    %1 = arith.extui %0 : i1 to i32
    %c0_i32_0 = arith.constant 0 : i32
    %2 = arith.cmpi ne, %1, %c0_i32_0 : i32
    scf.if %2 {
      %c0_64 = arith.constant 0 : index
      %c0_65 = arith.constant 0 : index
      %c0_66 = arith.constant 0 : index
      %159 = vector.load %arg2[%c0_64, %c0_65, %c0_66] : memref<2x16x64xf32, #tpu.memory_space<vmem>>, vector<2x16x64xf32>
      %160 = vector.shape_cast %159 : vector<2x16x64xf32> to vector<32x64xf32>
      %c0_67 = arith.constant 0 : index
      %c0_68 = arith.constant 0 : index
      %161 = vector.load %arg20[%c0_67, %c0_68] : memref<32x64xf32, #tpu.memory_space<vmem>>, vector<32x64xf32>
      tpu.vector_store %arg20[%c0_67, %c0_68], %160 {strides = array<i32>} : memref<32x64xf32, #tpu.memory_space<vmem>>, vector<32x64xf32>,
    } else {
    }
    %c0 = arith.constant 0 : index
    %c0_1 = arith.constant 0 : index
    %3 = vector.load %arg20[%c0, %c0_1] : memref<32x64xf32, #tpu.memory_space<vmem>>, vector<32x64xf32>
    %4 = arith.truncf %3 : vector<32x64xf32> to vector<32x64xbf16>
    %c0_2 = arith.constant 0 : index
    %c0_3 = arith.constant 0 : index
    %c0_4 = arith.constant 0 : index
    %5 = vector.load %arg3[%c0_2, %c0_3, %c0_4] : memref<1x64x192xbf16, #tpu.memory_space<vmem>>, vector<1x64x192xbf16>
    %6 = vector.shape_cast %5 : vector<1x64x192xbf16> to vector<64x192xbf16>
    %cst = arith.constant dense<0.000000e+00> : vector<32x192xf32>
    %7 = tpu.matmul %4, %6, %cst {dimension_numbers = #tpu.dot_dimension_numbers<[1], [0], [0], [1], [0, 0, 1, 1], [], []>} : vector<32x64xbf16>, vector<64x192xbf16>, vector<32x192xf32> -> vector<32x192xf32>
    %c0_5 = arith.constant 0 : index
    %c0_6 = arith.constant 0 : index
    %c0_7 = arith.constant 0 : index
    %8 = vector.load %arg4[%c0_5, %c0_6, %c0_7] : memref<1x1x192xf32, #tpu.memory_space<vmem>>, vector<1x1x192xf32>
    %9 = vector.shape_cast %8 : vector<1x1x192xf32> to vector<1x192xf32>
    %10 = vector.broadcast %9 : vector<1x192xf32> to vector<32x192xf32>
    %11 = arith.addf %7, %10 : vector<32x192xf32>
    %12 = vector.extract_strided_slice %11 {offsets = [0, 0], sizes = [32, 64], strides = [1, 1]} : vector<32x192xf32> to vector<32x64xf32>
    %13 = vector.extract_strided_slice %12 {offsets = [0, 0], sizes = [32, 32], strides = [1, 1]} : vector<32x64xf32> to vector<32x32xf32>
    %14 = vector.extract_strided_slice %12 {offsets = [0, 32], sizes = [32, 32], strides = [1, 1]} : vector<32x64xf32> to vector<32x32xf32>
    %15 = vector.shape_cast %13 : vector<32x32xf32> to vector<1x32x32xf32>
    %16 = vector.shape_cast %14 : vector<32x32xf32> to vector<1x32x32xf32>
    %17 = tpu.concatenate %15, %16 in 0 : vector<1x32x32xf32>, vector<1x32x32xf32> -> vector<2x32x32xf32>
    %18 = vector.shape_cast %17 : vector<2x32x32xf32> to vector<4x16x32xf32>
    %19 = arith.truncf %18 : vector<4x16x32xf32> to vector<4x16x32xbf16>
    %20 = vector.extract_strided_slice %11 {offsets = [0, 64], sizes = [32, 64], strides = [1, 1]} : vector<32x192xf32> to vector<32x64xf32>
    %21 = vector.extract_strided_slice %20 {offsets = [0, 0], sizes = [32, 32], strides = [1, 1]} : vector<32x64xf32> to vector<32x32xf32>
    %22 = vector.extract_strided_slice %20 {offsets = [0, 32], sizes = [32, 32], strides = [1, 1]} : vector<32x64xf32> to vector<32x32xf32>
    %23 = vector.shape_cast %21 : vector<32x32xf32> to vector<1x32x32xf32>
    %24 = vector.shape_cast %22 : vector<32x32xf32> to vector<1x32x32xf32>
    %25 = tpu.concatenate %23, %24 in 0 : vector<1x32x32xf32>, vector<1x32x32xf32> -> vector<2x32x32xf32>
    %26 = vector.shape_cast %25 : vector<2x32x32xf32> to vector<4x16x32xf32>
    %27 = arith.truncf %26 : vector<4x16x32xf32> to vector<4x16x32xbf16>
    %28 = vector.extract_strided_slice %11 {offsets = [0, 128], sizes = [32, 64], strides = [1, 1]} : vector<32x192xf32> to vector<32x64xf32>
    %29 = vector.extract_strided_slice %28 {offsets = [0, 0], sizes = [32, 32], strides = [1, 1]} : vector<32x64xf32> to vector<32x32xf32>
    %30 = vector.extract_strided_slice %28 {offsets = [0, 32], sizes = [32, 32], strides = [1, 1]} : vector<32x64xf32> to vector<32x32xf32>
    %31 = vector.shape_cast %29 : vector<32x32xf32> to vector<1x32x32xf32>
    %32 = vector.shape_cast %30 : vector<32x32xf32> to vector<1x32x32xf32>
    %33 = tpu.concatenate %31, %32 in 0 : vector<1x32x32xf32>, vector<1x32x32xf32> -> vector<2x32x32xf32>
    %34 = vector.shape_cast %33 : vector<2x32x32xf32> to vector<4x16x32xf32>
    %35 = arith.truncf %34 : vector<4x16x32xf32> to vector<4x16x32xbf16>
    "tpu.trace_start"() <{level = 10 : i32, message = "bqd,bkd->bqk"}> : () -> ()
    %cst_8 = arith.constant dense<0.000000e+00> : vector<4x16x16xf32>
    %36 = tpu.matmul %19, %27, %cst_8 {dimension_numbers = #tpu.dot_dimension_numbers<[2], [2], [1], [1], [0, 0, 0, 1, 1, 1], [0], [0]>} : vector<4x16x32xbf16>, vector<4x16x32xbf16>, vector<4x16x16xf32> -> vector<4x16x16xf32>
    "tpu.trace_stop"() : () -> ()
    %cst_9 = arith.constant 0.176776692 : f32
    %37 = vector.broadcast %cst_9 : f32 to vector<4x16x16xf32>
    %38 = arith.mulf %36, %37 : vector<4x16x16xf32>
    %39 = tpu.iota {dimensions = array<i32: 2>} : vector<1x1x16xi32>
    %c9_i32 = arith.constant 9 : i32
    %40 = vector.broadcast %c9_i32 : i32 to vector<1x1x16xi32>
    %41 = arith.cmpi slt, %39, %40 : vector<1x1x16xi32>
    %cst_10 = arith.constant -1.000000e+30 : f32
    %42 = vector.shape_cast %41 : vector<1x1x16xi1> to vector<1x1x16xi1>
    %43 = vector.broadcast %42 : vector<1x1x16xi1> to vector<4x16x16xi1>
    %44 = vector.broadcast %cst_10 : f32 to vector<4x16x16xf32>
    %45 = arith.select %43, %38, %44 : vector<4x16x16xi1>, vector<4x16x16xf32>
    %cst_11 = arith.constant dense<0xFF800000> : vector<4x16xf32>
    %46 = vector.multi_reduction <maximumf>, %45, %cst_11 [2] : vector<4x16x16xf32> to vector<4x16xf32>
    %47 = vector.shape_cast %46 : vector<4x16xf32> to vector<4x16x1xf32>
    %48 = vector.broadcast %47 : vector<4x16x1xf32> to vector<4x16x16xf32>
    %49 = arith.subf %45, %48 : vector<4x16x16xf32>
    %50 = math.exp %49 : vector<4x16x16xf32>
    %cst_12 = arith.constant dense<0.000000e+00> : vector<4x16xf32>
    %51 = vector.multi_reduction <add>, %50, %cst_12 [2] : vector<4x16x16xf32> to vector<4x16xf32>
    %52 = vector.shape_cast %51 : vector<4x16xf32> to vector<4x16x1xf32>
    %53 = tpu.reciprocal %52 {approx = true} : vector<4x16x1xf32> -> vector<4x16x1xf32>
    %54 = vector.broadcast %53 : vector<4x16x1xf32> to vector<4x16x16xf32>
    %55 = arith.mulf %50, %54 : vector<4x16x16xf32>
    %56 = arith.truncf %55 : vector<4x16x16xf32> to vector<4x16x16xbf16>
    "tpu.trace_start"() <{level = 10 : i32, message = "bqk,bkd->bqd"}> : () -> ()
    %cst_13 = arith.constant dense<0.000000e+00> : vector<4x16x32xf32>
    %57 = tpu.matmul %56, %35, %cst_13 {dimension_numbers = #tpu.dot_dimension_numbers<[2], [1], [1], [2], [0, 0, 0, 1, 1, 2], [0], [0]>} : vector<4x16x16xbf16>, vector<4x16x32xbf16>, vector<4x16x32xf32> -> vector<4x16x32xf32>
    "tpu.trace_stop"() : () -> ()
    %58 = vector.shape_cast %57 : vector<4x16x32xf32> to vector<2x32x32xf32>
    %59 = vector.extract_strided_slice %58 {offsets = [0, 0, 0], sizes = [1, 32, 32], strides = [1, 1, 1]} : vector<2x32x32xf32> to vector<1x32x32xf32>
    %60 = vector.shape_cast %59 : vector<1x32x32xf32> to vector<32x32xf32>
    %61 = vector.extract_strided_slice %58 {offsets = [1, 0, 0], sizes = [1, 32, 32], strides = [1, 1, 1]} : vector<2x32x32xf32> to vector<1x32x32xf32>
    %62 = vector.shape_cast %61 : vector<1x32x32xf32> to vector<32x32xf32>
    %63 = tpu.concatenate %60, %62 in 1 : vector<32x32xf32>, vector<32x32xf32> -> vector<32x64xf32>
    %64 = arith.truncf %63 : vector<32x64xf32> to vector<32x64xbf16>
    %c0_14 = arith.constant 0 : index
    %c0_15 = arith.constant 0 : index
    %c0_16 = arith.constant 0 : index
    %65 = vector.load %arg5[%c0_14, %c0_15, %c0_16] : memref<1x64x64xbf16, #tpu.memory_space<vmem>>, vector<1x64x64xbf16>
    %66 = vector.shape_cast %65 : vector<1x64x64xbf16> to vector<64x64xbf16>
    %cst_17 = arith.constant dense<0.000000e+00> : vector<32x64xf32>
    %67 = tpu.matmul %64, %66, %cst_17 {dimension_numbers = #tpu.dot_dimension_numbers<[1], [0], [0], [1], [0, 0, 1, 1], [], []>} : vector<32x64xbf16>, vector<64x64xbf16>, vector<32x64xf32> -> vector<32x64xf32>
    %c0_18 = arith.constant 0 : index
    %c0_19 = arith.constant 0 : index
    %c0_20 = arith.constant 0 : index
    %68 = vector.load %arg6[%c0_18, %c0_19, %c0_20] : memref<1x1x64xf32, #tpu.memory_space<vmem>>, vector<1x1x64xf32>
    %69 = vector.shape_cast %68 : vector<1x1x64xf32> to vector<1x64xf32>
    %70 = vector.broadcast %69 : vector<1x64xf32> to vector<32x64xf32>
    %71 = arith.addf %67, %70 : vector<32x64xf32>
    %72 = arith.addf %3, %71 : vector<32x64xf32>
    %c0_21 = arith.constant 0 : index
    %c0_22 = arith.constant 0 : index
    %c0_23 = arith.constant 0 : index
    %73 = vector.load %arg7[%c0_21, %c0_22, %c0_23] : memref<1x1x64xf32, #tpu.memory_space<vmem>>, vector<1x1x64xf32>
    %74 = vector.shape_cast %73 : vector<1x1x64xf32> to vector<1x64xf32>
    %c0_24 = arith.constant 0 : index
    %c0_25 = arith.constant 0 : index
    %c0_26 = arith.constant 0 : index
    %75 = vector.load %arg8[%c0_24, %c0_25, %c0_26] : memref<1x1x64xf32, #tpu.memory_space<vmem>>, vector<1x1x64xf32>
    %76 = vector.shape_cast %75 : vector<1x1x64xf32> to vector<1x64xf32>
    %cst_27 = arith.constant dense<0.000000e+00> : vector<32xf32>
    %77 = vector.multi_reduction <add>, %72, %cst_27 [1] : vector<32x64xf32> to vector<32xf32>
    %78 = vector.shape_cast %77 : vector<32xf32> to vector<32x1xf32>
    %cst_28 = arith.constant 6.400000e+01 : f32
    %79 = vector.broadcast %cst_28 : f32 to vector<32x1xf32>
    %80 = arith.divf %78, %79 : vector<32x1xf32>
    %81 = vector.broadcast %80 : vector<32x1xf32> to vector<32x64xf32>
    %82 = arith.subf %72, %81 : vector<32x64xf32>
    %83 = arith.mulf %82, %82 : vector<32x64xf32>
    %cst_29 = arith.constant dense<0.000000e+00> : vector<32xf32>
    %84 = vector.multi_reduction <add>, %83, %cst_29 [1] : vector<32x64xf32> to vector<32xf32>
    %85 = vector.shape_cast %84 : vector<32xf32> to vector<32x1xf32>
    %cst_30 = arith.constant 6.400000e+01 : f32
    %86 = vector.broadcast %cst_30 : f32 to vector<32x1xf32>
    %87 = arith.divf %85, %86 : vector<32x1xf32>
    %88 = vector.broadcast %80 : vector<32x1xf32> to vector<32x64xf32>
    %89 = arith.subf %72, %88 : vector<32x64xf32>
    %cst_31 = arith.constant 9.99999974E-6 : f32
    %90 = vector.broadcast %cst_31 : f32 to vector<32x1xf32>
    %91 = arith.addf %87, %90 : vector<32x1xf32>
    %92 = math.rsqrt %91 : vector<32x1xf32>
    %93 = vector.broadcast %92 : vector<32x1xf32> to vector<32x64xf32>
    %94 = arith.mulf %89, %93 : vector<32x64xf32>
    %95 = vector.broadcast %74 : vector<1x64xf32> to vector<32x64xf32>
    %96 = arith.mulf %94, %95 : vector<32x64xf32>
    %97 = vector.broadcast %76 : vector<1x64xf32> to vector<32x64xf32>
    %98 = arith.addf %96, %97 : vector<32x64xf32>
    %99 = arith.truncf %98 : vector<32x64xf32> to vector<32x64xbf16>
    %c0_32 = arith.constant 0 : index
    %c0_33 = arith.constant 0 : index
    %c0_34 = arith.constant 0 : index
    %100 = vector.load %arg9[%c0_32, %c0_33, %c0_34] : memref<1x64x256xbf16, #tpu.memory_space<vmem>>, vector<1x64x256xbf16>
    %101 = vector.shape_cast %100 : vector<1x64x256xbf16> to vector<64x256xbf16>
    %cst_35 = arith.constant dense<0.000000e+00> : vector<32x256xf32>
    %102 = tpu.matmul %99, %101, %cst_35 {dimension_numbers = #tpu.dot_dimension_numbers<[1], [0], [0], [1], [0, 0, 1, 1], [], []>} : vector<32x64xbf16>, vector<64x256xbf16>, vector<32x256xf32> -> vector<32x256xf32>
    %c0_36 = arith.constant 0 : index
    %c0_37 = arith.constant 0 : index
    %c0_38 = arith.constant 0 : index
    %103 = vector.load %arg10[%c0_36, %c0_37, %c0_38] : memref<1x1x256xf32, #tpu.memory_space<vmem>>, vector<1x1x256xf32>
    %104 = vector.shape_cast %103 : vector<1x1x256xf32> to vector<1x256xf32>
    %105 = vector.broadcast %104 : vector<1x256xf32> to vector<32x256xf32>
    %106 = arith.addf %102, %105 : vector<32x256xf32>
    %107 = arith.mulf %106, %106 : vector<32x256xf32>
    %108 = arith.mulf %106, %107 : vector<32x256xf32>
    %cst_39 = arith.constant 4.471500e-02 : f32
    %109 = vector.broadcast %cst_39 : f32 to vector<32x256xf32>
    %110 = arith.mulf %109, %108 : vector<32x256xf32>
    %111 = arith.addf %106, %110 : vector<32x256xf32>
    %cst_40 = arith.constant 0.797884583 : f32
    %112 = vector.broadcast %cst_40 : f32 to vector<32x256xf32>
    %113 = arith.mulf %112, %111 : vector<32x256xf32>
    %114 = math.tanh %113 : vector<32x256xf32>
    %cst_41 = arith.constant 1.000000e+00 : f32
    %115 = vector.broadcast %cst_41 : f32 to vector<32x256xf32>
    %116 = arith.addf %115, %114 : vector<32x256xf32>
    %cst_42 = arith.constant 5.000000e-01 : f32
    %117 = vector.broadcast %cst_42 : f32 to vector<32x256xf32>
    %118 = arith.mulf %117, %116 : vector<32x256xf32>
    %119 = arith.mulf %106, %118 : vector<32x256xf32>
    %120 = arith.truncf %119 : vector<32x256xf32> to vector<32x256xbf16>
    %c0_43 = arith.constant 0 : index
    %c0_44 = arith.constant 0 : index
    %c0_45 = arith.constant 0 : index
    %121 = vector.load %arg11[%c0_43, %c0_44, %c0_45] : memref<1x256x64xbf16, #tpu.memory_space<vmem>>, vector<1x256x64xbf16>
    %122 = vector.shape_cast %121 : vector<1x256x64xbf16> to vector<256x64xbf16>
    %cst_46 = arith.constant dense<0.000000e+00> : vector<32x64xf32>
    %123 = tpu.matmul %120, %122, %cst_46 {dimension_numbers = #tpu.dot_dimension_numbers<[1], [0], [0], [1], [0, 0, 1, 1], [], []>} : vector<32x256xbf16>, vector<256x64xbf16>, vector<32x64xf32> -> vector<32x64xf32>
    %c0_47 = arith.constant 0 : index
    %c0_48 = arith.constant 0 : index
    %c0_49 = arith.constant 0 : index
    %124 = vector.load %arg12[%c0_47, %c0_48, %c0_49] : memref<1x1x64xf32, #tpu.memory_space<vmem>>, vector<1x1x64xf32>
    %125 = vector.shape_cast %124 : vector<1x1x64xf32> to vector<1x64xf32>
    %126 = vector.broadcast %125 : vector<1x64xf32> to vector<32x64xf32>
    %127 = arith.addf %123, %126 : vector<32x64xf32>
    %128 = arith.addf %98, %127 : vector<32x64xf32>
    %c0_50 = arith.constant 0 : index
    %c0_51 = arith.constant 0 : index
    %c0_52 = arith.constant 0 : index
    %129 = vector.load %arg13[%c0_50, %c0_51, %c0_52] : memref<1x1x64xf32, #tpu.memory_space<vmem>>, vector<1x1x64xf32>
    %130 = vector.shape_cast %129 : vector<1x1x64xf32> to vector<1x64xf32>
    %c0_53 = arith.constant 0 : index
    %c0_54 = arith.constant 0 : index
    %c0_55 = arith.constant 0 : index
    %131 = vector.load %arg14[%c0_53, %c0_54, %c0_55] : memref<1x1x64xf32, #tpu.memory_space<vmem>>, vector<1x1x64xf32>
    %132 = vector.shape_cast %131 : vector<1x1x64xf32> to vector<1x64xf32>
    %cst_56 = arith.constant dense<0.000000e+00> : vector<32xf32>
    %133 = vector.multi_reduction <add>, %128, %cst_56 [1] : vector<32x64xf32> to vector<32xf32>
    %134 = vector.shape_cast %133 : vector<32xf32> to vector<32x1xf32>
    %cst_57 = arith.constant 6.400000e+01 : f32
    %135 = vector.broadcast %cst_57 : f32 to vector<32x1xf32>
    %136 = arith.divf %134, %135 : vector<32x1xf32>
    %137 = vector.broadcast %136 : vector<32x1xf32> to vector<32x64xf32>
    %138 = arith.subf %128, %137 : vector<32x64xf32>
    %139 = arith.mulf %138, %138 : vector<32x64xf32>
    %cst_58 = arith.constant dense<0.000000e+00> : vector<32xf32>
    %140 = vector.multi_reduction <add>, %139, %cst_58 [1] : vector<32x64xf32> to vector<32xf32>
    %141 = vector.shape_cast %140 : vector<32xf32> to vector<32x1xf32>
    %cst_59 = arith.constant 6.400000e+01 : f32
    %142 = vector.broadcast %cst_59 : f32 to vector<32x1xf32>
    %143 = arith.divf %141, %142 : vector<32x1xf32>
    %144 = vector.broadcast %136 : vector<32x1xf32> to vector<32x64xf32>
    %145 = arith.subf %128, %144 : vector<32x64xf32>
    %cst_60 = arith.constant 9.99999974E-6 : f32
    %146 = vector.broadcast %cst_60 : f32 to vector<32x1xf32>
    %147 = arith.addf %143, %146 : vector<32x1xf32>
    %148 = math.rsqrt %147 : vector<32x1xf32>
    %149 = vector.broadcast %148 : vector<32x1xf32> to vector<32x64xf32>
    %150 = arith.mulf %145, %149 : vector<32x64xf32>
    %151 = vector.broadcast %130 : vector<1x64xf32> to vector<32x64xf32>
    %152 = arith.mulf %150, %151 : vector<32x64xf32>
    %153 = vector.broadcast %132 : vector<1x64xf32> to vector<32x64xf32>
    %154 = arith.addf %152, %153 : vector<32x64xf32>
    %c0_61 = arith.constant 0 : index
    %c0_62 = arith.constant 0 : index
    %155 = vector.load %arg20[%c0_61, %c0_62] : memref<32x64xf32, #tpu.memory_space<vmem>>, vector<32x64xf32>
    tpu.vector_store %arg20[%c0_61, %c0_62], %154 {strides = array<i32>} : memref<32x64xf32, #tpu.memory_space<vmem>>, vector<32x64xf32>,
    %c1_i32 = arith.constant 1 : i32
    %156 = arith.cmpi eq, %arg1, %c1_i32 : i32
    %157 = arith.extui %156 : i1 to i32
    %c0_i32_63 = arith.constant 0 : i32
    %158 = arith.cmpi ne, %157, %c0_i32_63 : i32
    scf.if %158 {
      %159 = vector.shape_cast %154 : vector<32x64xf32> to vector<2x16x64xf32>
      %160 = vector.extract_strided_slice %159 {offsets = [0, 0, 0], sizes = [2, 1, 64], strides = [1, 1, 1]} : vector<2x16x64xf32> to vector<2x1x64xf32>
      %161 = vector.shape_cast %160 : vector<2x1x64xf32> to vector<2x64xf32>
      %162 = arith.truncf %161 : vector<2x64xf32> to vector<2x64xbf16>
      %c0_64 = arith.constant 0 : index
      %c0_65 = arith.constant 0 : index
      %163 = vector.load %arg15[%c0_64, %c0_65] : memref<64x128xbf16, #tpu.memory_space<vmem>>, vector<64x128xbf16>
      %cst_66 = arith.constant dense<0.000000e+00> : vector<2x128xf32>
      %164 = tpu.matmul %162, %163, %cst_66 {dimension_numbers = #tpu.dot_dimension_numbers<[1], [0], [0], [1], [0, 0, 1, 1], [], []>} : vector<2x64xbf16>, vector<64x128xbf16>, vector<2x128xf32> -> vector<2x128xf32>
      %c0_67 = arith.constant 0 : index
      %c0_68 = arith.constant 0 : index
      %165 = vector.load %arg16[%c0_67, %c0_68] : memref<1x128xf32, #tpu.memory_space<vmem>>, vector<1x128xf32>
      %166 = vector.broadcast %165 : vector<1x128xf32> to vector<2x128xf32>
      %167 = arith.addf %164, %166 : vector<2x128xf32>
      %cst_69 = arith.constant 0.000000e+00 : f32
      %168 = vector.broadcast %cst_69 : f32 to vector<2x128xf32>
      %169 = arith.maximumf %167, %168 : vector<2x128xf32>
      %170 = arith.truncf %169 : vector<2x128xf32> to vector<2x128xbf16>
      %c0_70 = arith.constant 0 : index
      %c0_71 = arith.constant 0 : index
      %171 = vector.load %arg17[%c0_70, %c0_71] : memref<128x128xbf16, #tpu.memory_space<vmem>>, vector<128x128xbf16>
      %cst_72 = arith.constant dense<0.000000e+00> : vector<2x128xf32>
      %172 = tpu.matmul %170, %171, %cst_72 {dimension_numbers = #tpu.dot_dimension_numbers<[1], [0], [0], [1], [0, 0, 1, 1], [], []>} : vector<2x128xbf16>, vector<128x128xbf16>, vector<2x128xf32> -> vector<2x128xf32>
      %c0_73 = arith.constant 0 : index
      %c0_74 = arith.constant 0 : index
      %173 = vector.load %arg18[%c0_73, %c0_74] : memref<1x128xf32, #tpu.memory_space<vmem>>, vector<1x128xf32>
      %174 = vector.broadcast %173 : vector<1x128xf32> to vector<2x128xf32>
      %175 = arith.addf %172, %174 : vector<2x128xf32>
      %176 = vector.shape_cast %175 : vector<2x128xf32> to vector<1x2x128xf32>
      %c0_75 = arith.constant 0 : index
      %c0_76 = arith.constant 0 : index
      %c0_77 = arith.constant 0 : index
      %177 = vector.load %arg19[%c0_75, %c0_76, %c0_77] : memref<1x2x128xf32, #tpu.memory_space<vmem>>, vector<1x2x128xf32>
      tpu.vector_store %arg19[%c0_75, %c0_76, %c0_77], %176 {strides = array<i32>} : memref<1x2x128xf32, #tpu.memory_space<vmem>>, vector<1x2x128xf32>,
    } else {
    }
    return
  }
  func.func @transform_0(%arg0: i32, %arg1: i32) -> (i32, i32, i32) {
    %c0_i32 = arith.constant 0 : i32
    %c0_i32_0 = arith.constant 0 : i32
    %c0_i32_1 = arith.constant 0 : i32
    return %arg0, %c0_i32, %c0_i32_0 : i32, i32, i32
  }
  func.func @transform_1(%arg0: i32, %arg1: i32) -> (i32, i32, i32) {
    %c0_i32 = arith.constant 0 : i32
    %c0_i32_0 = arith.constant 0 : i32
    %c0_i32_1 = arith.constant 0 : i32
    return %arg1, %c0_i32, %c0_i32_0 : i32, i32, i32
  }
  func.func @transform_2(%arg0: i32, %arg1: i32) -> (i32, i32, i32) {
    %c0_i32 = arith.constant 0 : i32
    %c0_i32_0 = arith.constant 0 : i32
    %c0_i32_1 = arith.constant 0 : i32
    return %arg1, %c0_i32, %c0_i32_0 : i32, i32, i32
  }
  func.func @transform_3(%arg0: i32, %arg1: i32) -> (i32, i32, i32) {
    %c0_i32 = arith.constant 0 : i32
    %c0_i32_0 = arith.constant 0 : i32
    %c0_i32_1 = arith.constant 0 : i32
    return %arg1, %c0_i32, %c0_i32_0 : i32, i32, i32
  }
  func.func @transform_4(%arg0: i32, %arg1: i32) -> (i32, i32, i32) {
    %c0_i32 = arith.constant 0 : i32
    %c0_i32_0 = arith.constant 0 : i32
    %c0_i32_1 = arith.constant 0 : i32
    return %arg1, %c0_i32, %c0_i32_0 : i32, i32, i32
  }
  func.func @transform_5(%arg0: i32, %arg1: i32) -> (i32, i32, i32) {
    %c0_i32 = arith.constant 0 : i32
    %c0_i32_0 = arith.constant 0 : i32
    %c0_i32_1 = arith.constant 0 : i32
    return %arg1, %c0_i32, %c0_i32_0 : i32, i32, i32
  }
  func.func @transform_6(%arg0: i32, %arg1: i32) -> (i32, i32, i32) {
    %c0_i32 = arith.constant 0 : i32
    %c0_i32_0 = arith.constant 0 : i32
    %c0_i32_1 = arith.constant 0 : i32
    return %arg1, %c0_i32, %c0_i32_0 : i32, i32, i32
  }
  func.func @transform_7(%arg0: i32, %arg1: i32) -> (i32, i32, i32) {
    %c0_i32 = arith.constant 0 : i32
    %c0_i32_0 = arith.constant 0 : i32
    %c0_i32_1 = arith.constant 0 : i32
    return %arg1, %c0_i32, %c0_i32_0 : i32, i32, i32
  }
  func.func @transform_8(%arg0: i32, %arg1: i32) -> (i32, i32, i32) {
    %c0_i32 = arith.constant 0 : i32
    %c0_i32_0 = arith.constant 0 : i32
    %c0_i32_1 = arith.constant 0 : i32
    return %arg1, %c0_i32, %c0_i32_0 : i32, i32, i32
  }
  func.func @transform_9(%arg0: i32, %arg1: i32) -> (i32, i32, i32) {
    %c0_i32 = arith.constant 0 : i32
    %c0_i32_0 = arith.constant 0 : i32
    %c0_i32_1 = arith.constant 0 : i32
    return %arg1, %c0_i32, %c0_i32_0 : i32, i32, i32
  }
  func.func @transform_10(%arg0: i32, %arg1: i32) -> (i32, i32, i32) {
    %c0_i32 = arith.constant 0 : i32
    %c0_i32_0 = arith.constant 0 : i32
    %c0_i32_1 = arith.constant 0 : i32
    return %arg1, %c0_i32, %c0_i32_0 : i32, i32, i32
  }
  func.func @transform_11(%arg0: i32, %arg1: i32) -> (i32, i32, i32) {
    %c0_i32 = arith.constant 0 : i32
    %c0_i32_0 = arith.constant 0 : i32
    %c0_i32_1 = arith.constant 0 : i32
    return %arg1, %c0_i32, %c0_i32_0 : i32, i32, i32
  }
  func.func @transform_12(%arg0: i32, %arg1: i32) -> (i32, i32, i32) {
    %c0_i32 = arith.constant 0 : i32
    %c0_i32_0 = arith.constant 0 : i32
    %c0_i32_1 = arith.constant 0 : i32
    return %arg1, %c0_i32, %c0_i32_0 : i32, i32, i32
  }
  func.func @transform_13(%arg0: i32, %arg1: i32) -> (i32, i32) {
    %c0_i32 = arith.constant 0 : i32
    %c0_i32_0 = arith.constant 0 : i32
    %c0_i32_1 = arith.constant 0 : i32
    return %c0_i32, %c0_i32_0 : i32, i32
  }
  func.func @transform_14(%arg0: i32, %arg1: i32) -> (i32, i32) {
    %c0_i32 = arith.constant 0 : i32
    %c0_i32_0 = arith.constant 0 : i32
    %c0_i32_1 = arith.constant 0 : i32
    return %c0_i32, %c0_i32_0 : i32, i32
  }
  func.func @transform_15(%arg0: i32, %arg1: i32) -> (i32, i32) {
    %c0_i32 = arith.constant 0 : i32
    %c0_i32_0 = arith.constant 0 : i32
    %c0_i32_1 = arith.constant 0 : i32
    return %c0_i32, %c0_i32_0 : i32, i32
  }
  func.func @transform_16(%arg0: i32, %arg1: i32) -> (i32, i32) {
    %c0_i32 = arith.constant 0 : i32
    %c0_i32_0 = arith.constant 0 : i32
    %c0_i32_1 = arith.constant 0 : i32
    return %c0_i32, %c0_i32_0 : i32, i32
  }
  func.func @transform_17(%arg0: i32, %arg1: i32) -> (i32, i32, i32) {
    %c0_i32 = arith.constant 0 : i32
    %c0_i32_0 = arith.constant 0 : i32
    %c0_i32_1 = arith.constant 0 : i32
    return %arg0, %c0_i32, %c0_i32_0 : i32, i32, i32
  }
}

</mosaic_0001>

<llo_original>
// kernel: vimpac_forward.2
$region0: #{vimpac_forward.2}
  #allocation0 [shape = 'u32[]', space=smem, size = 0x4, offset = 0x4, fixed_abs, tag = 'smem constant byte address 0x4 - core index']
  #allocation1 [shape = 'u32[144,128]{1,0:T(1,128)}', space=vmem, size = 0x12000, scoped, tag = 'internal scratch']
  %s0 = inlined_call_operand.vmem [shape: bf16[192,128], index: 0, kind: input, shape index: {}]
  %s1 = inlined_call_operand.vmem [shape: bf16[128,192], index: 1, kind: input, shape index: {}]
  %s2 = inlined_call_operand.vmem [shape: f32[128,1], index: 2, kind: input, shape index: {}]
  %s3 = inlined_call_operand.vmem [shape: s32[1,128], index: 3, kind: output, shape index: {}]
  %s4 = sld [smem:[#allocation0]]
  $region22: #{vimpac_forward.2} parent=0
    _
  %s6 = ssub.s32 1, %s4
  %s7 = scalar_select 0, %s6, %s4
  // Predicated region
  $region2: #{vimpac_forward.2} parent=0 // pred_check
    _
  $region3: #{vimpac_forward.2} parent=0 // pred_check_branch
    %9 = sbr.rel (0) target = $region5
  $region4: #{vimpac_forward.2} parent=0 // pred_region
    _
  $region5: #{vimpac_forward.2} parent=0 // pred_fallthru
    _
  // Predicated region
  $region6: #{vimpac_forward.2} parent=0 // pred_check
    _
  $region7: #{vimpac_forward.2} parent=0 // pred_check_branch
    %11 = sbr.rel (0) target = $region9
  $region8: #{vimpac_forward.2} parent=0 // pred_region
    _
  $region9: #{vimpac_forward.2} parent=0 // pred_fallthru
    _
  // Predicated region
  $region10: #{vimpac_forward.2} parent=0 // pred_check
    _
  $region11: #{vimpac_forward.2} parent=0 // pred_check_branch
    %13 = sbr.rel (0) target = $region13
  $region12: #{vimpac_forward.2} parent=0 // pred_region
    _
  $region13: #{vimpac_forward.2} parent=0 // pred_fallthru
    _
  %v15 = vld [vmem:[%s1] sm:$0xff]
  %v16 = vld [vmem:[%s1 + $0x8] sm:$0xff]
  %v17 = vld [vmem:[%s1 + $0x10] sm:$0xff]
  %v18 = vld [vmem:[%s1 + $0x18] sm:$0xff]
  %v19 = vld [vmem:[%s1 + $0x20] sm:$0xff]
  %v20 = vld [vmem:[%s1 + $0x28] sm:$0xff]
  %v21 = vld [vmem:[%s1 + $0x30] sm:$0xff]
  %v22 = vld [vmem:[%s1 + $0x38] sm:$0xff]
  %v23 = vld [vmem:[%s1 + $0x40] sm:$0xff]
  %v24 = vld [vmem:[%s1 + $0x48] sm:$0xff]
  %v25 = vld [vmem:[%s1 + $0x50] sm:$0xff]
  %v26 = vld [vmem:[%s1 + $0x58] sm:$0xff]
  %v27 = vld [vmem:[%s1 + $0x60] sm:$0xff]
  %v28 = vld [vmem:[%s1 + $0x68] sm:$0xff]
  %v29 = vld [vmem:[%s1 + $0x70] sm:$0xff]
  %v30 = vld [vmem:[%s1 + $0x78] sm:$0xff]
  %v31 = vld [vmem:[%s0] sm:$0xf]
  %v32 = vld [vmem:[%s0 + $0x4] sm:$0xf]
  %v33 = vld [vmem:[%s0 + $0x8] sm:$0xf]
  %v34 = vld [vmem:[%s0 + $0xc] sm:$0xf]
  %v35 = vld [vmem:[%s0 + $0x10] sm:$0xf]
  %v36 = vld [vmem:[%s0 + $0x14] sm:$0xf]
  %v37 = vld [vmem:[%s0 + $0x18] sm:$0xf]
  %v38 = vld [vmem:[%s0 + $0x1c] sm:$0xf]
  %v39 = vld [vmem:[%s0 + $0x20] sm:$0xf]
  %v40 = vld [vmem:[%s0 + $0x24] sm:$0xf]
  %v41 = vld [vmem:[%s0 + $0x28] sm:$0xf]
  %v42 = vld [vmem:[%s0 + $0x2c] sm:$0xf]
  %v43 = vld [vmem:[%s0 + $0x30] sm:$0xf]
  %v44 = vld [vmem:[%s0 + $0x34] sm:$0xf]
  %v45 = vld [vmem:[%s0 + $0x38] sm:$0xf]
  %v46 = vld [vmem:[%s0 + $0x3c] sm:$0xf]
  %v47 = vld [vmem:[%s0 + $0x40] sm:$0xf]
  %v48 = vld [vmem:[%s0 + $0x44] sm:$0xf]
  %v49 = vld [vmem:[%s0 + $0x48] sm:$0xf]
  %v50 = vld [vmem:[%s0 + $0x4c] sm:$0xf]
  %v51 = vld [vmem:[%s0 + $0x50] sm:$0xf]
  %v52 = vld [vmem:[%s0 + $0x54] sm:$0xf]
  %v53 = vld [vmem:[%s0 + $0x58] sm:$0xf]
  %v54 = vld [vmem:[%s0 + $0x5c] sm:$0xf]
  %v71 = vunpack.c.l.b16 %v15
  %v72 = vunpack.c.h.b16 %v15
  %v73 = vunpack.c.l.b16 %v16
  %v74 = vunpack.c.h.b16 %v16
  %v75 = vunpack.c.l.b16 %v17
  %v76 = vunpack.c.h.b16 %v17
  %v77 = vunpack.c.l.b16 %v18
  %v78 = vunpack.c.h.b16 %v18
  %v79 = vunpack.c.l.b16 %v19
  %v80 = vunpack.c.h.b16 %v19
  %v81 = vunpack.c.l.b16 %v20
  %v82 = vunpack.c.h.b16 %v20
  %v83 = vunpack.c.l.b16 %v21
  %v84 = vunpack.c.h.b16 %v21
  %v85 = vunpack.c.l.b16 %v22
  %v86 = vunpack.c.h.b16 %v22
  %v87 = vunpack.c.l.b16 %v23
  %v88 = vunpack.c.h.b16 %v23
  %v89 = vunpack.c.l.b16 %v24
  %v90 = vunpack.c.h.b16 %v24
  %v91 = vunpack.c.l.b16 %v25
  %v92 = vunpack.c.h.b16 %v25
  %v93 = vunpack.c.l.b16 %v26
  %v94 = vunpack.c.h.b16 %v26
  %v95 = vunpack.c.l.b16 %v27
  %v96 = vunpack.c.h.b16 %v27
  %v97 = vunpack.c.l.b16 %v28
  %v98 = vunpack.c.h.b16 %v28
  %v99 = vunpack.c.l.b16 %v29
  %v100 = vunpack.c.h.b16 %v29
  %v101 = vunpack.c.l.b16 %v30
  %v102 = vunpack.c.h.b16 %v30
  %v103 = vpack.c.b16 %v73, %v71
  %v104 = vpack.c.b16 %v74, %v72
  %v105 = vpack.c.b16 %v77, %v75
  %v106 = vpack.c.b16 %v78, %v76
  %v107 = vpack.c.b16 %v81, %v79
  %v108 = vpack.c.b16 %v82, %v80
  %v109 = vpack.c.b16 %v85, %v83
  %v110 = vpack.c.b16 %v86, %v84
  %v111 = vpack.c.b16 %v89, %v87
  %v112 = vpack.c.b16 %v90, %v88
  %v113 = vpack.c.b16 %v93, %v91
  %v114 = vpack.c.b16 %v94, %v92
  %v115 = vpack.c.b16 %v97, %v95
  %v116 = vpack.c.b16 %v98, %v96
  %v117 = vpack.c.b16 %v101, %v99
  %v118 = vpack.c.b16 %v102, %v100
  %v151 = vunpack.c.l.b16 %v31
  %v152 = vunpack.c.l.b16 %v32
  %v153 = vunpack.c.l.b16 %v33
  %v154 = vunpack.c.l.b16 %v34
  %v155 = vunpack.c.l.b16 %v35
  %v156 = vunpack.c.l.b16 %v36
  %v157 = vunpack.c.l.b16 %v37
  %v158 = vunpack.c.l.b16 %v38
  %v159 = vunpack.c.l.b16 %v39
  %v160 = vunpack.c.l.b16 %v40
  %v161 = vunpack.c.l.b16 %v41
  %v162 = vunpack.c.l.b16 %v42
  %v163 = vunpack.c.l.b16 %v43
  %v164 = vunpack.c.l.b16 %v44
  %v165 = vunpack.c.l.b16 %v45
  %v166 = vunpack.c.l.b16 %v46
  %v167 = vunpack.c.l.b16 %v47
  %v168 = vunpack.c.l.b16 %v48
  %v169 = vunpack.c.l.b16 %v49
  %v170 = vunpack.c.l.b16 %v50
  %v171 = vunpack.c.l.b16 %v51
  %v172 = vunpack.c.l.b16 %v52
  %v173 = vunpack.c.l.b16 %v53
  %v174 = vunpack.c.l.b16 %v54
  %v175 = vpack.c.b16 %v152, %v151
  %v176 = vpack.c.b16 %v154, %v153
  %v177 = vpack.c.b16 %v156, %v155
  %v178 = vpack.c.b16 %v158, %v157
  %v179 = vpack.c.b16 %v160, %v159
  %v180 = vpack.c.b16 %v162, %v161
  %v181 = vpack.c.b16 %v164, %v163
  %v182 = vpack.c.b16 %v166, %v165
  %v183 = vpack.c.b16 %v168, %v167
  %v184 = vpack.c.b16 %v170, %v169
  %v185 = vpack.c.b16 %v172, %v171
  %v186 = vpack.c.b16 %v174, %v173
  %vm199 = vcmask 523264
  %v201 = vsel %vm199, %v104, 0
  %v204 = vsel %vm199, %v106, 0
  %v207 = vsel %vm199, %v108, 0
  %v210 = vsel %vm199, %v110, 0
  %v213 = vsel %vm199, %v112, 0
  %v216 = vsel %vm199, %v114, 0
  %v219 = vsel %vm199, %v116, 0
  %v222 = vsel %vm199, %v118, 0
  %224 = vmatprep.subr.bf16.mxu0 0
  %225 = vmatpush1.bf16.msra.mxu0 %v175
  %226 = vmatprep.subr.bf16.mxu0 0
  %227 = vmatpush1.bf16.msra.mxu0 %v176
  %228 = vmatprep.subr.bf16.mxu0 0
  %229 = vmatpush1.bf16.msra.mxu0 %v177
  %230 = vmatprep.subr.bf16.mxu0 0
  %231 = vmatpush1.bf16.msra.mxu0 %v178
  %232 = vmatprep.subr.bf16.mxu0 0
  %233 = vmatpush1.bf16.msra.mxu0 %v179
  %234 = vmatprep.subr.bf16.mxu0 0
  %235 = vmatpush1.bf16.msra.mxu0 %v180
  %236 = vmatprep.subr.bf16.mxu0 0
  %237 = vmatpush1.bf16.msra.mxu0 %v181
  %238 = vmatprep.subr.bf16.mxu0 0
  %239 = vmatpush1.bf16.msra.mxu0 %v182
  %240 = vmatprep.subr.bf16.mxu0 0
  %241 = vmatpush1.bf16.msra.mxu0 %v183
  %242 = vmatprep.subr.bf16.mxu0 0
  %243 = vmatpush1.bf16.msra.mxu0 %v184
  %244 = vmatprep.subr.bf16.mxu0 0
  %245 = vmatpush1.bf16.msra.mxu0 %v185
  %246 = vmatprep.subr.bf16.mxu0 0
  %247 = vmatpush1.bf16.msra.mxu0 %v186
  %248 = vmatprep.subr.bf16.mxu0 0
  %249 = vmatpush1.bf16.msra.mxu0 0
  %250 = vmatprep.subr.bf16.mxu0 0
  %251 = vmatpush1.bf16.msra.mxu0 0
  %252 = vmatprep.subr.bf16.mxu0 0
  %253 = vmatpush1.bf16.msra.mxu0 0
  %254 = vmatprep.subr.bf16.mxu0 0
  %255 = vmatpush1.bf16.msra.mxu0 0
  %256 = vmatprep.mubr.bf16.mxu0 %v201
  %257 = vmatmul.mubr.bf16.gmra.mrb[0].mxu0 %v103
  %v258 = vpop.f32.mrb[0].mxu0
  %v259 = vadd.f32 0.0, %v258
  %v260 = vpop.f32.mrb[0].mxu0
  %v261 = vpop.f32.mrb[0].mxu0
  %v262 = vadd.f32 0.0, %v261
  %v263 = vpop.f32.mrb[0].mxu0
  %264 = vmatprep.mubr.bf16.mxu0 %v204
  %265 = vmatmul.mubr.bf16.gmra.mrb[0].mxu0 %v105
  %v266 = vpop.f32.mrb[0].mxu0
  %v267 = vadd.f32 0.0, %v266
  %v268 = vpop.f32.mrb[0].mxu0
  %v269 = vpop.f32.mrb[0].mxu0
  %v270 = vadd.f32 0.0, %v269
  %v271 = vpop.f32.mrb[0].mxu0
  %272 = vmatprep.mubr.bf16.mxu0 %v207
  %273 = vmatmul.mubr.bf16.gmra.mrb[0].mxu0 %v107
  %v274 = vpop.f32.mrb[0].mxu0
  %v275 = vadd.f32 0.0, %v274
  %v276 = vpop.f32.mrb[0].mxu0
  %v277 = vpop.f32.mrb[0].mxu0
  %v278 = vadd.f32 0.0, %v277
  %v279 = vpop.f32.mrb[0].mxu0
  %280 = vmatprep.mubr.bf16.mxu0 %v210
  %281 = vmatmul.mubr.bf16.gmra.mrb[0].mxu0 %v109
  %v282 = vpop.f32.mrb[0].mxu0
  %v283 = vadd.f32 0.0, %v282
  %v284 = vpop.f32.mrb[0].mxu0
  %v285 = vpop.f32.mrb[0].mxu0
  %v286 = vadd.f32 0.0, %v285
  %v287 = vpop.f32.mrb[0].mxu0
  %288 = vmatprep.mubr.bf16.mxu0 %v213
  %289 = vmatmul.mubr.bf16.gmra.mrb[0].mxu0 %v111
  %v290 = vpop.f32.mrb[0].mxu0
  %v291 = vadd.f32 0.0, %v290
  %v292 = vpop.f32.mrb[0].mxu0
  %v293 = vpop.f32.mrb[0].mxu0
  %v294 = vadd.f32 0.0, %v293
  %v295 = vpop.f32.mrb[0].mxu0
  %296 = vmatprep.mubr.bf16.mxu0 %v216
  %297 = vmatmul.mubr.bf16.gmra.mrb[0].mxu0 %v113
  %v298 = vpop.f32.mrb[0].mxu0
  %v299 = vadd.f32 0.0, %v298
  %v300 = vpop.f32.mrb[0].mxu0
  %v301 = vpop.f32.mrb[0].mxu0
  %v302 = vadd.f32 0.0, %v301
  %v303 = vpop.f32.mrb[0].mxu0
  %304 = vmatprep.mubr.bf16.mxu0 %v219
  %305 = vmatmul.mubr.bf16.gmra.mrb[0].mxu0 %v115
  %v306 = vpop.f32.mrb[0].mxu0
  %v307 = vadd.f32 0.0, %v306
  %v308 = vpop.f32.mrb[0].mxu0
  %v309 = vpop.f32.mrb[0].mxu0
  %v310 = vadd.f32 0.0, %v309
  %v311 = vpop.f32.mrb[0].mxu0
  %312 = vmatprep.mubr.bf16.mxu0 %v222
  %313 = vmatmul.mubr.bf16.gmra.mrb[0].mxu0 %v117
  %v314 = vpop.f32.mrb[0].mxu0
  %v315 = vadd.f32 0.0, %v314
  %v316 = vpop.f32.mrb[0].mxu0
  %v317 = vpop.f32.mrb[0].mxu0
  %v318 = vadd.f32 0.0, %v317
  %v319 = vpop.f32.mrb[0].mxu0
  %320 = vdwg.mxu0
  %v321 = vld [vmem:[%s2] sm:$0xff]
  %v322 = vld [vmem:[%s2 + $0x8] sm:$0xff]
  %v323 = vld [vmem:[%s2 + $0x10] sm:$0xff]
  %v324 = vld [vmem:[%s2 + $0x18] sm:$0xff]
  %v325 = vld [vmem:[%s2 + $0x20] sm:$0xff]
  %v326 = vld [vmem:[%s2 + $0x28] sm:$0xff]
  %v327 = vld [vmem:[%s2 + $0x30] sm:$0xff]
  %v328 = vld [vmem:[%s2 + $0x38] sm:$0xff]
  %v329 = vld [vmem:[%s2 + $0x40] sm:$0xff]
  %v330 = vld [vmem:[%s2 + $0x48] sm:$0xff]
  %v331 = vld [vmem:[%s2 + $0x50] sm:$0xff]
  %v332 = vld [vmem:[%s2 + $0x58] sm:$0xff]
  %v333 = vld [vmem:[%s2 + $0x60] sm:$0xff]
  %v334 = vld [vmem:[%s2 + $0x68] sm:$0xff]
  %v335 = vld [vmem:[%s2 + $0x70] sm:$0xff]
  %v336 = vld [vmem:[%s2 + $0x78] sm:$0xff]
  %338 = vset.pattern.permute.xlu0 0
  %339 = vperm.xlu0 %338, %v321
  %v340 = vpop.permute.xlu0 %339
  %343 = vset.pattern.permute.xlu0 0
  %344 = vperm.xlu0 %343, %v322
  %v345 = vpop.permute.xlu0 %344
  %348 = vset.pattern.permute.xlu0 0
  %349 = vperm.xlu0 %348, %v323
  %v350 = vpop.permute.xlu0 %349
  %353 = vset.pattern.permute.xlu0 0
  %354 = vperm.xlu0 %353, %v324
  %v355 = vpop.permute.xlu0 %354
  %358 = vset.pattern.permute.xlu0 0
  %359 = vperm.xlu0 %358, %v325
  %v360 = vpop.permute.xlu0 %359
  %363 = vset.pattern.permute.xlu0 0
  %364 = vperm.xlu0 %363, %v326
  %v365 = vpop.permute.xlu0 %364
  %368 = vset.pattern.permute.xlu0 0
  %369 = vperm.xlu0 %368, %v327
  %v370 = vpop.permute.xlu0 %369
  %373 = vset.pattern.permute.xlu0 0
  %374 = vperm.xlu0 %373, %v328
  %v375 = vpop.permute.xlu0 %374
  %378 = vset.pattern.permute.xlu0 0
  %379 = vperm.xlu0 %378, %v329
  %v380 = vpop.permute.xlu0 %379
  %383 = vset.pattern.permute.xlu0 0
  %384 = vperm.xlu0 %383, %v330
  %v385 = vpop.permute.xlu0 %384
  %388 = vset.pattern.permute.xlu0 0
  %389 = vperm.xlu0 %388, %v331
  %v390 = vpop.permute.xlu0 %389
  %393 = vset.pattern.permute.xlu0 0
  %394 = vperm.xlu0 %393, %v332
  %v395 = vpop.permute.xlu0 %394
  %398 = vset.pattern.permute.xlu0 0
  %399 = vperm.xlu0 %398, %v333
  %v400 = vpop.permute.xlu0 %399
  %403 = vset.pattern.permute.xlu0 0
  %404 = vperm.xlu0 %403, %v334
  %v405 = vpop.permute.xlu0 %404
  %408 = vset.pattern.permute.xlu0 0
  %409 = vperm.xlu0 %408, %v335
  %v410 = vpop.permute.xlu0 %409
  %413 = vset.pattern.permute.xlu0 0
  %414 = vperm.xlu0 %413, %v336
  %v415 = vpop.permute.xlu0 %414
  %v417 = vsub.f32 %v259, %v340
  %v418 = vsub.f32 %v262, %v345
  %v419 = vsub.f32 %v267, %v350
  %v420 = vsub.f32 %v270, %v355
  %v421 = vsub.f32 %v275, %v360
  %v422 = vsub.f32 %v278, %v365
  %v423 = vsub.f32 %v283, %v370
  %v424 = vsub.f32 %v286, %v375
  %v425 = vsub.f32 %v291, %v380
  %v426 = vsub.f32 %v294, %v385
  %v427 = vsub.f32 %v299, %v390
  %v428 = vsub.f32 %v302, %v395
  %v429 = vsub.f32 %v307, %v400
  %v430 = vsub.f32 %v310, %v405
  %v431 = vsub.f32 %v315, %v410
  %v432 = vsub.f32 %v318, %v415
  %v433 = vlaneseq
  %v434 = vshrl.u32 %v433, 7
  %v435 = vadd.s32 %v434, 8
  %v436 = vadd.s32 %v434, 16
  %v437 = vadd.s32 %v434, 24
  %v438 = vadd.s32 %v434, 32
  %v439 = vadd.s32 %v434, 40
  %v440 = vadd.s32 %v434, 48
  %v441 = vadd.s32 %v434, 56
  %v442 = vadd.s32 %v434, 64
  %v443 = vadd.s32 %v434, 72
  %v444 = vadd.s32 %v434, 80
  %v445 = vadd.s32 %v434, 88
  %v446 = vadd.s32 %v434, 96
  %v447 = vadd.s32 %v434, 104
  %v448 = vadd.s32 %v434, 112
  %v449 = vadd.s32 %v434, 120
  %vm450 = vcmp.lt.s32.totalorder %v434, 64
  %vm451 = vcmp.lt.s32.totalorder %v435, 64
  %vm452 = vcmp.lt.s32.totalorder %v436, 64
  %vm453 = vcmp.lt.s32.totalorder %v437, 64
  %vm454 = vcmp.lt.s32.totalorder %v438, 64
  %vm455 = vcmp.lt.s32.totalorder %v439, 64
  %vm456 = vcmp.lt.s32.totalorder %v440, 64
  %vm457 = vcmp.lt.s32.totalorder %v441, 64
  %vm458 = vcmp.lt.s32.totalorder %v442, 64
  %vm459 = vcmp.lt.s32.totalorder %v443, 64
  %vm460 = vcmp.lt.s32.totalorder %v444, 64
  %vm461 = vcmp.lt.s32.totalorder %v445, 64
  %vm462 = vcmp.lt.s32.totalorder %v446, 64
  %vm463 = vcmp.lt.s32.totalorder %v447, 64
  %vm464 = vcmp.lt.s32.totalorder %v448, 64
  %vm465 = vcmp.lt.s32.totalorder %v449, 64
  %v466 = vsel %vm450, %v417, -1e+30
  %v467 = vsel %vm451, %v418, -1e+30
  %v468 = vsel %vm452, %v419, -1e+30
  %v469 = vsel %vm453, %v420, -1e+30
  %v470 = vsel %vm454, %v421, -1e+30
  %v471 = vsel %vm455, %v422, -1e+30
  %v472 = vsel %vm456, %v423, -1e+30
  %v473 = vsel %vm457, %v424, -1e+30
  %v474 = vsel %vm458, %v425, -1e+30
  %v475 = vsel %vm459, %v426, -1e+30
  %v476 = vsel %vm460, %v427, -1e+30
  %v477 = vsel %vm461, %v428, -1e+30
  %v478 = vsel %vm462, %v429, -1e+30
  %v479 = vsel %vm463, %v430, -1e+30
  %v480 = vsel %vm464, %v431, -1e+30
  %v481 = vsel %vm465, %v432, -1e+30
  %v482 = vmax.f32 %v466, %v470
  %v483 = vmax.f32 %v467, %v471
  %v484 = vmax.f32 %v468, %v472
  %v485 = vmax.f32 %v469, %v473
  %v486 = vmax.f32 %v482, %v474
  %v487 = vmax.f32 %v483, %v475
  %v488 = vmax.f32 %v484, %v476
  %v489 = vmax.f32 %v485, %v477
  %v490 = vmax.f32 %v486, %v478
  %v491 = vmax.f32 %v487, %v479
  %v492 = vmax.f32 %v488, %v480
  %v493 = vmax.f32 %v489, %v481
  %v494 = vmax.f32 %v490, %v491
  %v495 = vmax.f32 %v492, %v493
  %v496 = vmax.f32 %v494, %v495
  %v497 = vrot.slane %v496, 4
  %v498 = vmax.f32 %v496, %v497
  %v499 = vrot.slane %v498, 2
  %v500 = vmax.f32 %v498, %v499
  %v501 = vrot.slane %v500, 1
  %v502 = vmax.f32 %v500, %v501
  %vm503 = vcmp.ge.f32.partialorder %v466, %v502
  %vm504 = vcmp.ge.f32.partialorder %v467, %v502
  %vm505 = vcmp.ge.f32.partialorder %v468, %v502
  %vm506 = vcmp.ge.f32.partialorder %v469, %v502
  %vm507 = vcmp.ge.f32.partialorder %v470, %v502
  %vm508 = vcmp.ge.f32.partialorder %v471, %v502
  %vm509 = vcmp.ge.f32.partialorder %v472, %v502
  %vm510 = vcmp.ge.f32.partialorder %v473, %v502
  %vm511 = vcmp.ge.f32.partialorder %v474, %v502
  %vm512 = vcmp.ge.f32.partialorder %v475, %v502
  %vm513 = vcmp.ge.f32.partialorder %v476, %v502
  %vm514 = vcmp.ge.f32.partialorder %v477, %v502
  %vm515 = vcmp.ge.f32.partialorder %v478, %v502
  %vm516 = vcmp.ge.f32.partialorder %v479, %v502
  %vm517 = vcmp.ge.f32.partialorder %v480, %v502
  %vm518 = vcmp.ge.f32.partialorder %v481, %v502
  %vm519 = vmand %vm503, %vm450
  %vm520 = vmand %vm504, %vm451
  %vm521 = vmand %vm505, %vm452
  %vm522 = vmand %vm506, %vm453
  %vm523 = vmand %vm507, %vm454
  %vm524 = vmand %vm508, %vm455
  %vm525 = vmand %vm509, %vm456
  %vm526 = vmand %vm510, %vm457
  %vm527 = vmand %vm511, %vm458
  %vm528 = vmand %vm512, %vm459
  %vm529 = vmand %vm513, %vm460
  %vm530 = vmand %vm514, %vm461
  %vm531 = vmand %vm515, %vm462
  %vm532 = vmand %vm516, %vm463
  %vm533 = vmand %vm517, %vm464
  %vm534 = vmand %vm518, %vm465
  %v535 = vsel %vm519, %v434, 128
  %v536 = vsel %vm520, %v435, 128
  %v537 = vsel %vm521, %v436, 128
  %v538 = vsel %vm522, %v437, 128
  %v539 = vsel %vm523, %v438, 128
  %v540 = vsel %vm524, %v439, 128
  %v541 = vsel %vm525, %v440, 128
  %v542 = vsel %vm526, %v441, 128
  %v543 = vsel %vm527, %v442, 128
  %v544 = vsel %vm528, %v443, 128
  %v545 = vsel %vm529, %v444, 128
  %v546 = vsel %vm530, %v445, 128
  %v547 = vsel %vm531, %v446, 128
  %v548 = vsel %vm532, %v447, 128
  %v549 = vsel %vm533, %v448, 128
  %v550 = vsel %vm534, %v449, 128
  %vm551 = vcmp.lt.s32.totalorder %v535, %v539
  %v552 = vsel %vm551, %v535, %v539
  %vm553 = vcmp.lt.s32.totalorder %v536, %v540
  %v554 = vsel %vm553, %v536, %v540
  %vm555 = vcmp.lt.s32.totalorder %v537, %v541
  %v556 = vsel %vm555, %v537, %v541
  %vm557 = vcmp.lt.s32.totalorder %v538, %v542
  %v558 = vsel %vm557, %v538, %v542
  %vm559 = vcmp.lt.s32.totalorder %v552, %v543
  %v560 = vsel %vm559, %v552, %v543
  %vm561 = vcmp.lt.s32.totalorder %v554, %v544
  %v562 = vsel %vm561, %v554, %v544
  %vm563 = vcmp.lt.s32.totalorder %v556, %v545
  %v564 = vsel %vm563, %v556, %v545
  %vm565 = vcmp.lt.s32.totalorder %v558, %v546
  %v566 = vsel %vm565, %v558, %v546
  %vm567 = vcmp.lt.s32.totalorder %v560, %v547
  %v568 = vsel %vm567, %v560, %v547
  %vm569 = vcmp.lt.s32.totalorder %v562, %v548
  %v570 = vsel %vm569, %v562, %v548
  %vm571 = vcmp.lt.s32.totalorder %v564, %v549
  %v572 = vsel %vm571, %v564, %v549
  %vm573 = vcmp.lt.s32.totalorder %v566, %v550
  %v574 = vsel %vm573, %v566, %v550
  %vm575 = vcmp.lt.s32.totalorder %v568, %v570
  %v576 = vsel %vm575, %v568, %v570
  %vm577 = vcmp.lt.s32.totalorder %v572, %v574
  %v578 = vsel %vm577, %v572, %v574
  %vm579 = vcmp.lt.s32.totalorder %v576, %v578
  %v580 = vsel %vm579, %v576, %v578
  %v581 = vrot.slane %v580, 4
  %vm582 = vcmp.lt.s32.totalorder %v580, %v581
  %v583 = vsel %vm582, %v580, %v581
  %v584 = vrot.slane %v583, 2
  %vm585 = vcmp.lt.s32.totalorder %v583, %v584
  %v586 = vsel %vm585, %v583, %v584
  %v587 = vrot.slane %v586, 1
  %vm588 = vcmp.lt.s32.totalorder %v586, %v587
  %v589 = vsel %vm588, %v586, %v587
  %590 = vst [vmem:[%s3] sm:$0x1] %v589
  // Predicated region
  $region14: #{vimpac_forward.2} parent=0 // pred_check
    _
  $region15: #{vimpac_forward.2} parent=0 // pred_check_branch
    %592 = sbr.rel (0) target = $region17
  $region16: #{vimpac_forward.2} parent=0 // pred_region
    _
  $region17: #{vimpac_forward.2} parent=0 // pred_fallthru
    _
  // Predicated region
  $region18: #{vimpac_forward.2} parent=0 // pred_check
    _
  $region19: #{vimpac_forward.2} parent=0 // pred_check_branch
    %594 = sbr.rel (0) target = $region21
  $region20: #{vimpac_forward.2} parent=0 // pred_region
    _
  $region21: #{vimpac_forward.2} parent=0 // pred_fallthru
    _

// kernel: vimpac_forward.3
$region0: #{vimpac_forward.3}
  #allocation0 [shape = 'u32[]', space=smem, size = 0x4, offset = 0x4, fixed_abs, tag = 'smem constant byte address 0x4 - core index']
  #allocation1 [shape = 'u32[144,128]{1,0:T(1,128)}', space=vmem, size = 0x12000, scoped, tag = 'internal scratch']
  #allocation2 [shape = 'f32[32,64]{1,0:T(8,128)}', space=vmem, size = 0x4000, scoped, tag = 'scratch operand']
  %s0 = inlined_call_operand.vmem [shape: f32[4,16,64], index: 0, kind: input, shape index: {}]
  %s1 = inlined_call_operand.vmem [shape: bf16[2,64,192], index: 1, kind: input, shape index: {}]
  %s2 = inlined_call_operand.vmem [shape: f32[2,1,192], index: 2, kind: input, shape index: {}]
  %s3 = inlined_call_operand.vmem [shape: bf16[2,64,64], index: 3, kind: input, shape index: {}]
  %s4 = inlined_call_operand.vmem [shape: f32[2,1,64], index: 4, kind: input, shape index: {}]
  %s5 = inlined_call_operand.vmem [shape: f32[2,1,64], index: 5, kind: input, shape index: {}]
  %s6 = inlined_call_operand.vmem [shape: f32[2,1,64], index: 6, kind: input, shape index: {}]
  %s7 = inlined_call_operand.vmem [shape: bf16[2,64,256], index: 7, kind: input, shape index: {}]
  %s8 = inlined_call_operand.vmem [shape: f32[2,1,256], index: 8, kind: input, shape index: {}]
  %s9 = inlined_call_operand.vmem [shape: bf16[2,256,64], index: 9, kind: input, shape index: {}]
  %s10 = inlined_call_operand.vmem [shape: f32[2,1,64], index: 10, kind: input, shape index: {}]
  %s11 = inlined_call_operand.vmem [shape: f32[2,1,64], index: 11, kind: input, shape index: {}]
  %s12 = inlined_call_operand.vmem [shape: f32[2,1,64], index: 12, kind: input, shape index: {}]
  %s13 = inlined_call_operand.vmem [shape: bf16[64,128], index: 13, kind: input, shape index: {}]
  %s14 = inlined_call_operand.vmem [shape: f32[1,128], index: 14, kind: input, shape index: {}]
  %s15 = inlined_call_operand.vmem [shape: bf16[128,128], index: 15, kind: input, shape index: {}]
  %s16 = inlined_call_operand.vmem [shape: f32[1,128], index: 16, kind: input, shape index: {}]
  %s17 = inlined_call_operand.hbm [shape: f32[2,2,128], index: 17, kind: output, shape index: {}]
  %s18 = sld [smem:[#allocation0]]
  $region109: #{vimpac_forward.3} parent=0
    _
  %s20 = ssub.s32 1, %s18
  %s21 = scalar_select 0, %s20, %s18
  $region1: #{vimpac_forward.3} parent=0
    #allocation3 [shape = 'u8[2048]{0}', space=vmem, size = 0x800, scoped, tag = 'output window, operand 0']
    #allocation4 [shape = 's32[2]{0}', space=sflag, size = 0x8, scoped, tag = 'scoped memory for vimpac_forward.3']
    %22 = vsyncpa [#allocation4], 0
    %s23 = scalar_lea.sflag [#allocation4], 1
    %24 = vsyncpa %s23, 0
    loop: start=0, step=1, limit=6
    $region2: #{vimpac_forward.3} parent=1 // loop_pre_header
      _
    $region3: #{vimpac_forward.3} parent=1 // loop_header
      %s26 = sphi 0, %s30
      %p27 = scmp.ge.s32.totalorder %s26, 6
      %s33 = sphi 0, %s45
      %s34 = sphi 0, %s41
      %s35 = sphi 0, %s33
      %s36 = sphi 0, %s34
      %s37 = sphi 0, %s35
      %s38 = sphi 0, %s36
      %s48 = sphi 0, %s50
      %s51 = sphi 0, %s48
      %s52 = sphi 0, %s51
      %s68 = sphi 0, %s52
      %s74 = sphi 0, %s76
      %s77 = sphi 0, %s74
      %s78 = sphi 0, %s77
      %s94 = sphi 0, %s78
      %s100 = sphi 0, %s102
      %s103 = sphi 0, %s100
      %s104 = sphi 0, %s103
      %s120 = sphi 0, %s104
      %s126 = sphi 0, %s128
      %s129 = sphi 0, %s126
      %s130 = sphi 0, %s129
      %s146 = sphi 0, %s130
      %s152 = sphi 0, %s154
      %s155 = sphi 0, %s152
      %s156 = sphi 0, %s155
      %s172 = sphi 0, %s156
      %s178 = sphi 0, %s180
      %s181 = sphi 0, %s178
      %s182 = sphi 0, %s181
      %s198 = sphi 0, %s182
      %s204 = sphi 0, %s206
      %s207 = sphi 0, %s204
      %s208 = sphi 0, %s207
      %s224 = sphi 0, %s208
      %s230 = sphi 0, %s232
      %s233 = sphi 0, %s230
      %s234 = sphi 0, %s233
      %s250 = sphi 0, %s234
      %s256 = sphi 0, %s258
      %s259 = sphi 0, %s256
      %s260 = sphi 0, %s259
      %s276 = sphi 0, %s260
      %s282 = sphi 0, %s284
      %s285 = sphi 0, %s282
      %s286 = sphi 0, %s285
      %s302 = sphi 0, %s286
      %s308 = sphi 0, %s310
      %s311 = sphi 0, %s308
      %s312 = sphi 0, %s311
      %s328 = sphi 0, %s312
      %s334 = sphi 0, %s336
      %s337 = sphi 0, %s334
      %s338 = sphi 0, %s337
      %s354 = sphi 0, %s338
      %s360 = sphi 0, %s362
      %s363 = sphi 0, %s360
      %s364 = sphi 0, %s363
      %s380 = sphi 0, %s364
      %s384 = sphi 0, %s384
      %s386 = sphi 0, %s384
      %s387 = sphi 0, %s386
      %s401 = sphi 0, %s387
      %s405 = sphi 0, %s405
      %s407 = sphi 0, %s405
      %s408 = sphi 0, %s407
      %s422 = sphi 0, %s408
      %s426 = sphi 0, %s426
      %s428 = sphi 0, %s426
      %s429 = sphi 0, %s428
      %s443 = sphi 0, %s429
      %s447 = sphi 0, %s447
      %s449 = sphi 0, %s447
      %s450 = sphi 0, %s449
      %s464 = sphi 0, %s450
      %s470 = sphi 0, %s472
      %s473 = sphi 0, %s470
      %s474 = sphi 0, %s473
      %s490 = sphi 0, %s474
    $region4: #{vimpac_forward.3} parent=1 // loop_header_branch
      %29 = sbr.rel (%p27) target = $region8
    $region5: #{vimpac_forward.3} parent=1 // loop_body
      %s31 = ssub.s32 %s26, 1
      %s32 = ssub.s32 %s26, 2
      %s39 = sadd.s32 1, %s34
      %p40 = scmp.ge.s32.totalorder %s39, 2
      %s41 = scalar_select %p40, 0, %s39
      %s42 = sadd.s32 1, %s33
      %s43 = scalar_select %p40, %s42, %s33
      %p44 = scmp.ge.s32.totalorder %s43, 2
      %s45 = scalar_select %p44, 0, %s43
      %s46 = ssub.s32 %s33, %s45
      %p47 = scmp.eq.s32.totalorder %s46, 0
      %s49 = sadd.s32 %s48, 1
      %s50 = scalar_select %p47, %s48, %s49
      %p53 = pneg %p47
      %p54 = scmp.eq.s32.totalorder %s26, 3
      %p55 = por %p53, %p54
      %p56 = scmp.ne.s32.totalorder %s48, %s51
      %p57 = scmp.eq.s32.totalorder %s26, 0
      %p58 = por %p56, %p57
      %p59 = scmp.ne.s32.totalorder %s48, %s51
      %p60 = scmp.eq.s32.totalorder %s31, 3
      %p61 = por %p59, %p60
      %p62 = scmp.ne.s32.totalorder %s51, %s52
      %p63 = scmp.eq.s32.totalorder %s31, 0
      %p64 = por %p62, %p63
      %p65 = scmp.ne.s32.totalorder %s51, %s52
      %p66 = scmp.eq.s32.totalorder %s32, 3
      %p67 = por %p65, %p66
      %p69 = scmp.ne.s32.totalorder %s52, %s68
      %p70 = scmp.eq.s32.totalorder %s32, 0
      %p71 = por %p69, %p70
      %s72 = ssub.s32 %s34, %s41
      %p73 = scmp.eq.s32.totalorder %s72, 0
      %s75 = sadd.s32 %s74, 1
      %s76 = scalar_select %p73, %s74, %s75
      %p79 = pneg %p73
      %p80 = scmp.eq.s32.totalorder %s26, 3
      %p81 = por %p79, %p80
      %p82 = scmp.ne.s32.totalorder %s74, %s77
      %p83 = scmp.eq.s32.totalorder %s26, 0
      %p84 = por %p82, %p83
      %p85 = scmp.ne.s32.totalorder %s74, %s77
      %p86 = scmp.eq.s32.totalorder %s31, 3
      %p87 = por %p85, %p86
      %p88 = scmp.ne.s32.totalorder %s77, %s78
      %p89 = scmp.eq.s32.totalorder %s31, 0
      %p90 = por %p88, %p89
      %p91 = scmp.ne.s32.totalorder %s77, %s78
      %p92 = scmp.eq.s32.totalorder %s32, 3
      %p93 = por %p91, %p92
      %p95 = scmp.ne.s32.totalorder %s78, %s94
      %p96 = scmp.eq.s32.totalorder %s32, 0
      %p97 = por %p95, %p96
      %s98 = ssub.s32 %s34, %s41
      %p99 = scmp.eq.s32.totalorder %s98, 0
      %s101 = sadd.s32 %s100, 1
      %s102 = scalar_select %p99, %s100, %s101
      %p105 = pneg %p99
      %p106 = scmp.eq.s32.totalorder %s26, 3
      %p107 = por %p105, %p106
      %p108 = scmp.ne.s32.totalorder %s100, %s103
      %p109 = scmp.eq.s32.totalorder %s26, 0
      %p110 = por %p108, %p109
      %p111 = scmp.ne.s32.totalorder %s100, %s103
      %p112 = scmp.eq.s32.totalorder %s31, 3
      %p113 = por %p111, %p112
      %p114 = scmp.ne.s32.totalorder %s103, %s104
      %p115 = scmp.eq.s32.totalorder %s31, 0
      %p116 = por %p114, %p115
      %p117 = scmp.ne.s32.totalorder %s103, %s104
      %p118 = scmp.eq.s32.totalorder %s32, 3
      %p119 = por %p117, %p118
      %p121 = scmp.ne.s32.totalorder %s104, %s120
      %p122 = scmp.eq.s32.totalorder %s32, 0
      %p123 = por %p121, %p122
      %s124 = ssub.s32 %s34, %s41
      %p125 = scmp.eq.s32.totalorder %s124, 0
      %s127 = sadd.s32 %s126, 1
      %s128 = scalar_select %p125, %s126, %s127
      %p131 = pneg %p125
      %p132 = scmp.eq.s32.totalorder %s26, 3
      %p133 = por %p131, %p132
      %p134 = scmp.ne.s32.totalorder %s126, %s129
      %p135 = scmp.eq.s32.totalorder %s26, 0
      %p136 = por %p134, %p135
      %p137 = scmp.ne.s32.totalorder %s126, %s129
      %p138 = scmp.eq.s32.totalorder %s31, 3
      %p139 = por %p137, %p138
      %p140 = scmp.ne.s32.totalorder %s129, %s130
      %p141 = scmp.eq.s32.totalorder %s31, 0
      %p142 = por %p140, %p141
      %p143 = scmp.ne.s32.totalorder %s129, %s130
      %p144 = scmp.eq.s32.totalorder %s32, 3
      %p145 = por %p143, %p144
      %p147 = scmp.ne.s32.totalorder %s130, %s146
      %p148 = scmp.eq.s32.totalorder %s32, 0
      %p149 = por %p147, %p148
      %s150 = ssub.s32 %s34, %s41
      %p151 = scmp.eq.s32.totalorder %s150, 0
      %s153 = sadd.s32 %s152, 1
      %s154 = scalar_select %p151, %s152, %s153
      %p157 = pneg %p151
      %p158 = scmp.eq.s32.totalorder %s26, 3
      %p159 = por %p157, %p158
      %p160 = scmp.ne.s32.totalorder %s152, %s155
      %p161 = scmp.eq.s32.totalorder %s26, 0
      %p162 = por %p160, %p161
      %p163 = scmp.ne.s32.totalorder %s152, %s155
      %p164 = scmp.eq.s32.totalorder %s31, 3
      %p165 = por %p163, %p164
      %p166 = scmp.ne.s32.totalorder %s155, %s156
      %p167 = scmp.eq.s32.totalorder %s31, 0
      %p168 = por %p166, %p167
      %p169 = scmp.ne.s32.totalorder %s155, %s156
      %p170 = scmp.eq.s32.totalorder %s32, 3
      %p171 = por %p169, %p170
      %p173 = scmp.ne.s32.totalorder %s156, %s172
      %p174 = scmp.eq.s32.totalorder %s32, 0
      %p175 = por %p173, %p174
      %s176 = ssub.s32 %s34, %s41
      %p177 = scmp.eq.s32.totalorder %s176, 0
      %s179 = sadd.s32 %s178, 1
      %s180 = scalar_select %p177, %s178, %s179
      %p183 = pneg %p177
      %p184 = scmp.eq.s32.totalorder %s26, 3
      %p185 = por %p183, %p184
      %p186 = scmp.ne.s32.totalorder %s178, %s181
      %p187 = scmp.eq.s32.totalorder %s26, 0
      %p188 = por %p186, %p187
      %p189 = scmp.ne.s32.totalorder %s178, %s181
      %p190 = scmp.eq.s32.totalorder %s31, 3
      %p191 = por %p189, %p190
      %p192 = scmp.ne.s32.totalorder %s181, %s182
      %p193 = scmp.eq.s32.totalorder %s31, 0
      %p194 = por %p192, %p193
      %p195 = scmp.ne.s32.totalorder %s181, %s182
      %p196 = scmp.eq.s32.totalorder %s32, 3
      %p197 = por %p195, %p196
      %p199 = scmp.ne.s32.totalorder %s182, %s198
      %p200 = scmp.eq.s32.totalorder %s32, 0
      %p201 = por %p199, %p200
      %s202 = ssub.s32 %s34, %s41
      %p203 = scmp.eq.s32.totalorder %s202, 0
      %s205 = sadd.s32 %s204, 1
      %s206 = scalar_select %p203, %s204, %s205
      %p209 = pneg %p203
      %p210 = scmp.eq.s32.totalorder %s26, 3
      %p211 = por %p209, %p210
      %p212 = scmp.ne.s32.totalorder %s204, %s207
      %p213 = scmp.eq.s32.totalorder %s26, 0
      %p214 = por %p212, %p213
      %p215 = scmp.ne.s32.totalorder %s204, %s207
      %p216 = scmp.eq.s32.totalorder %s31, 3
      %p217 = por %p215, %p216
      %p218 = scmp.ne.s32.totalorder %s207, %s208
      %p219 = scmp.eq.s32.totalorder %s31, 0
      %p220 = por %p218, %p219
      %p221 = scmp.ne.s32.totalorder %s207, %s208
      %p222 = scmp.eq.s32.totalorder %s32, 3
      %p223 = por %p221, %p222
      %p225 = scmp.ne.s32.totalorder %s208, %s224
      %p226 = scmp.eq.s32.totalorder %s32, 0
      %p227 = por %p225, %p226
      %s228 = ssub.s32 %s34, %s41
      %p229 = scmp.eq.s32.totalorder %s228, 0
      %s231 = sadd.s32 %s230, 1
      %s232 = scalar_select %p229, %s230, %s231
      %p235 = pneg %p229
      %p236 = scmp.eq.s32.totalorder %s26, 3
      %p237 = por %p235, %p236
      %p238 = scmp.ne.s32.totalorder %s230, %s233
      %p239 = scmp.eq.s32.totalorder %s26, 0
      %p240 = por %p238, %p239
      %p241 = scmp.ne.s32.totalorder %s230, %s233
      %p242 = scmp.eq.s32.totalorder %s31, 3
      %p243 = por %p241, %p242
      %p244 = scmp.ne.s32.totalorder %s233, %s234
      %p245 = scmp.eq.s32.totalorder %s31, 0
      %p246 = por %p244, %p245
      %p247 = scmp.ne.s32.totalorder %s233, %s234
      %p248 = scmp.eq.s32.totalorder %s32, 3
      %p249 = por %p247, %p248
      %p251 = scmp.ne.s32.totalorder %s234, %s250
      %p252 = scmp.eq.s32.totalorder %s32, 0
      %p253 = por %p251, %p252
      %s254 = ssub.s32 %s34, %s41
      %p255 = scmp.eq.s32.totalorder %s254, 0
      %s257 = sadd.s32 %s256, 1
      %s258 = scalar_select %p255, %s256, %s257
      %p261 = pneg %p255
      %p262 = scmp.eq.s32.totalorder %s26, 3
      %p263 = por %p261, %p262
      %p264 = scmp.ne.s32.totalorder %s256, %s259
      %p265 = scmp.eq.s32.totalorder %s26, 0
      %p266 = por %p264, %p265
      %p267 = scmp.ne.s32.totalorder %s256, %s259
      %p268 = scmp.eq.s32.totalorder %s31, 3
      %p269 = por %p267, %p268
      %p270 = scmp.ne.s32.totalorder %s259, %s260
      %p271 = scmp.eq.s32.totalorder %s31, 0
      %p272 = por %p270, %p271
      %p273 = scmp.ne.s32.totalorder %s259, %s260
      %p274 = scmp.eq.s32.totalorder %s32, 3
      %p275 = por %p273, %p274
      %p277 = scmp.ne.s32.totalorder %s260, %s276
      %p278 = scmp.eq.s32.totalorder %s32, 0
      %p279 = por %p277, %p278
      %s280 = ssub.s32 %s34, %s41
      %p281 = scmp.eq.s32.totalorder %s280, 0
      %s283 = sadd.s32 %s282, 1
      %s284 = scalar_select %p281, %s282, %s283
      %p287 = pneg %p281
      %p288 = scmp.eq.s32.totalorder %s26, 3
      %p289 = por %p287, %p288
      %p290 = scmp.ne.s32.totalorder %s282, %s285
      %p291 = scmp.eq.s32.totalorder %s26, 0
      %p292 = por %p290, %p291
      %p293 = scmp.ne.s32.totalorder %s282, %s285
      %p294 = scmp.eq.s32.totalorder %s31, 3
      %p295 = por %p293, %p294
      %p296 = scmp.ne.s32.totalorder %s285, %s286
      %p297 = scmp.eq.s32.totalorder %s31, 0
      %p298 = por %p296, %p297
      %p299 = scmp.ne.s32.totalorder %s285, %s286
      %p300 = scmp.eq.s32.totalorder %s32, 3
      %p301 = por %p299, %p300
      %p303 = scmp.ne.s32.totalorder %s286, %s302
      %p304 = scmp.eq.s32.totalorder %s32, 0
      %p305 = por %p303, %p304
      %s306 = ssub.s32 %s34, %s41
      %p307 = scmp.eq.s32.totalorder %s306, 0
      %s309 = sadd.s32 %s308, 1
      %s310 = scalar_select %p307, %s308, %s309
      %p313 = pneg %p307
      %p314 = scmp.eq.s32.totalorder %s26, 3
      %p315 = por %p313, %p314
      %p316 = scmp.ne.s32.totalorder %s308, %s311
      %p317 = scmp.eq.s32.totalorder %s26, 0
      %p318 = por %p316, %p317
      %p319 = scmp.ne.s32.totalorder %s308, %s311
      %p320 = scmp.eq.s32.totalorder %s31, 3
      %p321 = por %p319, %p320
      %p322 = scmp.ne.s32.totalorder %s311, %s312
      %p323 = scmp.eq.s32.totalorder %s31, 0
      %p324 = por %p322, %p323
      %p325 = scmp.ne.s32.totalorder %s311, %s312
      %p326 = scmp.eq.s32.totalorder %s32, 3
      %p327 = por %p325, %p326
      %p329 = scmp.ne.s32.totalorder %s312, %s328
      %p330 = scmp.eq.s32.totalorder %s32, 0
      %p331 = por %p329, %p330
      %s332 = ssub.s32 %s34, %s41
      %p333 = scmp.eq.s32.totalorder %s332, 0
      %s335 = sadd.s32 %s334, 1
      %s336 = scalar_select %p333, %s334, %s335
      %p339 = pneg %p333
      %p340 = scmp.eq.s32.totalorder %s26, 3
      %p341 = por %p339, %p340
      %p342 = scmp.ne.s32.totalorder %s334, %s337
      %p343 = scmp.eq.s32.totalorder %s26, 0
      %p344 = por %p342, %p343
      %p345 = scmp.ne.s32.totalorder %s334, %s337
      %p346 = scmp.eq.s32.totalorder %s31, 3
      %p347 = por %p345, %p346
      %p348 = scmp.ne.s32.totalorder %s337, %s338
      %p349 = scmp.eq.s32.totalorder %s31, 0
      %p350 = por %p348, %p349
      %p351 = scmp.ne.s32.totalorder %s337, %s338
      %p352 = scmp.eq.s32.totalorder %s32, 3
      %p353 = por %p351, %p352
      %p355 = scmp.ne.s32.totalorder %s338, %s354
      %p356 = scmp.eq.s32.totalorder %s32, 0
      %p357 = por %p355, %p356
      %s358 = ssub.s32 %s34, %s41
      %p359 = scmp.eq.s32.totalorder %s358, 0
      %s361 = sadd.s32 %s360, 1
      %s362 = scalar_select %p359, %s360, %s361
      %p365 = pneg %p359
      %p366 = scmp.eq.s32.totalorder %s26, 3
      %p367 = por %p365, %p366
      %p368 = scmp.ne.s32.totalorder %s360, %s363
      %p369 = scmp.eq.s32.totalorder %s26, 0
      %p370 = por %p368, %p369
      %p371 = scmp.ne.s32.totalorder %s360, %s363
      %p372 = scmp.eq.s32.totalorder %s31, 3
      %p373 = por %p371, %p372
      %p374 = scmp.ne.s32.totalorder %s363, %s364
      %p375 = scmp.eq.s32.totalorder %s31, 0
      %p376 = por %p374, %p375
      %p377 = scmp.ne.s32.totalorder %s363, %s364
      %p378 = scmp.eq.s32.totalorder %s32, 3
      %p379 = por %p377, %p378
      %p381 = scmp.ne.s32.totalorder %s364, %s380
      %p382 = scmp.eq.s32.totalorder %s32, 0
      %p383 = por %p381, %p382
      %s385 = sadd.s32 %s384, 1
      %p388 = scmp.eq.s32.totalorder %s26, 3
      %p389 = scmp.ne.s32.totalorder %s384, %s386
      %p390 = scmp.eq.s32.totalorder %s26, 0
      %p391 = por %p389, %p390
      %p392 = scmp.ne.s32.totalorder %s384, %s386
      %p393 = scmp.eq.s32.totalorder %s31, 3
      %p394 = por %p392, %p393
      %p395 = scmp.ne.s32.totalorder %s386, %s387
      %p396 = scmp.eq.s32.totalorder %s31, 0
      %p397 = por %p395, %p396
      %p398 = scmp.ne.s32.totalorder %s386, %s387
      %p399 = scmp.eq.s32.totalorder %s32, 3
      %p400 = por %p398, %p399
      %p402 = scmp.ne.s32.totalorder %s387, %s401
      %p403 = scmp.eq.s32.totalorder %s32, 0
      %p404 = por %p402, %p403
      %s406 = sadd.s32 %s405, 1
      %p409 = scmp.eq.s32.totalorder %s26, 3
      %p410 = scmp.ne.s32.totalorder %s405, %s407
      %p411 = scmp.eq.s32.totalorder %s26, 0
      %p412 = por %p410, %p411
      %p413 = scmp.ne.s32.totalorder %s405, %s407
      %p414 = scmp.eq.s32.totalorder %s31, 3
      %p415 = por %p413, %p414
      %p416 = scmp.ne.s32.totalorder %s407, %s408
      %p417 = scmp.eq.s32.totalorder %s31, 0
      %p418 = por %p416, %p417
      %p419 = scmp.ne.s32.totalorder %s407, %s408
      %p420 = scmp.eq.s32.totalorder %s32, 3
      %p421 = por %p419, %p420
      %p423 = scmp.ne.s32.totalorder %s408, %s422
      %p424 = scmp.eq.s32.totalorder %s32, 0
      %p425 = por %p423, %p424
      %s427 = sadd.s32 %s426, 1
      %p430 = scmp.eq.s32.totalorder %s26, 3
      %p431 = scmp.ne.s32.totalorder %s426, %s428
      %p432 = scmp.eq.s32.totalorder %s26, 0
      %p433 = por %p431, %p432
      %p434 = scmp.ne.s32.totalorder %s426, %s428
      %p435 = scmp.eq.s32.totalorder %s31, 3
      %p436 = por %p434, %p435
      %p437 = scmp.ne.s32.totalorder %s428, %s429
      %p438 = scmp.eq.s32.totalorder %s31, 0
      %p439 = por %p437, %p438
      %p440 = scmp.ne.s32.totalorder %s428, %s429
      %p441 = scmp.eq.s32.totalorder %s32, 3
      %p442 = por %p440, %p441
      %p444 = scmp.ne.s32.totalorder %s429, %s443
      %p445 = scmp.eq.s32.totalorder %s32, 0
      %p446 = por %p444, %p445
      %s448 = sadd.s32 %s447, 1
      %p451 = scmp.eq.s32.totalorder %s26, 3
      %p452 = scmp.ne.s32.totalorder %s447, %s449
      %p453 = scmp.eq.s32.totalorder %s26, 0
      %p454 = por %p452, %p453
      %p455 = scmp.ne.s32.totalorder %s447, %s449
      %p456 = scmp.eq.s32.totalorder %s31, 3
      %p457 = por %p455, %p456
      %p458 = scmp.ne.s32.totalorder %s449, %s450
      %p459 = scmp.eq.s32.totalorder %s31, 0
      %p460 = por %p458, %p459
      %p461 = scmp.ne.s32.totalorder %s449, %s450
      %p462 = scmp.eq.s32.totalorder %s32, 3
      %p463 = por %p461, %p462
      %p465 = scmp.ne.s32.totalorder %s450, %s464
      %p466 = scmp.eq.s32.totalorder %s32, 0
      %p467 = por %p465, %p466
      %s468 = ssub.s32 %s33, %s45
      %p469 = scmp.eq.s32.totalorder %s468, 0
      %s471 = sadd.s32 %s470, 1
      %s472 = scalar_select %p469, %s470, %s471
      %p475 = pneg %p469
      %p476 = scmp.eq.s32.totalorder %s26, 3
      %p477 = por %p475, %p476
      %p478 = scmp.ne.s32.totalorder %s470, %s473
      %p479 = scmp.eq.s32.totalorder %s26, 0
      %p480 = por %p478, %p479
      %p481 = scmp.ne.s32.totalorder %s470, %s473
      %p482 = scmp.eq.s32.totalorder %s31, 3
      %p483 = por %p481, %p482
      %p484 = scmp.ne.s32.totalorder %s473, %s474
      %p485 = scmp.eq.s32.totalorder %s31, 0
      %p486 = por %p484, %p485
      %p487 = scmp.ne.s32.totalorder %s473, %s474
      %p488 = scmp.eq.s32.totalorder %s32, 3
      %p489 = por %p487, %p488
      %p491 = scmp.ne.s32.totalorder %s474, %s490
      %p492 = scmp.eq.s32.totalorder %s32, 0
      %p493 = por %p491, %p492
      %p494 = scmp.le.s32.totalorder 1, %s26
      %p495 = scmp.lt.s32.totalorder %s26, 5
      %p496 = pnand %p494, %p495
      %p497 = pneg %p496
      // Predicated region
      $region9: #{vimpac_forward.3} parent=5 // pred_check
        _
      $region10: #{vimpac_forward.3} parent=5 // pred_check_branch
        %499 = sbr.rel (%p496) target = $region12
      $region11: #{vimpac_forward.3} parent=5 // pred_region
        %s500 = ssub.s32 %s26, 1
        // Predicated region
        $region13: #{vimpac_forward.3} parent=11 // pred_check
          %p501 = pneg %p397
        $region14: #{vimpac_forward.3} parent=11 // pred_check_branch
          %503 = sbr.rel (%p501) target = $region16
        $region15: #{vimpac_forward.3} parent=11 // pred_region
          _
        $region16: #{vimpac_forward.3} parent=11 // pred_fallthru
          _
        // Predicated region
        $region17: #{vimpac_forward.3} parent=11 // pred_check
          %p504 = pneg %p418
        $region18: #{vimpac_forward.3} parent=11 // pred_check_branch
          %506 = sbr.rel (%p504) target = $region20
        $region19: #{vimpac_forward.3} parent=11 // pred_region
          _
        $region20: #{vimpac_forward.3} parent=11 // pred_fallthru
          _
        // Predicated region
        $region21: #{vimpac_forward.3} parent=11 // pred_check
          %p507 = pneg %p439
        $region22: #{vimpac_forward.3} parent=11 // pred_check_branch
          %509 = sbr.rel (%p507) target = $region24
        $region23: #{vimpac_forward.3} parent=11 // pred_region
          _
        $region24: #{vimpac_forward.3} parent=11 // pred_fallthru
          _
        // Predicated region
        $region25: #{vimpac_forward.3} parent=11 // pred_check
          %p510 = pneg %p460
        $region26: #{vimpac_forward.3} parent=11 // pred_check_branch
          %512 = sbr.rel (%p510) target = $region28
        $region27: #{vimpac_forward.3} parent=11 // pred_region
          _
        $region28: #{vimpac_forward.3} parent=11 // pred_fallthru
          _
      $region12: #{vimpac_forward.3} parent=5 // pred_fallthru
        _
      %p513 = scmp.lt.s32.totalorder %s26, 4
      // Predicated region
      $region29: #{vimpac_forward.3} parent=5 // pred_check
        %p514 = pneg %p513
      $region30: #{vimpac_forward.3} parent=5 // pred_check_branch
        %516 = sbr.rel (%p514) target = $region32
      $region31: #{vimpac_forward.3} parent=5 // pred_region
        // Predicated region
        $region33: #{vimpac_forward.3} parent=31 // pred_check
          %p517 = pneg %p58
        $region34: #{vimpac_forward.3} parent=31 // pred_check_branch
          %519 = sbr.rel (%p517) target = $region36
        $region35: #{vimpac_forward.3} parent=31 // pred_region
          %s520 = smul.u32 2, %s33
          %p521 = scmp.lt.s32.totalorder %s520, 3
          %s522 = scalar_select %p521, %s520, 3
          %s523 = smul.addr %s522, 2
          %s524 = smul.addr %s523, 8
          %s525 = scalar_lea.vmem %s0, %s524
          %s526 = smul.u32 2, %s33
        $region36: #{vimpac_forward.3} parent=31 // pred_fallthru
          _
        // Predicated region
        $region37: #{vimpac_forward.3} parent=31 // pred_check
          %p527 = pneg %p84
        $region38: #{vimpac_forward.3} parent=31 // pred_check_branch
          %529 = sbr.rel (%p527) target = $region40
        $region39: #{vimpac_forward.3} parent=31 // pred_region
          %p530 = scmp.lt.s32.totalorder %s34, 1
          %s531 = scalar_select %p530, %s34, 1
          %s532 = smul.addr %s531, 16
          %s533 = smul.addr %s532, 4
          %s534 = scalar_lea.vmem %s1, %s533
        $region40: #{vimpac_forward.3} parent=31 // pred_fallthru
          _
        // Predicated region
        $region41: #{vimpac_forward.3} parent=31 // pred_check
          %p535 = pneg %p110
        $region42: #{vimpac_forward.3} parent=31 // pred_check_branch
          %537 = sbr.rel (%p535) target = $region44
        $region43: #{vimpac_forward.3} parent=31 // pred_region
          %p538 = scmp.lt.s32.totalorder %s34, 1
          %s539 = scalar_select %p538, %s34, 1
          %s540 = smul.addr %s539, 2
          %s541 = scalar_lea.vmem %s2, %s540
        $region44: #{vimpac_forward.3} parent=31 // pred_fallthru
          _
        // Predicated region
        $region45: #{vimpac_forward.3} parent=31 // pred_check
          %p542 = pneg %p136
        $region46: #{vimpac_forward.3} parent=31 // pred_check_branch
          %544 = sbr.rel (%p542) target = $region48
        $region47: #{vimpac_forward.3} parent=31 // pred_region
          %p545 = scmp.lt.s32.totalorder %s34, 1
          %s546 = scalar_select %p545, %s34, 1
          %s547 = smul.addr %s546, 8
          %s548 = smul.addr %s547, 4
          %s549 = scalar_lea.vmem %s3, %s548
        $region48: #{vimpac_forward.3} parent=31 // pred_fallthru
          _
        // Predicated region
        $region49: #{vimpac_forward.3} parent=31 // pred_check
          %p550 = pneg %p162
        $region50: #{vimpac_forward.3} parent=31 // pred_check_branch
          %552 = sbr.rel (%p550) target = $region52
        $region51: #{vimpac_forward.3} parent=31 // pred_region
          %p553 = scmp.lt.s32.totalorder %s34, 1
          %s554 = scalar_select %p553, %s34, 1
          %s555 = scalar_lea.vmem %s4, %s554
        $region52: #{vimpac_forward.3} parent=31 // pred_fallthru
          _
        // Predicated region
        $region53: #{vimpac_forward.3} parent=31 // pred_check
          %p556 = pneg %p188
        $region54: #{vimpac_forward.3} parent=31 // pred_check_branch
          %558 = sbr.rel (%p556) target = $region56
        $region55: #{vimpac_forward.3} parent=31 // pred_region
          %p559 = scmp.lt.s32.totalorder %s34, 1
          %s560 = scalar_select %p559, %s34, 1
          %s561 = scalar_lea.vmem %s5, %s560
        $region56: #{vimpac_forward.3} parent=31 // pred_fallthru
          _
        // Predicated region
        $region57: #{vimpac_forward.3} parent=31 // pred_check
          %p562 = pneg %p214
        $region58: #{vimpac_forward.3} parent=31 // pred_check_branch
          %564 = sbr.rel (%p562) target = $region60
        $region59: #{vimpac_forward.3} parent=31 // pred_region
          %p565 = scmp.lt.s32.totalorder %s34, 1
          %s566 = scalar_select %p565, %s34, 1
          %s567 = scalar_lea.vmem %s6, %s566
        $region60: #{vimpac_forward.3} parent=31 // pred_fallthru
          _
        // Predicated region
        $region61: #{vimpac_forward.3} parent=31 // pred_check
          %p568 = pneg %p240
        $region62: #{vimpac_forward.3} parent=31 // pred_check_branch
          %570 = sbr.rel (%p568) target = $region64
        $region63: #{vimpac_forward.3} parent=31 // pred_region
          %p571 = scmp.lt.s32.totalorder %s34, 1
          %s572 = scalar_select %p571, %s34, 1
          %s573 = smul.addr %s572, 16
          %s574 = smul.addr %s573, 4
          %s575 = scalar_lea.vmem %s7, %s574
        $region64: #{vimpac_forward.3} parent=31 // pred_fallthru
          _
        // Predicated region
        $region65: #{vimpac_forward.3} parent=31 // pred_check
          %p576 = pneg %p266
        $region66: #{vimpac_forward.3} parent=31 // pred_check_branch
          %578 = sbr.rel (%p576) target = $region68
        $region67: #{vimpac_forward.3} parent=31 // pred_region
          %p579 = scmp.lt.s32.totalorder %s34, 1
          %s580 = scalar_select %p579, %s34, 1
          %s581 = smul.addr %s580, 2
          %s582 = scalar_lea.vmem %s8, %s581
        $region68: #{vimpac_forward.3} parent=31 // pred_fallthru
          _
        // Predicated region
        $region69: #{vimpac_forward.3} parent=31 // pred_check
          %p583 = pneg %p292
        $region70: #{vimpac_forward.3} parent=31 // pred_check_branch
          %585 = sbr.rel (%p583) target = $region72
        $region71: #{vimpac_forward.3} parent=31 // pred_region
          %p586 = scmp.lt.s32.totalorder %s34, 1
          %s587 = scalar_select %p586, %s34, 1
          %s588 = smul.addr %s587, 32
          %s589 = smul.addr %s588, 4
          %s590 = scalar_lea.vmem %s9, %s589
        $region72: #{vimpac_forward.3} parent=31 // pred_fallthru
          _
        // Predicated region
        $region73: #{vimpac_forward.3} parent=31 // pred_check
          %p591 = pneg %p318
        $region74: #{vimpac_forward.3} parent=31 // pred_check_branch
          %593 = sbr.rel (%p591) target = $region76
        $region75: #{vimpac_forward.3} parent=31 // pred_region
          %p594 = scmp.lt.s32.totalorder %s34, 1
          %s595 = scalar_select %p594, %s34, 1
          %s596 = scalar_lea.vmem %s10, %s595
        $region76: #{vimpac_forward.3} parent=31 // pred_fallthru
          _
        // Predicated region
        $region77: #{vimpac_forward.3} parent=31 // pred_check
          %p597 = pneg %p344
        $region78: #{vimpac_forward.3} parent=31 // pred_check_branch
          %599 = sbr.rel (%p597) target = $region80
        $region79: #{vimpac_forward.3} parent=31 // pred_region
          %p600 = scmp.lt.s32.totalorder %s34, 1
          %s601 = scalar_select %p600, %s34, 1
          %s602 = scalar_lea.vmem %s11, %s601
        $region80: #{vimpac_forward.3} parent=31 // pred_fallthru
          _
        // Predicated region
        $region81: #{vimpac_forward.3} parent=31 // pred_check
          %p603 = pneg %p370
        $region82: #{vimpac_forward.3} parent=31 // pred_check_branch
          %605 = sbr.rel (%p603) target = $region84
        $region83: #{vimpac_forward.3} parent=31 // pred_region
          %p606 = scmp.lt.s32.totalorder %s34, 1
          %s607 = scalar_select %p606, %s34, 1
          %s608 = scalar_lea.vmem %s12, %s607
        $region84: #{vimpac_forward.3} parent=31 // pred_fallthru
          _
      $region32: #{vimpac_forward.3} parent=5 // pred_fallthru
        _
      %p609 = scmp.le.s32.totalorder 1, %s26
      %p610 = scmp.lt.s32.totalorder %s26, 5
      %p611 = pnand %p609, %p610
      %p612 = pneg %p611
      // Predicated region
      $region85: #{vimpac_forward.3} parent=5 // pred_check
        _
      $region86: #{vimpac_forward.3} parent=5 // pred_check_branch
        %614 = sbr.rel (%p611) target = $region88
      $region87: #{vimpac_forward.3} parent=5 // pred_region
        %s615 = ssub.s32 %s26, 1
        %s616 = smul.u32 2, %s35
        %p617 = scmp.lt.s32.totalorder %s616, 3
        %s618 = scalar_select %p617, %s616, 3
        %s619 = smul.addr %s618, 2
        %s620 = smul.addr %s619, 8
        %s621 = scalar_lea.vmem %s0, %s620
        %p622 = pneg %p64
        %p623 = pneg %p61
        %p624 = scmp.lt.s32.totalorder %s36, 1
        %s625 = scalar_select %p624, %s36, 1
        %s626 = smul.addr %s625, 16
        %s627 = smul.addr %s626, 4
        %s628 = scalar_lea.vmem %s1, %s627
        %p629 = pneg %p90
        %p630 = pneg %p87
        %p631 = scmp.lt.s32.totalorder %s36, 1
        %s632 = scalar_select %p631, %s36, 1
        %s633 = smul.addr %s632, 2
        %s634 = scalar_lea.vmem %s2, %s633
        %p635 = pneg %p116
        %p636 = pneg %p113
        %p637 = scmp.lt.s32.totalorder %s36, 1
        %s638 = scalar_select %p637, %s36, 1
        %s639 = smul.addr %s638, 8
        %s640 = smul.addr %s639, 4
        %s641 = scalar_lea.vmem %s3, %s640
        %p642 = pneg %p142
        %p643 = pneg %p139
        %p644 = scmp.lt.s32.totalorder %s36, 1
        %s645 = scalar_select %p644, %s36, 1
        %s646 = scalar_lea.vmem %s4, %s645
        %p647 = pneg %p168
        %p648 = pneg %p165
        %p649 = scmp.lt.s32.totalorder %s36, 1
        %s650 = scalar_select %p649, %s36, 1
        %s651 = scalar_lea.vmem %s5, %s650
        %p652 = pneg %p194
        %p653 = pneg %p191
        %p654 = scmp.lt.s32.totalorder %s36, 1
        %s655 = scalar_select %p654, %s36, 1
        %s656 = scalar_lea.vmem %s6, %s655
        %p657 = pneg %p220
        %p658 = pneg %p217
        %p659 = scmp.lt.s32.totalorder %s36, 1
        %s660 = scalar_select %p659, %s36, 1
        %s661 = smul.addr %s660, 16
        %s662 = smul.addr %s661, 4
        %s663 = scalar_lea.vmem %s7, %s662
        %p664 = pneg %p246
        %p665 = pneg %p243
        %p666 = scmp.lt.s32.totalorder %s36, 1
        %s667 = scalar_select %p666, %s36, 1
        %s668 = smul.addr %s667, 2
        %s669 = scalar_lea.vmem %s8, %s668
        %p670 = pneg %p272
        %p671 = pneg %p269
        %p672 = scmp.lt.s32.totalorder %s36, 1
        %s673 = scalar_select %p672, %s36, 1
        %s674 = smul.addr %s673, 32
        %s675 = smul.addr %s674, 4
        %s676 = scalar_lea.vmem %s9, %s675
        %p677 = pneg %p298
        %p678 = pneg %p295
        %p679 = scmp.lt.s32.totalorder %s36, 1
        %s680 = scalar_select %p679, %s36, 1
        %s681 = scalar_lea.vmem %s10, %s680
        %p682 = pneg %p324
        %p683 = pneg %p321
        %p684 = scmp.lt.s32.totalorder %s36, 1
        %s685 = scalar_select %p684, %s36, 1
        %s686 = scalar_lea.vmem %s11, %s685
        %p687 = pneg %p350
        %p688 = pneg %p347
        %p689 = scmp.lt.s32.totalorder %s36, 1
        %s690 = scalar_select %p689, %s36, 1
        %s691 = scalar_lea.vmem %s12, %s690
        %p692 = pneg %p376
        %p693 = pneg %p373
        %p694 = pneg %p397
        %p695 = pneg %p394
        %p696 = pneg %p418
        %p697 = pneg %p415
        %p698 = pneg %p439
        %p699 = pneg %p436
        %p700 = pneg %p460
        %p701 = pneg %p457
        %p702 = pneg %p486
        %p703 = pneg %p483
        %s704 = sand.u32 %s473, 1
        %s705 = scalar_lea.sflag [#allocation4], %s704
        %s706 = sand.u32 %s473, 1
        %s707 = smul.addr %s706, 2
        %s708 = scalar_lea.vmem [#allocation3], %s707
        %s709 = smul.u32 2, %s35
        %p710 = scmp.lt.s32.totalorder %s709, 3
        %s711 = scalar_select %p710, %s709, 3
        %s712 = smul.addr %s711, 2
        %s713 = smul.addr %s712, 8
        %s714 = scalar_lea.vmem %s0, %s713
        %s715 = smul.u32 2, %s35
        %p716 = scmp.lt.s32.totalorder %s36, 1
        %s717 = scalar_select %p716, %s36, 1
        %s718 = smul.addr %s717, 16
        %s719 = smul.addr %s718, 4
        %s720 = scalar_lea.vmem %s1, %s719
        %p721 = scmp.lt.s32.totalorder %s36, 1
        %s722 = scalar_select %p721, %s36, 1
        %s723 = smul.addr %s722, 2
        %s724 = scalar_lea.vmem %s2, %s723
        %p725 = scmp.lt.s32.totalorder %s36, 1
        %s726 = scalar_select %p725, %s36, 1
        %s727 = smul.addr %s726, 8
        %s728 = smul.addr %s727, 4
        %s729 = scalar_lea.vmem %s3, %s728
        %p730 = scmp.lt.s32.totalorder %s36, 1
        %s731 = scalar_select %p730, %s36, 1
        %s732 = scalar_lea.vmem %s4, %s731
        %p733 = scmp.lt.s32.totalorder %s36, 1
        %s734 = scalar_select %p733, %s36, 1
        %s735 = scalar_lea.vmem %s5, %s734
        %p736 = scmp.lt.s32.totalorder %s36, 1
        %s737 = scalar_select %p736, %s36, 1
        %s738 = scalar_lea.vmem %s6, %s737
        %p739 = scmp.lt.s32.totalorder %s36, 1
        %s740 = scalar_select %p739, %s36, 1
        %s741 = smul.addr %s740, 16
        %s742 = smul.addr %s741, 4
        %s743 = scalar_lea.vmem %s7, %s742
        %p744 = scmp.lt.s32.totalorder %s36, 1
        %s745 = scalar_select %p744, %s36, 1
        %s746 = smul.addr %s745, 2
        %s747 = scalar_lea.vmem %s8, %s746
        %p748 = scmp.lt.s32.totalorder %s36, 1
        %s749 = scalar_select %p748, %s36, 1
        %s750 = smul.addr %s749, 32
        %s751 = smul.addr %s750, 4
        %s752 = scalar_lea.vmem %s9, %s751
        %p753 = scmp.lt.s32.totalorder %s36, 1
        %s754 = scalar_select %p753, %s36, 1
        %s755 = scalar_lea.vmem %s10, %s754
        %p756 = scmp.lt.s32.totalorder %s36, 1
        %s757 = scalar_select %p756, %s36, 1
        %s758 = scalar_lea.vmem %s11, %s757
        %p759 = scmp.lt.s32.totalorder %s36, 1
        %s760 = scalar_select %p759, %s36, 1
        %s761 = scalar_lea.vmem %s12, %s760
        %p763 = scmp.eq.s32.totalorder %s36, 0
        // Predicated region
        $region89: #{vimpac_forward.3} parent=87 // pred_check
          %p764 = pneg %p763
        $region90: #{vimpac_forward.3} parent=87 // pred_check_branch
          %766 = sbr.rel (%p764) target = $region92
        $region91: #{vimpac_forward.3} parent=87 // pred_region
          %v767 = vld [vmem:[%s714] sm:$0xff]
          %v768 = vld [vmem:[%s714 + $0x8] sm:$0xff]
          %v769 = vld [vmem:[%s714 + $0x10] sm:$0xff]
          %v770 = vld [vmem:[%s714 + $0x18] sm:$0xff]
          %vm771 = vcmask 523264
          %772 = vst.msk [vmem:[#allocation2] sm:$0xff] %vm771, %v767
          %773 = vst.msk [vmem:[#allocation2 + $0x8] sm:$0xff] %vm771, %v768
          %774 = vst.msk [vmem:[#allocation2 + $0x10] sm:$0xff] %vm771, %v769
          %775 = vst.msk [vmem:[#allocation2 + $0x18] sm:$0xff] %vm771, %v770
        $region92: #{vimpac_forward.3} parent=87 // pred_fallthru
          _
        %v776 = vld [vmem:[#allocation2] sm:$0xff]
        %v777 = vld [vmem:[#allocation2 + $0x8] sm:$0xff]
        %v778 = vld [vmem:[#allocation2 + $0x10] sm:$0xff]
        %v779 = vld [vmem:[#allocation2 + $0x18] sm:$0xff]
        %v780 = vpack.c.bf16 %v777, %v776
        %v781 = vpack.c.bf16 %v779, %v778
        %v782 = vld [vmem:[%s720] sm:$0xff]
        %v783 = vld [vmem:[%s720 + $0x8] sm:$0xff]
        %v784 = vld [vmem:[%s720 + $0x10] sm:$0xff]
        %v785 = vld [vmem:[%s720 + $0x18] sm:$0xff]
        %v786 = vld [vmem:[%s720 + $0x20] sm:$0xff]
        %v787 = vld [vmem:[%s720 + $0x28] sm:$0xff]
        %v788 = vld [vmem:[%s720 + $0x30] sm:$0xff]
        %v789 = vld [vmem:[%s720 + $0x38] sm:$0xff]
        %v790 = vld [vmem:[%s724] sm:$0x3]
        %v792 = vlaneseq
        %v793 = vshrl.u32 %v792, 7
        %v794 = vsub.s32 0, %v793
        %v795 = vrot.slane %v790, %v794
        %v796 = vlaneseq
        %v797 = vshrl.u32 %v796, 7
        %v798 = vsub.s32 1, %v797
        %v799 = vrot.slane %v790, %v798
        %v810 = vunpack.c.l.b16 %v782
        %v811 = vunpack.c.h.b16 %v782
        %v812 = vunpack.c.l.b16 %v783
        %v813 = vunpack.c.h.b16 %v783
        %v814 = vunpack.c.l.b16 %v784
        %v815 = vunpack.c.h.b16 %v784
        %v816 = vunpack.c.l.b16 %v785
        %v817 = vunpack.c.h.b16 %v785
        %v818 = vunpack.c.l.b16 %v786
        %v819 = vunpack.c.h.b16 %v786
        %v820 = vunpack.c.l.b16 %v787
        %v821 = vunpack.c.h.b16 %v787
        %v822 = vunpack.c.l.b16 %v788
        %v823 = vunpack.c.h.b16 %v788
        %v824 = vunpack.c.l.b16 %v789
        %v825 = vunpack.c.h.b16 %v789
        %v826 = vpack.c.b16 %v812, %v810
        %v827 = vpack.c.b16 %v813, %v811
        %v828 = vpack.c.b16 %v816, %v814
        %v829 = vpack.c.b16 %v817, %v815
        %v830 = vpack.c.b16 %v820, %v818
        %v831 = vpack.c.b16 %v821, %v819
        %v832 = vpack.c.b16 %v824, %v822
        %v833 = vpack.c.b16 %v825, %v823
        %vm842 = vcmask 523264
        %v844 = vsel %vm842, %v780, 0
        %v847 = vsel %vm842, %v781, 0
        %849 = vmatprep.subr.bf16.mxu0 %v827
        %850 = vmatpush1.bf16.msra.mxu0 %v826
        %851 = vmatprep.subr.bf16.mxu0 %v829
        %852 = vmatpush1.bf16.msra.mxu0 %v828
        %853 = vmatprep.subr.bf16.mxu0 %v831
        %854 = vmatpush1.bf16.msra.mxu0 %v830
        %855 = vmatprep.subr.bf16.mxu0 %v833
        %856 = vmatpush1.bf16.msra.mxu0 %v832
        %857 = vmatprep.subr.bf16.mxu0 0
        %858 = vmatpush1.bf16.msra.mxu0 0
        %859 = vmatprep.subr.bf16.mxu0 0
        %860 = vmatpush1.bf16.msra.mxu0 0
        %861 = vmatprep.subr.bf16.mxu0 0
        %862 = vmatpush1.bf16.msra.mxu0 0
        %863 = vmatprep.subr.bf16.mxu0 0
        %864 = vmatpush1.bf16.msra.mxu0 0
        %865 = vmatprep.subr.bf16.mxu0 0
        %866 = vmatpush1.bf16.msra.mxu0 0
        %867 = vmatprep.subr.bf16.mxu0 0
        %868 = vmatpush1.bf16.msra.mxu0 0
        %869 = vmatprep.subr.bf16.mxu0 0
        %870 = vmatpush1.bf16.msra.mxu0 0
        %871 = vmatprep.subr.bf16.mxu0 0
        %872 = vmatpush1.bf16.msra.mxu0 0
        %873 = vmatprep.subr.bf16.mxu0 0
        %874 = vmatpush1.bf16.msra.mxu0 0
        %875 = vmatprep.subr.bf16.mxu0 0
        %876 = vmatpush1.bf16.msra.mxu0 0
        %877 = vmatprep.subr.bf16.mxu0 0
        %878 = vmatpush1.bf16.msra.mxu0 0
        %879 = vmatprep.subr.bf16.mxu0 0
        %880 = vmatpush1.bf16.msra.mxu0 0
        %881 = vmatprep.mubr.bf16.mxu0 0
        %882 = vmatmul.mubr.bf16.gmra.mrb[0].mxu0 %v844
        %v883 = vpop.f32.mrb[0].mxu0
        %v884 = vadd.f32 %v795, %v883
        %v885 = vpop.f32.mrb[0].mxu0
        %v886 = vadd.f32 %v799, %v885
        %v887 = vpop.f32.mrb[0].mxu0
        %v888 = vadd.f32 %v795, %v887
        %v889 = vpop.f32.mrb[0].mxu0
        %v890 = vadd.f32 %v799, %v889
        %891 = vmatprep.mubr.bf16.mxu0 0
        %892 = vmatmul.mubr.bf16.gmra.mrb[0].mxu0 %v847
        %v893 = vpop.f32.mrb[0].mxu0
        %v894 = vadd.f32 %v795, %v893
        %v895 = vpop.f32.mrb[0].mxu0
        %v896 = vadd.f32 %v799, %v895
        %v897 = vpop.f32.mrb[0].mxu0
        %v898 = vadd.f32 %v795, %v897
        %v899 = vpop.f32.mrb[0].mxu0
        %v900 = vadd.f32 %v799, %v899
        %901 = vdwg.mxu0
        %906 = vrot.lane.b32.xlu0 %v884, 96
        %v907 = vpop.permute.xlu0 %906
        %908 = vrot.lane.b32.xlu0 %v888, 96
        %v909 = vpop.permute.xlu0 %908
        %910 = vrot.lane.b32.xlu0 %v894, 96
        %v911 = vpop.permute.xlu0 %910
        %912 = vrot.lane.b32.xlu0 %v898, 96
        %v913 = vpop.permute.xlu0 %912
        %v918 = vpack.c.bf16 %v888, %v884
        %v919 = vpack.c.bf16 %v898, %v894
        %v920 = vpack.c.bf16 %v909, %v907
        %v921 = vpack.c.bf16 %v913, %v911
        %926 = vrot.lane.b32.xlu0 %v886, 96
        %v927 = vpop.permute.xlu0 %926
        %928 = vrot.lane.b32.xlu0 %v890, 96
        %v929 = vpop.permute.xlu0 %928
        %930 = vrot.lane.b32.xlu0 %v896, 96
        %v931 = vpop.permute.xlu0 %930
        %932 = vrot.lane.b32.xlu0 %v900, 96
        %v933 = vpop.permute.xlu0 %932
        %v938 = vpack.c.bf16 %v890, %v886
        %v939 = vpack.c.bf16 %v900, %v896
        %v940 = vpack.c.bf16 %v929, %v927
        %v941 = vpack.c.bf16 %v933, %v931
        %943 = vrot.lane.b32.xlu0 %v918, 64
        %v944 = vpop.permute.xlu0 %943
        %vm945 = vcmask 261120
        %v947 = vsel %vm945, %v918, 0
        %v950 = vsel %vm945, %v944, 0
        %952 = vmatprep.subr.bf16.mxu0 0
        %953 = vmatpush1.bf16.xpose.msra.mxu0 %v950
        %954 = vmatprep.subr.bf16.mxu0 0
        %955 = vmatpush1.bf16.xpose.msra.mxu0 0
        %956 = vmatprep.subr.bf16.mxu0 0
        %957 = vmatpush1.bf16.xpose.msra.mxu0 0
        %958 = vmatprep.subr.bf16.mxu0 0
        %959 = vmatpush1.bf16.xpose.msra.mxu0 0
        %960 = vmatprep.subr.bf16.mxu0 0
        %961 = vmatpush1.bf16.xpose.msra.mxu0 0
        %962 = vmatprep.subr.bf16.mxu0 0
        %963 = vmatpush1.bf16.xpose.msra.mxu0 0
        %964 = vmatprep.subr.bf16.mxu0 0
        %965 = vmatpush1.bf16.xpose.msra.mxu0 0
        %966 = vmatprep.subr.bf16.mxu0 0
        %967 = vmatpush1.bf16.xpose.msra.mxu0 0
        %968 = vmatprep.subr.bf16.mxu0 0
        %969 = vmatpush1.bf16.xpose.msra.mxu0 0
        %970 = vmatprep.subr.bf16.mxu0 0
        %971 = vmatpush1.bf16.xpose.msra.mxu0 0
        %972 = vmatprep.subr.bf16.mxu0 0
        %973 = vmatpush1.bf16.xpose.msra.mxu0 0
        %974 = vmatprep.subr.bf16.mxu0 0
        %975 = vmatpush1.bf16.xpose.msra.mxu0 0
        %976 = vmatprep.subr.bf16.mxu0 0
        %977 = vmatpush1.bf16.xpose.msra.mxu0 0
        %978 = vmatprep.subr.bf16.mxu0 0
        %979 = vmatpush1.bf16.xpose.msra.mxu0 0
        %980 = vmatprep.subr.bf16.mxu0 0
        %981 = vmatpush1.bf16.xpose.msra.mxu0 0
        %982 = vmatprep.subr.bf16.mxu0 0
        %983 = vmatpush1.bf16.xpose.msra.mxu0 0
        %984 = vmatprep.mubr.bf16.mxu0 0
        %985 = vmatmul.mubr.bf16.gmra.mrb[0].mxu0 %v947
        %v986 = vpop.f32.mrb[0].mxu0
        %v987 = vadd.f32 0.0, %v986
        %v988 = vpop.f32.mrb[0].mxu0
        %v989 = vpop.f32.mrb[0].mxu0
        %v990 = vadd.f32 0.0, %v989
        %v991 = vpop.f32.mrb[0].mxu0
        %992 = vdwg.mxu0
        %994 = vrot.lane.b32.xlu0 %v919, 64
        %v995 = vpop.permute.xlu0 %994
        %v997 = vsel %vm945, %v919, 0
        %v1000 = vsel %vm945, %v995, 0
        %1002 = vmatprep.subr.bf16.mxu0 0
        %1003 = vmatpush1.bf16.xpose.msra.mxu0 %v1000
        %1004 = vmatprep.subr.bf16.mxu0 0
        %1005 = vmatpush1.bf16.xpose.msra.mxu0 0
        %1006 = vmatprep.subr.bf16.mxu0 0
        %1007 = vmatpush1.bf16.xpose.msra.mxu0 0
        %1008 = vmatprep.subr.bf16.mxu0 0
        %1009 = vmatpush1.bf16.xpose.msra.mxu0 0
        %1010 = vmatprep.subr.bf16.mxu0 0
        %1011 = vmatpush1.bf16.xpose.msra.mxu0 0
        %1012 = vmatprep.subr.bf16.mxu0 0
        %1013 = vmatpush1.bf16.xpose.msra.mxu0 0
        %1014 = vmatprep.subr.bf16.mxu0 0
        %1015 = vmatpush1.bf16.xpose.msra.mxu0 0
        %1016 = vmatprep.subr.bf16.mxu0 0
        %1017 = vmatpush1.bf16.xpose.msra.mxu0 0
        %1018 = vmatprep.subr.bf16.mxu0 0
        %1019 = vmatpush1.bf16.xpose.msra.mxu0 0
        %1020 = vmatprep.subr.bf16.mxu0 0
        %1021 = vmatpush1.bf16.xpose.msra.mxu0 0
        %1022 = vmatprep.subr.bf16.mxu0 0
        %1023 = vmatpush1.bf16.xpose.msra.mxu0 0
        %1024 = vmatprep.subr.bf16.mxu0 0
        %1025 = vmatpush1.bf16.xpose.msra.mxu0 0
        %1026 = vmatprep.subr.bf16.mxu0 0
        %1027 = vmatpush1.bf16.xpose.msra.mxu0 0
        %1028 = vmatprep.subr.bf16.mxu0 0
        %1029 = vmatpush1.bf16.xpose.msra.mxu0 0
        %1030 = vmatprep.subr.bf16.mxu0 0
        %1031 = vmatpush1.bf16.xpose.msra.mxu0 0
        %1032 = vmatprep.subr.bf16.mxu0 0
        %1033 = vmatpush1.bf16.xpose.msra.mxu0 0
        %1034 = vmatprep.mubr.bf16.mxu0 0
        %1035 = vmatmul.mubr.bf16.gmra.mrb[0].mxu0 %v997
        %v1036 = vpop.f32.mrb[0].mxu0
        %v1037 = vadd.f32 0.0, %v1036
        %v1038 = vpop.f32.mrb[0].mxu0
        %v1039 = vpop.f32.mrb[0].mxu0
        %v1040 = vadd.f32 0.0, %v1039
        %v1041 = vpop.f32.mrb[0].mxu0
        %1042 = vdwg.mxu0
        %1044 = vrot.lane.b32.xlu0 %v920, 64
        %v1045 = vpop.permute.xlu0 %1044
        %v1047 = vsel %vm945, %v920, 0
        %v1050 = vsel %vm945, %v1045, 0
        %1052 = vmatprep.subr.bf16.mxu0 0
        %1053 = vmatpush1.bf16.xpose.msra.mxu0 %v1050
        %1054 = vmatprep.subr.bf16.mxu0 0
        %1055 = vmatpush1.bf16.xpose.msra.mxu0 0
        %1056 = vmatprep.subr.bf16.mxu0 0
        %1057 = vmatpush1.bf16.xpose.msra.mxu0 0
        %1058 = vmatprep.subr.bf16.mxu0 0
        %1059 = vmatpush1.bf16.xpose.msra.mxu0 0
        %1060 = vmatprep.subr.bf16.mxu0 0
        %1061 = vmatpush1.bf16.xpose.msra.mxu0 0
        %1062 = vmatprep.subr.bf16.mxu0 0
        %1063 = vmatpush1.bf16.xpose.msra.mxu0 0
        %1064 = vmatprep.subr.bf16.mxu0 0
        %1065 = vmatpush1.bf16.xpose.msra.mxu0 0
        %1066 = vmatprep.subr.bf16.mxu0 0
        %1067 = vmatpush1.bf16.xpose.msra.mxu0 0
        %1068 = vmatprep.subr.bf16.mxu0 0
        %1069 = vmatpush1.bf16.xpose.msra.mxu0 0
        %1070 = vmatprep.subr.bf16.mxu0 0
        %1071 = vmatpush1.bf16.xpose.msra.mxu0 0
        %1072 = vmatprep.subr.bf16.mxu0 0
        %1073 = vmatpush1.bf16.xpose.msra.mxu0 0
        %1074 = vmatprep.subr.bf16.mxu0 0
        %1075 = vmatpush1.bf16.xpose.msra.mxu0 0
        %1076 = vmatprep.subr.bf16.mxu0 0
        %1077 = vmatpush1.bf16.xpose.msra.mxu0 0
        %1078 = vmatprep.subr.bf16.mxu0 0
        %1079 = vmatpush1.bf16.xpose.msra.mxu0 0
        %1080 = vmatprep.subr.bf16.mxu0 0
        %1081 = vmatpush1.bf16.xpose.msra.mxu0 0
        %1082 = vmatprep.subr.bf16.mxu0 0
        %1083 = vmatpush1.bf16.xpose.msra.mxu0 0
        %1084 = vmatprep.mubr.bf16.mxu0 0
        %1085 = vmatmul.mubr.bf16.gmra.mrb[0].mxu0 %v1047
        %v1086 = vpop.f32.mrb[0].mxu0
        %v1087 = vadd.f32 0.0, %v1086
        %v1088 = vpop.f32.mrb[0].mxu0
        %v1089 = vpop.f32.mrb[0].mxu0
        %v1090 = vadd.f32 0.0, %v1089
        %v1091 = vpop.f32.mrb[0].mxu0
        %1092 = vdwg.mxu0
        %1094 = vrot.lane.b32.xlu0 %v921, 64
        %v1095 = vpop.permute.xlu0 %1094
        %v1097 = vsel %vm945, %v921, 0
        %v1100 = vsel %vm945, %v1095, 0
        %1102 = vmatprep.subr.bf16.mxu0 0
        %1103 = vmatpush1.bf16.xpose.msra.mxu0 %v1100
        %1104 = vmatprep.subr.bf16.mxu0 0
        %1105 = vmatpush1.bf16.xpose.msra.mxu0 0
        %1106 = vmatprep.subr.bf16.mxu0 0
        %1107 = vmatpush1.bf16.xpose.msra.mxu0 0
        %1108 = vmatprep.subr.bf16.mxu0 0
        %1109 = vmatpush1.bf16.xpose.msra.mxu0 0
        %1110 = vmatprep.subr.bf16.mxu0 0
        %1111 = vmatpush1.bf16.xpose.msra.mxu0 0
        %1112 = vmatprep.subr.bf16.mxu0 0
        %1113 = vmatpush1.bf16.xpose.msra.mxu0 0
        %1114 = vmatprep.subr.bf16.mxu0 0
        %1115 = vmatpush1.bf16.xpose.msra.mxu0 0
        %1116 = vmatprep.subr.bf16.mxu0 0
        %1117 = vmatpush1.bf16.xpose.msra.mxu0 0
        %1118 = vmatprep.subr.bf16.mxu0 0
        %1119 = vmatpush1.bf16.xpose.msra.mxu0 0
        %1120 = vmatprep.subr.bf16.mxu0 0
        %1121 = vmatpush1.bf16.xpose.msra.mxu0 0
        %1122 = vmatprep.subr.bf16.mxu0 0
        %1123 = vmatpush1.bf16.xpose.msra.mxu0 0
        %1124 = vmatprep.subr.bf16.mxu0 0
        %1125 = vmatpush1.bf16.xpose.msra.mxu0 0
        %1126 = vmatprep.subr.bf16.mxu0 0
        %1127 = vmatpush1.bf16.xpose.msra.mxu0 0
        %1128 = vmatprep.subr.bf16.mxu0 0
        %1129 = vmatpush1.bf16.xpose.msra.mxu0 0
        %1130 = vmatprep.subr.bf16.mxu0 0
        %1131 = vmatpush1.bf16.xpose.msra.mxu0 0
        %1132 = vmatprep.subr.bf16.mxu0 0
        %1133 = vmatpush1.bf16.xpose.msra.mxu0 0
        %1134 = vmatprep.mubr.bf16.mxu0 0
        %1135 = vmatmul.mubr.bf16.gmra.mrb[0].mxu0 %v1097
        %v1136 = vpop.f32.mrb[0].mxu0
        %v1137 = vadd.f32 0.0, %v1136
        %v1138 = vpop.f32.mrb[0].mxu0
        %v1139 = vpop.f32.mrb[0].mxu0
        %v1140 = vadd.f32 0.0, %v1139
        %v1141 = vpop.f32.mrb[0].mxu0
        %1142 = vdwg.mxu0
        %v1143 = vmul.f32 %v987, 0.17677669
        %v1144 = vmul.f32 %v990, 0.17677669
        %v1145 = vmul.f32 %v1037, 0.17677669
        %v1146 = vmul.f32 %v1040, 0.17677669
        %v1147 = vmul.f32 %v1087, 0.17677669
        %v1148 = vmul.f32 %v1090, 0.17677669
        %v1149 = vmul.f32 %v1137, 0.17677669
        %v1150 = vmul.f32 %v1140, 0.17677669
        %v1151 = vlaneseq
        %v1152 = vand.u32 %v1151, 127
        %vm1153 = vcmp.lt.s32.totalorder %v1152, 9
        %v1154 = vsel %vm1153, 1, 0
        %vm1155 = vcmp.eq.s32.totalorder %v1154, 1
        %v1156 = vsel %vm1155, %v1143, -1e+30
        %v1157 = vsel %vm1155, %v1144, -1e+30
        %v1158 = vsel %vm1155, %v1145, -1e+30
        %v1159 = vsel %vm1155, %v1146, -1e+30
        %v1160 = vsel %vm1155, %v1147, -1e+30
        %v1161 = vsel %vm1155, %v1148, -1e+30
        %v1162 = vsel %vm1155, %v1149, -1e+30
        %v1163 = vsel %vm1155, %v1150, -1e+30
        %vm1164 = vcmask 130048
        %v1165 = vsel %vm1164, %v1156, -inf
        %1166 = vmax.xlane.f32.xlu0 %v1165
        %v1167 = vpop.xlane.xlu0 %1166
        %v1168 = vsel %vm1164, %v1157, -inf
        %1169 = vmax.xlane.f32.xlu0 %v1168
        %v1170 = vpop.xlane.xlu0 %1169
        %v1171 = vsel %vm1164, %v1158, -inf
        %1172 = vmax.xlane.f32.xlu0 %v1171
        %v1173 = vpop.xlane.xlu0 %1172
        %v1174 = vsel %vm1164, %v1159, -inf
        %1175 = vmax.xlane.f32.xlu0 %v1174
        %v1176 = vpop.xlane.xlu0 %1175
        %v1177 = vsel %vm1164, %v1160, -inf
        %1178 = vmax.xlane.f32.xlu0 %v1177
        %v1179 = vpop.xlane.xlu0 %1178
        %v1180 = vsel %vm1164, %v1161, -inf
        %1181 = vmax.xlane.f32.xlu0 %v1180
        %v1182 = vpop.xlane.xlu0 %1181
        %v1183 = vsel %vm1164, %v1162, -inf
        %1184 = vmax.xlane.f32.xlu0 %v1183
        %v1185 = vpop.xlane.xlu0 %1184
        %v1186 = vsel %vm1164, %v1163, -inf
        %1187 = vmax.xlane.f32.xlu0 %v1186
        %v1188 = vpop.xlane.xlu0 %1187
        %v1189 = vsub.f32 %v1156, %v1167
        %v1190 = vsub.f32 %v1157, %v1170
        %v1191 = vsub.f32 %v1158, %v1173
        %v1192 = vsub.f32 %v1159, %v1176
        %v1193 = vsub.f32 %v1160, %v1179
        %v1194 = vsub.f32 %v1161, %v1182
        %v1195 = vsub.f32 %v1162, %v1185
        %v1196 = vsub.f32 %v1163, %v1188
        %v1197 = vmul.f32 %v1189, 1.442695
        %v1198 = vpow.pop %v1197
        %v1199 = vmul.f32 %v1190, 1.442695
        %v1200 = vpow.pop %v1199
        %v1201 = vmul.f32 %v1191, 1.442695
        %v1202 = vpow.pop %v1201
        %v1203 = vmul.f32 %v1192, 1.442695
        %v1204 = vpow.pop %v1203
        %v1205 = vmul.f32 %v1193, 1.442695
        %v1206 = vpow.pop %v1205
        %v1207 = vmul.f32 %v1194, 1.442695
        %v1208 = vpow.pop %v1207
        %v1209 = vmul.f32 %v1195, 1.442695
        %v1210 = vpow.pop %v1209
        %v1211 = vmul.f32 %v1196, 1.442695
        %v1212 = vpow.pop %v1211
        %v1213 = vsel %vm1164, %v1198, 0.0
        %1214 = vadd.xlane.f32.xlu0 %v1213
        %v1215 = vpop.xlane.xlu0 %1214
        %v1216 = vsel %vm1164, %v1200, 0.0
        %1217 = vadd.xlane.f32.xlu0 %v1216
        %v1218 = vpop.xlane.xlu0 %1217
        %v1219 = vsel %vm1164, %v1202, 0.0
        %1220 = vadd.xlane.f32.xlu0 %v1219
        %v1221 = vpop.xlane.xlu0 %1220
        %v1222 = vsel %vm1164, %v1204, 0.0
        %1223 = vadd.xlane.f32.xlu0 %v1222
        %v1224 = vpop.xlane.xlu0 %1223
        %v1225 = vsel %vm1164, %v1206, 0.0
        %1226 = vadd.xlane.f32.xlu0 %v1225
        %v1227 = vpop.xlane.xlu0 %1226
        %v1228 = vsel %vm1164, %v1208, 0.0
        %1229 = vadd.xlane.f32.xlu0 %v1228
        %v1230 = vpop.xlane.xlu0 %1229
        %v1231 = vsel %vm1164, %v1210, 0.0
        %1232 = vadd.xlane.f32.xlu0 %v1231
        %v1233 = vpop.xlane.xlu0 %1232
        %v1234 = vsel %vm1164, %v1212, 0.0
        %1235 = vadd.xlane.f32.xlu0 %v1234
        %v1236 = vpop.xlane.xlu0 %1235
        %v1237 = vrcp.pop %v1215
        %v1238 = vrcp.pop %v1218
        %v1239 = vrcp.pop %v1221
        %v1240 = vrcp.pop %v1224
        %v1241 = vrcp.pop %v1227
        %v1242 = vrcp.pop %v1230
        %v1243 = vrcp.pop %v1233
        %v1244 = vrcp.pop %v1236
        %v1245 = vmul.f32 %v1198, %v1237
        %v1246 = vmul.f32 %v1200, %v1238
        %v1247 = vmul.f32 %v1202, %v1239
        %v1248 = vmul.f32 %v1204, %v1240
        %v1249 = vmul.f32 %v1206, %v1241
        %v1250 = vmul.f32 %v1208, %v1242
        %v1251 = vmul.f32 %v1210, %v1243
        %v1252 = vmul.f32 %v1212, %v1244
        %v1253 = vpack.c.bf16 %v1246, %v1245
        %v1254 = vpack.c.bf16 %v1248, %v1247
        %v1255 = vpack.c.bf16 %v1250, %v1249
        %v1256 = vpack.c.bf16 %v1252, %v1251
        %v1258 = vsel %vm1164, %v1253, 0
        %1260 = vmatprep.subr.bf16.mxu0 0
        %1261 = vmatpush1.bf16.msra.mxu0 %v938
        %1262 = vmatprep.subr.bf16.mxu0 0
        %1263 = vmatpush1.bf16.msra.mxu0 0
        %1264 = vmatprep.subr.bf16.mxu0 0
        %1265 = vmatpush1.bf16.msra.mxu0 0
        %1266 = vmatprep.subr.bf16.mxu0 0
        %1267 = vmatpush1.bf16.msra.mxu0 0
        %1268 = vmatprep.subr.bf16.mxu0 0
        %1269 = vmatpush1.bf16.msra.mxu0 0
        %1270 = vmatprep.subr.bf16.mxu0 0
        %1271 = vmatpush1.bf16.msra.mxu0 0
        %1272 = vmatprep.subr.bf16.mxu0 0
        %1273 = vmatpush1.bf16.msra.mxu0 0
        %1274 = vmatprep.subr.bf16.mxu0 0
        %1275 = vmatpush1.bf16.msra.mxu0 0
        %1276 = vmatprep.subr.bf16.mxu0 0
        %1277 = vmatpush1.bf16.msra.mxu0 0
        %1278 = vmatprep.subr.bf16.mxu0 0
        %1279 = vmatpush1.bf16.msra.mxu0 0
        %1280 = vmatprep.subr.bf16.mxu0 0
        %1281 = vmatpush1.bf16.msra.mxu0 0
        %1282 = vmatprep.subr.bf16.mxu0 0
        %1283 = vmatpush1.bf16.msra.mxu0 0
        %1284 = vmatprep.subr.bf16.mxu0 0
        %1285 = vmatpush1.bf16.msra.mxu0 0
        %1286 = vmatprep.subr.bf16.mxu0 0
        %1287 = vmatpush1.bf16.msra.mxu0 0
        %1288 = vmatprep.subr.bf16.mxu0 0
        %1289 = vmatpush1.bf16.msra.mxu0 0
        %1290 = vmatprep.subr.bf16.mxu0 0
        %1291 = vmatpush1.bf16.msra.mxu0 0
        %1292 = vmatprep.mubr.bf16.mxu0 0
        %1293 = vmatmul.mubr.bf16.gmra.mrb[0].mxu0 %v1258
        %v1294 = vpop.f32.mrb[0].mxu0
        %v1295 = vadd.f32 0.0, %v1294
        %v1296 = vpop.f32.mrb[0].mxu0
        %v1297 = vpop.f32.mrb[0].mxu0
        %v1298 = vadd.f32 0.0, %v1297
        %v1299 = vpop.f32.mrb[0].mxu0
        %1300 = vdwg.mxu0
        %v1302 = vsel %vm1164, %v1254, 0
        %1304 = vmatprep.subr.bf16.mxu0 0
        %1305 = vmatpush1.bf16.msra.mxu0 %v939
        %1306 = vmatprep.subr.bf16.mxu0 0
        %1307 = vmatpush1.bf16.msra.mxu0 0
        %1308 = vmatprep.subr.bf16.mxu0 0
        %1309 = vmatpush1.bf16.msra.mxu0 0
        %1310 = vmatprep.subr.bf16.mxu0 0
        %1311 = vmatpush1.bf16.msra.mxu0 0
        %1312 = vmatprep.subr.bf16.mxu0 0
        %1313 = vmatpush1.bf16.msra.mxu0 0
        %1314 = vmatprep.subr.bf16.mxu0 0
        %1315 = vmatpush1.bf16.msra.mxu0 0
        %1316 = vmatprep.subr.bf16.mxu0 0
        %1317 = vmatpush1.bf16.msra.mxu0 0
        %1318 = vmatprep.subr.bf16.mxu0 0
        %1319 = vmatpush1.bf16.msra.mxu0 0
        %1320 = vmatprep.subr.bf16.mxu0 0
        %1321 = vmatpush1.bf16.msra.mxu0 0
        %1322 = vmatprep.subr.bf16.mxu0 0
        %1323 = vmatpush1.bf16.msra.mxu0 0
        %1324 = vmatprep.subr.bf16.mxu0 0
        %1325 = vmatpush1.bf16.msra.mxu0 0
        %1326 = vmatprep.subr.bf16.mxu0 0
        %1327 = vmatpush1.bf16.msra.mxu0 0
        %1328 = vmatprep.subr.bf16.mxu0 0
        %1329 = vmatpush1.bf16.msra.mxu0 0
        %1330 = vmatprep.subr.bf16.mxu0 0
        %1331 = vmatpush1.bf16.msra.mxu0 0
        %1332 = vmatprep.subr.bf16.mxu0 0
        %1333 = vmatpush1.bf16.msra.mxu0 0
        %1334 = vmatprep.subr.bf16.mxu0 0
        %1335 = vmatpush1.bf16.msra.mxu0 0
        %1336 = vmatprep.mubr.bf16.mxu0 0
        %1337 = vmatmul.mubr.bf16.gmra.mrb[0].mxu0 %v1302
        %v1338 = vpop.f32.mrb[0].mxu0
        %v1339 = vadd.f32 0.0, %v1338
        %v1340 = vpop.f32.mrb[0].mxu0
        %v1341 = vpop.f32.mrb[0].mxu0
        %v1342 = vadd.f32 0.0, %v1341
        %v1343 = vpop.f32.mrb[0].mxu0
        %1344 = vdwg.mxu0
        %v1346 = vsel %vm1164, %v1255, 0
        %1348 = vmatprep.subr.bf16.mxu0 0
        %1349 = vmatpush1.bf16.msra.mxu0 %v940
        %1350 = vmatprep.subr.bf16.mxu0 0
        %1351 = vmatpush1.bf16.msra.mxu0 0
        %1352 = vmatprep.subr.bf16.mxu0 0
        %1353 = vmatpush1.bf16.msra.mxu0 0
        %1354 = vmatprep.subr.bf16.mxu0 0
        %1355 = vmatpush1.bf16.msra.mxu0 0
        %1356 = vmatprep.subr.bf16.mxu0 0
        %1357 = vmatpush1.bf16.msra.mxu0 0
        %1358 = vmatprep.subr.bf16.mxu0 0
        %1359 = vmatpush1.bf16.msra.mxu0 0
        %1360 = vmatprep.subr.bf16.mxu0 0
        %1361 = vmatpush1.bf16.msra.mxu0 0
        %1362 = vmatprep.subr.bf16.mxu0 0
        %1363 = vmatpush1.bf16.msra.mxu0 0
        %1364 = vmatprep.subr.bf16.mxu0 0
        %1365 = vmatpush1.bf16.msra.mxu0 0
        %1366 = vmatprep.subr.bf16.mxu0 0
        %1367 = vmatpush1.bf16.msra.mxu0 0
        %1368 = vmatprep.subr.bf16.mxu0 0
        %1369 = vmatpush1.bf16.msra.mxu0 0
        %1370 = vmatprep.subr.bf16.mxu0 0
        %1371 = vmatpush1.bf16.msra.mxu0 0
        %1372 = vmatprep.subr.bf16.mxu0 0
        %1373 = vmatpush1.bf16.msra.mxu0 0
        %1374 = vmatprep.subr.bf16.mxu0 0
        %1375 = vmatpush1.bf16.msra.mxu0 0
        %1376 = vmatprep.subr.bf16.mxu0 0
        %1377 = vmatpush1.bf16.msra.mxu0 0
        %1378 = vmatprep.subr.bf16.mxu0 0
        %1379 = vmatpush1.bf16.msra.mxu0 0
        %1380 = vmatprep.mubr.bf16.mxu0 0
        %1381 = vmatmul.mubr.bf16.gmra.mrb[0].mxu0 %v1346
        %v1382 = vpop.f32.mrb[0].mxu0
        %v1383 = vadd.f32 0.0, %v1382
        %v1384 = vpop.f32.mrb[0].mxu0
        %v1385 = vpop.f32.mrb[0].mxu0
        %v1386 = vadd.f32 0.0, %v1385
        %v1387 = vpop.f32.mrb[0].mxu0
        %1388 = vdwg.mxu0
        %v1390 = vsel %vm1164, %v1256, 0
        %1392 = vmatprep.subr.bf16.mxu0 0
        %1393 = vmatpush1.bf16.msra.mxu0 %v941
        %1394 = vmatprep.subr.bf16.mxu0 0
        %1395 = vmatpush1.bf16.msra.mxu0 0
        %1396 = vmatprep.subr.bf16.mxu0 0
        %1397 = vmatpush1.bf16.msra.mxu0 0
        %1398 = vmatprep.subr.bf16.mxu0 0
        %1399 = vmatpush1.bf16.msra.mxu0 0
        %1400 = vmatprep.subr.bf16.mxu0 0
        %1401 = vmatpush1.bf16.msra.mxu0 0
        %1402 = vmatprep.subr.bf16.mxu0 0
        %1403 = vmatpush1.bf16.msra.mxu0 0
        %1404 = vmatprep.subr.bf16.mxu0 0
        %1405 = vmatpush1.bf16.msra.mxu0 0
        %1406 = vmatprep.subr.bf16.mxu0 0
        %1407 = vmatpush1.bf16.msra.mxu0 0
        %1408 = vmatprep.subr.bf16.mxu0 0
        %1409 = vmatpush1.bf16.msra.mxu0 0
        %1410 = vmatprep.subr.bf16.mxu0 0
        %1411 = vmatpush1.bf16.msra.mxu0 0
        %1412 = vmatprep.subr.bf16.mxu0 0
        %1413 = vmatpush1.bf16.msra.mxu0 0
        %1414 = vmatprep.subr.bf16.mxu0 0
        %1415 = vmatpush1.bf16.msra.mxu0 0
        %1416 = vmatprep.subr.bf16.mxu0 0
        %1417 = vmatpush1.bf16.msra.mxu0 0
        %1418 = vmatprep.subr.bf16.mxu0 0
        %1419 = vmatpush1.bf16.msra.mxu0 0
        %1420 = vmatprep.subr.bf16.mxu0 0
        %1421 = vmatpush1.bf16.msra.mxu0 0
        %1422 = vmatprep.subr.bf16.mxu0 0
        %1423 = vmatpush1.bf16.msra.mxu0 0
        %1424 = vmatprep.mubr.bf16.mxu0 0
        %1425 = vmatmul.mubr.bf16.gmra.mrb[0].mxu0 %v1390
        %v1426 = vpop.f32.mrb[0].mxu0
        %v1427 = vadd.f32 0.0, %v1426
        %v1428 = vpop.f32.mrb[0].mxu0
        %v1429 = vpop.f32.mrb[0].mxu0
        %v1430 = vadd.f32 0.0, %v1429
        %v1431 = vpop.f32.mrb[0].mxu0
        %1432 = vdwg.mxu0
        %1437 = vrot.lane.b32.xlu0 %v1383, 32
        %v1438 = vpop.permute.xlu0 %1437
        %1439 = vrot.lane.b32.xlu0 %v1386, 32
        %v1440 = vpop.permute.xlu0 %1439
        %1441 = vrot.lane.b32.xlu0 %v1427, 32
        %v1442 = vpop.permute.xlu0 %1441
        %1443 = vrot.lane.b32.xlu0 %v1430, 32
        %v1444 = vpop.permute.xlu0 %1443
        %v1449 = vsel %vm945, %v1295, %v1438
        %v1450 = vsel %vm945, %v1298, %v1440
        %v1451 = vsel %vm945, %v1339, %v1442
        %v1452 = vsel %vm945, %v1342, %v1444
        %v1453 = vpack.c.bf16 %v1450, %v1449
        %v1454 = vpack.c.bf16 %v1452, %v1451
        %v1455 = vld [vmem:[%s729] sm:$0xf]
        %v1456 = vld [vmem:[%s729 + $0x4] sm:$0xf]
        %v1457 = vld [vmem:[%s729 + $0x8] sm:$0xf]
        %v1458 = vld [vmem:[%s729 + $0xc] sm:$0xf]
        %v1459 = vld [vmem:[%s729 + $0x10] sm:$0xf]
        %v1460 = vld [vmem:[%s729 + $0x14] sm:$0xf]
        %v1461 = vld [vmem:[%s729 + $0x18] sm:$0xf]
        %v1462 = vld [vmem:[%s729 + $0x1c] sm:$0xf]
        %v1463 = vld [vmem:[%s732] sm:$0x1]
        %v1465 = vlaneseq
        %v1466 = vshrl.u32 %v1465, 7
        %v1467 = vsub.s32 0, %v1466
        %v1468 = vrot.slane %v1463, %v1467
        %v1478 = vunpack.c.l.b16 %v1455
        %v1479 = vunpack.c.l.b16 %v1456
        %v1480 = vunpack.c.l.b16 %v1457
        %v1481 = vunpack.c.l.b16 %v1458
        %v1482 = vunpack.c.l.b16 %v1459
        %v1483 = vunpack.c.l.b16 %v1460
        %v1484 = vunpack.c.l.b16 %v1461
        %v1485 = vunpack.c.l.b16 %v1462
        %v1486 = vpack.c.b16 %v1479, %v1478
        %v1487 = vpack.c.b16 %v1481, %v1480
        %v1488 = vpack.c.b16 %v1483, %v1482
        %v1489 = vpack.c.b16 %v1485, %v1484
        %v1495 = vsel %vm842, %v1453, 0
        %v1498 = vsel %vm842, %v1454, 0
        %1500 = vmatprep.subr.bf16.mxu0 0
        %1501 = vmatpush1.bf16.msra.mxu0 %v1486
        %1502 = vmatprep.subr.bf16.mxu0 0
        %1503 = vmatpush1.bf16.msra.mxu0 %v1487
        %1504 = vmatprep.subr.bf16.mxu0 0
        %1505 = vmatpush1.bf16.msra.mxu0 %v1488
        %1506 = vmatprep.subr.bf16.mxu0 0
        %1507 = vmatpush1.bf16.msra.mxu0 %v1489
        %1508 = vmatprep.subr.bf16.mxu0 0
        %1509 = vmatpush1.bf16.msra.mxu0 0
        %1510 = vmatprep.subr.bf16.mxu0 0
        %1511 = vmatpush1.bf16.msra.mxu0 0
        %1512 = vmatprep.subr.bf16.mxu0 0
        %1513 = vmatpush1.bf16.msra.mxu0 0
        %1514 = vmatprep.subr.bf16.mxu0 0
        %1515 = vmatpush1.bf16.msra.mxu0 0
        %1516 = vmatprep.subr.bf16.mxu0 0
        %1517 = vmatpush1.bf16.msra.mxu0 0
        %1518 = vmatprep.subr.bf16.mxu0 0
        %1519 = vmatpush1.bf16.msra.mxu0 0
        %1520 = vmatprep.subr.bf16.mxu0 0
        %1521 = vmatpush1.bf16.msra.mxu0 0
        %1522 = vmatprep.subr.bf16.mxu0 0
        %1523 = vmatpush1.bf16.msra.mxu0 0
        %1524 = vmatprep.subr.bf16.mxu0 0
        %1525 = vmatpush1.bf16.msra.mxu0 0
        %1526 = vmatprep.subr.bf16.mxu0 0
        %1527 = vmatpush1.bf16.msra.mxu0 0
        %1528 = vmatprep.subr.bf16.mxu0 0
        %1529 = vmatpush1.bf16.msra.mxu0 0
        %1530 = vmatprep.subr.bf16.mxu0 0
        %1531 = vmatpush1.bf16.msra.mxu0 0
        %1532 = vmatprep.mubr.bf16.mxu0 0
        %1533 = vmatmul.mubr.bf16.gmra.mrb[0].mxu0 %v1495
        %v1534 = vpop.f32.mrb[0].mxu0
        %v1535 = vadd.f32 %v1468, %v1534
        %v1536 = vpop.f32.mrb[0].mxu0
        %v1537 = vpop.f32.mrb[0].mxu0
        %v1538 = vadd.f32 %v1468, %v1537
        %v1539 = vpop.f32.mrb[0].mxu0
        %1540 = vmatprep.mubr.bf16.mxu0 0
        %1541 = vmatmul.mubr.bf16.gmra.mrb[0].mxu0 %v1498
        %v1542 = vpop.f32.mrb[0].mxu0
        %v1543 = vadd.f32 %v1468, %v1542
        %v1544 = vpop.f32.mrb[0].mxu0
        %v1545 = vpop.f32.mrb[0].mxu0
        %v1546 = vadd.f32 %v1468, %v1545
        %v1547 = vpop.f32.mrb[0].mxu0
        %1548 = vdwg.mxu0
        %v1549 = vadd.f32 %v776, %v1535
        %v1550 = vadd.f32 %v777, %v1538
        %v1551 = vadd.f32 %v778, %v1543
        %v1552 = vadd.f32 %v779, %v1546
        %v1553 = vld [vmem:[%s735] sm:$0x1]
        %v1554 = vld [vmem:[%s738] sm:$0x1]
        %v1555 = vsel %vm842, %v1549, 0.0
        %1556 = vadd.xlane.f32.xlu0 %v1555
        %v1557 = vpop.xlane.xlu0 %1556
        %v1558 = vsel %vm842, %v1550, 0.0
        %1559 = vadd.xlane.f32.xlu0 %v1558
        %v1560 = vpop.xlane.xlu0 %1559
        %v1561 = vsel %vm842, %v1551, 0.0
        %1562 = vadd.xlane.f32.xlu0 %v1561
        %v1563 = vpop.xlane.xlu0 %1562
        %v1564 = vsel %vm842, %v1552, 0.0
        %1565 = vadd.xlane.f32.xlu0 %v1564
        %v1566 = vpop.xlane.xlu0 %1565
        %v1567 = vrcp.pop 64.0
        %v1568 = vmul.f32 %v1557, %v1567
        %v1569 = vmul.f32 %v1560, %v1567
        %v1570 = vmul.f32 %v1563, %v1567
        %v1571 = vmul.f32 %v1566, %v1567
        %v1572 = vsub.f32 %v1549, %v1568
        %v1573 = vsub.f32 %v1550, %v1569
        %v1574 = vsub.f32 %v1551, %v1570
        %v1575 = vsub.f32 %v1552, %v1571
        %v1576 = vmul.f32 %v1572, %v1572
        %v1577 = vmul.f32 %v1573, %v1573
        %v1578 = vmul.f32 %v1574, %v1574
        %v1579 = vmul.f32 %v1575, %v1575
        %v1580 = vsel %vm842, %v1576, 0.0
        %1581 = vadd.xlane.f32.xlu0 %v1580
        %v1582 = vpop.xlane.xlu0 %1581
        %v1583 = vsel %vm842, %v1577, 0.0
        %1584 = vadd.xlane.f32.xlu0 %v1583
        %v1585 = vpop.xlane.xlu0 %1584
        %v1586 = vsel %vm842, %v1578, 0.0
        %1587 = vadd.xlane.f32.xlu0 %v1586
        %v1588 = vpop.xlane.xlu0 %1587
        %v1589 = vsel %vm842, %v1579, 0.0
        %1590 = vadd.xlane.f32.xlu0 %v1589
        %v1591 = vpop.xlane.xlu0 %1590
        %v1592 = vmul.f32 %v1582, %v1567
        %v1593 = vmul.f32 %v1585, %v1567
        %v1594 = vmul.f32 %v1588, %v1567
        %v1595 = vmul.f32 %v1591, %v1567
        %v1596 = vadd.f32 %v1592, 1e-05
        %v1597 = vadd.f32 %v1593, 1e-05
        %v1598 = vadd.f32 %v1594, 1e-05
        %v1599 = vadd.f32 %v1595, 1e-05
        %v1600 = vrsqrt.pop %v1596
        %v1601 = vrsqrt.pop %v1597
        %v1602 = vrsqrt.pop %v1598
        %v1603 = vrsqrt.pop %v1599
        %v1604 = vmul.f32 %v1572, %v1600
        %v1605 = vmul.f32 %v1573, %v1601
        %v1606 = vmul.f32 %v1574, %v1602
        %v1607 = vmul.f32 %v1575, %v1603
        %v1609 = vlaneseq
        %v1610 = vshrl.u32 %v1609, 7
        %v1611 = vsub.s32 0, %v1610
        %v1612 = vrot.slane %v1553, %v1611
        %v1614 = vmul.f32 %v1604, %v1612
        %v1615 = vmul.f32 %v1605, %v1612
        %v1616 = vmul.f32 %v1606, %v1612
        %v1617 = vmul.f32 %v1607, %v1612
        %v1619 = vlaneseq
        %v1620 = vshrl.u32 %v1619, 7
        %v1621 = vsub.s32 0, %v1620
        %v1622 = vrot.slane %v1554, %v1621
        %v1624 = vadd.f32 %v1614, %v1622
        %v1625 = vadd.f32 %v1615, %v1622
        %v1626 = vadd.f32 %v1616, %v1622
        %v1627 = vadd.f32 %v1617, %v1622
        %v1628 = vpack.c.bf16 %v1625, %v1624
        %v1629 = vpack.c.bf16 %v1627, %v1626
        %v1630 = vld [vmem:[%s743] sm:$0xff]
        %v1631 = vld [vmem:[%s743 + $0x8] sm:$0xff]
        %v1632 = vld [vmem:[%s743 + $0x10] sm:$0xff]
        %v1633 = vld [vmem:[%s743 + $0x18] sm:$0xff]
        %v1634 = vld [vmem:[%s743 + $0x20] sm:$0xff]
        %v1635 = vld [vmem:[%s743 + $0x28] sm:$0xff]
        %v1636 = vld [vmem:[%s743 + $0x30] sm:$0xff]
        %v1637 = vld [vmem:[%s743 + $0x38] sm:$0xff]
        %v1638 = vld [vmem:[%s747] sm:$0x3]
        %v1640 = vlaneseq
        %v1641 = vshrl.u32 %v1640, 7
        %v1642 = vsub.s32 0, %v1641
        %v1643 = vrot.slane %v1638, %v1642
        %v1644 = vlaneseq
        %v1645 = vshrl.u32 %v1644, 7
        %v1646 = vsub.s32 1, %v1645
        %v1647 = vrot.slane %v1638, %v1646
        %v1658 = vunpack.c.l.b16 %v1630
        %v1659 = vunpack.c.h.b16 %v1630
        %v1660 = vunpack.c.l.b16 %v1631
        %v1661 = vunpack.c.h.b16 %v1631
        %v1662 = vunpack.c.l.b16 %v1632
        %v1663 = vunpack.c.h.b16 %v1632
        %v1664 = vunpack.c.l.b16 %v1633
        %v1665 = vunpack.c.h.b16 %v1633
        %v1666 = vunpack.c.l.b16 %v1634
        %v1667 = vunpack.c.h.b16 %v1634
        %v1668 = vunpack.c.l.b16 %v1635
        %v1669 = vunpack.c.h.b16 %v1635
        %v1670 = vunpack.c.l.b16 %v1636
        %v1671 = vunpack.c.h.b16 %v1636
        %v1672 = vunpack.c.l.b16 %v1637
        %v1673 = vunpack.c.h.b16 %v1637
        %v1674 = vpack.c.b16 %v1660, %v1658
        %v1675 = vpack.c.b16 %v1661, %v1659
        %v1676 = vpack.c.b16 %v1664, %v1662
        %v1677 = vpack.c.b16 %v1665, %v1663
        %v1678 = vpack.c.b16 %v1668, %v1666
        %v1679 = vpack.c.b16 %v1669, %v1667
        %v1680 = vpack.c.b16 %v1672, %v1670
        %v1681 = vpack.c.b16 %v1673, %v1671
        %v1691 = vsel %vm842, %v1628, 0
        %v1694 = vsel %vm842, %v1629, 0
        %1696 = vmatprep.subr.bf16.mxu0 %v1675
        %1697 = vmatpush1.bf16.msra.mxu0 %v1674
        %1698 = vmatprep.subr.bf16.mxu0 %v1677
        %1699 = vmatpush1.bf16.msra.mxu0 %v1676
        %1700 = vmatprep.subr.bf16.mxu0 %v1679
        %1701 = vmatpush1.bf16.msra.mxu0 %v1678
        %1702 = vmatprep.subr.bf16.mxu0 %v1681
        %1703 = vmatpush1.bf16.msra.mxu0 %v1680
        %1704 = vmatprep.subr.bf16.mxu0 0
        %1705 = vmatpush1.bf16.msra.mxu0 0
        %1706 = vmatprep.subr.bf16.mxu0 0
        %1707 = vmatpush1.bf16.msra.mxu0 0
        %1708 = vmatprep.subr.bf16.mxu0 0
        %1709 = vmatpush1.bf16.msra.mxu0 0
        %1710 = vmatprep.subr.bf16.mxu0 0
        %1711 = vmatpush1.bf16.msra.mxu0 0
        %1712 = vmatprep.subr.bf16.mxu0 0
        %1713 = vmatpush1.bf16.msra.mxu0 0
        %1714 = vmatprep.subr.bf16.mxu0 0
        %1715 = vmatpush1.bf16.msra.mxu0 0
        %1716 = vmatprep.subr.bf16.mxu0 0
        %1717 = vmatpush1.bf16.msra.mxu0 0
        %1718 = vmatprep.subr.bf16.mxu0 0
        %1719 = vmatpush1.bf16.msra.mxu0 0
        %1720 = vmatprep.subr.bf16.mxu0 0
        %1721 = vmatpush1.bf16.msra.mxu0 0
        %1722 = vmatprep.subr.bf16.mxu0 0
        %1723 = vmatpush1.bf16.msra.mxu0 0
        %1724 = vmatprep.subr.bf16.mxu0 0
        %1725 = vmatpush1.bf16.msra.mxu0 0
        %1726 = vmatprep.subr.bf16.mxu0 0
        %1727 = vmatpush1.bf16.msra.mxu0 0
        %1728 = vmatprep.mubr.bf16.mxu0 0
        %1729 = vmatmul.mubr.bf16.gmra.mrb[0].mxu0 %v1691
        %v1730 = vpop.f32.mrb[0].mxu0
        %v1731 = vadd.f32 %v1643, %v1730
        %v1732 = vpop.f32.mrb[0].mxu0
        %v1733 = vadd.f32 %v1647, %v1732
        %v1734 = vpop.f32.mrb[0].mxu0
        %v1735 = vadd.f32 %v1643, %v1734
        %v1736 = vpop.f32.mrb[0].mxu0
        %v1737 = vadd.f32 %v1647, %v1736
        %1738 = vmatprep.mubr.bf16.mxu0 0
        %1739 = vmatmul.mubr.bf16.gmra.mrb[0].mxu0 %v1694
        %v1740 = vpop.f32.mrb[0].mxu0
        %v1741 = vadd.f32 %v1643, %v1740
        %v1742 = vpop.f32.mrb[0].mxu0
        %v1743 = vadd.f32 %v1647, %v1742
        %v1744 = vpop.f32.mrb[0].mxu0
        %v1745 = vadd.f32 %v1643, %v1744
        %v1746 = vpop.f32.mrb[0].mxu0
        %v1747 = vadd.f32 %v1647, %v1746
        %1748 = vdwg.mxu0
        %v1749 = vmul.f32 %v1731, %v1731
        %v1750 = vmul.f32 %v1733, %v1733
        %v1751 = vmul.f32 %v1735, %v1735
        %v1752 = vmul.f32 %v1737, %v1737
        %v1753 = vmul.f32 %v1741, %v1741
        %v1754 = vmul.f32 %v1743, %v1743
        %v1755 = vmul.f32 %v1745, %v1745
        %v1756 = vmul.f32 %v1747, %v1747
        %v1757 = vmul.f32 %v1731, %v1749
        %v1758 = vmul.f32 %v1733, %v1750
        %v1759 = vmul.f32 %v1735, %v1751
        %v1760 = vmul.f32 %v1737, %v1752
        %v1761 = vmul.f32 %v1741, %v1753
        %v1762 = vmul.f32 %v1743, %v1754
        %v1763 = vmul.f32 %v1745, %v1755
        %v1764 = vmul.f32 %v1747, %v1756
        %v1765 = vmul.f32 %v1757, 0.044715
        %v1766 = vmul.f32 %v1758, 0.044715
        %v1767 = vmul.f32 %v1759, 0.044715
        %v1768 = vmul.f32 %v1760, 0.044715
        %v1769 = vmul.f32 %v1761, 0.044715
        %v1770 = vmul.f32 %v1762, 0.044715
        %v1771 = vmul.f32 %v1763, 0.044715
        %v1772 = vmul.f32 %v1764, 0.044715
        %v1773 = vadd.f32 %v1731, %v1765
        %v1774 = vadd.f32 %v1733, %v1766
        %v1775 = vadd.f32 %v1735, %v1767
        %v1776 = vadd.f32 %v1737, %v1768
        %v1777 = vadd.f32 %v1741, %v1769
        %v1778 = vadd.f32 %v1743, %v1770
        %v1779 = vadd.f32 %v1745, %v1771
        %v1780 = vadd.f32 %v1747, %v1772
        %v1781 = vmul.f32 %v1773, 0.7978846
        %v1782 = vmul.f32 %v1774, 0.7978846
        %v1783 = vmul.f32 %v1775, 0.7978846
        %v1784 = vmul.f32 %v1776, 0.7978846
        %v1785 = vmul.f32 %v1777, 0.7978846
        %v1786 = vmul.f32 %v1778, 0.7978846
        %v1787 = vmul.f32 %v1779, 0.7978846
        %v1788 = vmul.f32 %v1780, 0.7978846
        %v1789 = vtanh.pop %v1781
        %v1790 = vtanh.pop %v1782
        %v1791 = vtanh.pop %v1783
        %v1792 = vtanh.pop %v1784
        %v1793 = vtanh.pop %v1785
        %v1794 = vtanh.pop %v1786
        %v1795 = vtanh.pop %v1787
        %v1796 = vtanh.pop %v1788
        %v1797 = vadd.f32 %v1789, 1.0
        %v1798 = vadd.f32 %v1790, 1.0
        %v1799 = vadd.f32 %v1791, 1.0
        %v1800 = vadd.f32 %v1792, 1.0
        %v1801 = vadd.f32 %v1793, 1.0
        %v1802 = vadd.f32 %v1794, 1.0
        %v1803 = vadd.f32 %v1795, 1.0
        %v1804 = vadd.f32 %v1796, 1.0
        %v1805 = vmul.f32 %v1797, 0.5
        %v1806 = vmul.f32 %v1798, 0.5
        %v1807 = vmul.f32 %v1799, 0.5
        %v1808 = vmul.f32 %v1800, 0.5
        %v1809 = vmul.f32 %v1801, 0.5
        %v1810 = vmul.f32 %v1802, 0.5
        %v1811 = vmul.f32 %v1803, 0.5
        %v1812 = vmul.f32 %v1804, 0.5
        %v1813 = vmul.f32 %v1731, %v1805
        %v1814 = vmul.f32 %v1733, %v1806
        %v1815 = vmul.f32 %v1735, %v1807
        %v1816 = vmul.f32 %v1737, %v1808
        %v1817 = vmul.f32 %v1741, %v1809
        %v1818 = vmul.f32 %v1743, %v1810
        %v1819 = vmul.f32 %v1745, %v1811
        %v1820 = vmul.f32 %v1747, %v1812
        %v1821 = vpack.c.bf16 %v1815, %v1813
        %v1822 = vpack.c.bf16 %v1816, %v1814
        %v1823 = vpack.c.bf16 %v1819, %v1817
        %v1824 = vpack.c.bf16 %v1820, %v1818
        %v1825 = vld [vmem:[%s752] sm:$0xf]
        %v1826 = vld [vmem:[%s752 + $0x4] sm:$0xf]
        %v1827 = vld [vmem:[%s752 + $0x8] sm:$0xf]
        %v1828 = vld [vmem:[%s752 + $0xc] sm:$0xf]
        %v1829 = vld [vmem:[%s752 + $0x10] sm:$0xf]
        %v1830 = vld [vmem:[%s752 + $0x14] sm:$0xf]
        %v1831 = vld [vmem:[%s752 + $0x18] sm:$0xf]
        %v1832 = vld [vmem:[%s752 + $0x1c] sm:$0xf]
        %v1833 = vld [vmem:[%s752 + $0x20] sm:$0xf]
        %v1834 = vld [vmem:[%s752 + $0x24] sm:$0xf]
        %v1835 = vld [vmem:[%s752 + $0x28] sm:$0xf]
        %v1836 = vld [vmem:[%s752 + $0x2c] sm:$0xf]
        %v1837 = vld [vmem:[%s752 + $0x30] sm:$0xf]
        %v1838 = vld [vmem:[%s752 + $0x34] sm:$0xf]
        %v1839 = vld [vmem:[%s752 + $0x38] sm:$0xf]
        %v1840 = vld [vmem:[%s752 + $0x3c] sm:$0xf]
        %v1841 = vld [vmem:[%s752 + $0x40] sm:$0xf]
        %v1842 = vld [vmem:[%s752 + $0x44] sm:$0xf]
        %v1843 = vld [vmem:[%s752 + $0x48] sm:$0xf]
        %v1844 = vld [vmem:[%s752 + $0x4c] sm:$0xf]
        %v1845 = vld [vmem:[%s752 + $0x50] sm:$0xf]
        %v1846 = vld [vmem:[%s752 + $0x54] sm:$0xf]
        %v1847 = vld [vmem:[%s752 + $0x58] sm:$0xf]
        %v1848 = vld [vmem:[%s752 + $0x5c] sm:$0xf]
        %v1849 = vld [vmem:[%s752 + $0x60] sm:$0xf]
        %v1850 = vld [vmem:[%s752 + $0x64] sm:$0xf]
        %v1851 = vld [vmem:[%s752 + $0x68] sm:$0xf]
        %v1852 = vld [vmem:[%s752 + $0x6c] sm:$0xf]
        %v1853 = vld [vmem:[%s752 + $0x70] sm:$0xf]
        %v1854 = vld [vmem:[%s752 + $0x74] sm:$0xf]
        %v1855 = vld [vmem:[%s752 + $0x78] sm:$0xf]
        %v1856 = vld [vmem:[%s752 + $0x7c] sm:$0xf]
        %v1857 = vld [vmem:[%s755] sm:$0x1]
        %v1859 = vlaneseq
        %v1860 = vshrl.u32 %v1859, 7
        %v1861 = vsub.s32 0, %v1860
        %v1862 = vrot.slane %v1857, %v1861
        %v1896 = vunpack.c.l.b16 %v1825
        %v1897 = vunpack.c.l.b16 %v1826
        %v1898 = vunpack.c.l.b16 %v1827
        %v1899 = vunpack.c.l.b16 %v1828
        %v1900 = vunpack.c.l.b16 %v1829
        %v1901 = vunpack.c.l.b16 %v1830
        %v1902 = vunpack.c.l.b16 %v1831
        %v1903 = vunpack.c.l.b16 %v1832
        %v1904 = vunpack.c.l.b16 %v1833
        %v1905 = vunpack.c.l.b16 %v1834
        %v1906 = vunpack.c.l.b16 %v1835
        %v1907 = vunpack.c.l.b16 %v1836
        %v1908 = vunpack.c.l.b16 %v1837
        %v1909 = vunpack.c.l.b16 %v1838
        %v1910 = vunpack.c.l.b16 %v1839
        %v1911 = vunpack.c.l.b16 %v1840
        %v1912 = vunpack.c.l.b16 %v1841
        %v1913 = vunpack.c.l.b16 %v1842
        %v1914 = vunpack.c.l.b16 %v1843
        %v1915 = vunpack.c.l.b16 %v1844
        %v1916 = vunpack.c.l.b16 %v1845
        %v1917 = vunpack.c.l.b16 %v1846
        %v1918 = vunpack.c.l.b16 %v1847
        %v1919 = vunpack.c.l.b16 %v1848
        %v1920 = vunpack.c.l.b16 %v1849
        %v1921 = vunpack.c.l.b16 %v1850
        %v1922 = vunpack.c.l.b16 %v1851
        %v1923 = vunpack.c.l.b16 %v1852
        %v1924 = vunpack.c.l.b16 %v1853
        %v1925 = vunpack.c.l.b16 %v1854
        %v1926 = vunpack.c.l.b16 %v1855
        %v1927 = vunpack.c.l.b16 %v1856
        %v1928 = vpack.c.b16 %v1897, %v1896
        %v1929 = vpack.c.b16 %v1899, %v1898
        %v1930 = vpack.c.b16 %v1901, %v1900
        %v1931 = vpack.c.b16 %v1903, %v1902
        %v1932 = vpack.c.b16 %v1905, %v1904
        %v1933 = vpack.c.b16 %v1907, %v1906
        %v1934 = vpack.c.b16 %v1909, %v1908
        %v1935 = vpack.c.b16 %v1911, %v1910
        %v1936 = vpack.c.b16 %v1913, %v1912
        %v1937 = vpack.c.b16 %v1915, %v1914
        %v1938 = vpack.c.b16 %v1917, %v1916
        %v1939 = vpack.c.b16 %v1919, %v1918
        %v1940 = vpack.c.b16 %v1921, %v1920
        %v1941 = vpack.c.b16 %v1923, %v1922
        %v1942 = vpack.c.b16 %v1925, %v1924
        %v1943 = vpack.c.b16 %v1927, %v1926
        %1960 = vmatprep.subr.bf16.mxu0 0
        %1961 = vmatpush1.bf16.msra.mxu0 %v1928
        %1962 = vmatprep.subr.bf16.mxu0 0
        %1963 = vmatpush1.bf16.msra.mxu0 %v1929
        %1964 = vmatprep.subr.bf16.mxu0 0
        %1965 = vmatpush1.bf16.msra.mxu0 %v1930
        %1966 = vmatprep.subr.bf16.mxu0 0
        %1967 = vmatpush1.bf16.msra.mxu0 %v1931
        %1968 = vmatprep.subr.bf16.mxu0 0
        %1969 = vmatpush1.bf16.msra.mxu0 %v1932
        %1970 = vmatprep.subr.bf16.mxu0 0
        %1971 = vmatpush1.bf16.msra.mxu0 %v1933
        %1972 = vmatprep.subr.bf16.mxu0 0
        %1973 = vmatpush1.bf16.msra.mxu0 %v1934
        %1974 = vmatprep.subr.bf16.mxu0 0
        %1975 = vmatpush1.bf16.msra.mxu0 %v1935
        %1976 = vmatprep.subr.bf16.mxu0 0
        %1977 = vmatpush1.bf16.msra.mxu0 %v1936
        %1978 = vmatprep.subr.bf16.mxu0 0
        %1979 = vmatpush1.bf16.msra.mxu0 %v1937
        %1980 = vmatprep.subr.bf16.mxu0 0
        %1981 = vmatpush1.bf16.msra.mxu0 %v1938
        %1982 = vmatprep.subr.bf16.mxu0 0
        %1983 = vmatpush1.bf16.msra.mxu0 %v1939
        %1984 = vmatprep.subr.bf16.mxu0 0
        %1985 = vmatpush1.bf16.msra.mxu0 %v1940
        %1986 = vmatprep.subr.bf16.mxu0 0
        %1987 = vmatpush1.bf16.msra.mxu0 %v1941
        %1988 = vmatprep.subr.bf16.mxu0 0
        %1989 = vmatpush1.bf16.msra.mxu0 %v1942
        %1990 = vmatprep.subr.bf16.mxu0 0
        %1991 = vmatpush1.bf16.msra.mxu0 %v1943
        %1992 = vmatprep.mubr.bf16.mxu0 %v1822
        %1993 = vmatmul.mubr.bf16.gmra.mrb[0].mxu0 %v1821
        %v1994 = vpop.f32.mrb[0].mxu0
        %v1995 = vadd.f32 %v1862, %v1994
        %v1996 = vpop.f32.mrb[0].mxu0
        %v1997 = vpop.f32.mrb[0].mxu0
        %v1998 = vadd.f32 %v1862, %v1997
        %v1999 = vpop.f32.mrb[0].mxu0
        %2000 = vmatprep.mubr.bf16.mxu0 %v1824
        %2001 = vmatmul.mubr.bf16.gmra.mrb[0].mxu0 %v1823
        %v2002 = vpop.f32.mrb[0].mxu0
        %v2003 = vadd.f32 %v1862, %v2002
        %v2004 = vpop.f32.mrb[0].mxu0
        %v2005 = vpop.f32.mrb[0].mxu0
        %v2006 = vadd.f32 %v1862, %v2005
        %v2007 = vpop.f32.mrb[0].mxu0
        %2008 = vdwg.mxu0
        %v2009 = vadd.f32 %v1624, %v1995
        %v2010 = vadd.f32 %v1625, %v1998
        %v2011 = vadd.f32 %v1626, %v2003
        %v2012 = vadd.f32 %v1627, %v2006
        %v2013 = vld [vmem:[%s758] sm:$0x1]
        %v2014 = vld [vmem:[%s761] sm:$0x1]
        %v2015 = vsel %vm842, %v2009, 0.0
        %2016 = vadd.xlane.f32.xlu0 %v2015
        %v2017 = vpop.xlane.xlu0 %2016
        %v2018 = vsel %vm842, %v2010, 0.0
        %2019 = vadd.xlane.f32.xlu0 %v2018
        %v2020 = vpop.xlane.xlu0 %2019
        %v2021 = vsel %vm842, %v2011, 0.0
        %2022 = vadd.xlane.f32.xlu0 %v2021
        %v2023 = vpop.xlane.xlu0 %2022
        %v2024 = vsel %vm842, %v2012, 0.0
        %2025 = vadd.xlane.f32.xlu0 %v2024
        %v2026 = vpop.xlane.xlu0 %2025
        %v2027 = vmul.f32 %v2017, %v1567
        %v2028 = vmul.f32 %v2020, %v1567
        %v2029 = vmul.f32 %v2023, %v1567
        %v2030 = vmul.f32 %v2026, %v1567
        %v2031 = vsub.f32 %v2009, %v2027
        %v2032 = vsub.f32 %v2010, %v2028
        %v2033 = vsub.f32 %v2011, %v2029
        %v2034 = vsub.f32 %v2012, %v2030
        %v2035 = vmul.f32 %v2031, %v2031
        %v2036 = vmul.f32 %v2032, %v2032
        %v2037 = vmul.f32 %v2033, %v2033
        %v2038 = vmul.f32 %v2034, %v2034
        %v2039 = vsel %vm842, %v2035, 0.0
        %2040 = vadd.xlane.f32.xlu0 %v2039
        %v2041 = vpop.xlane.xlu0 %2040
        %v2042 = vsel %vm842, %v2036, 0.0
        %2043 = vadd.xlane.f32.xlu0 %v2042
        %v2044 = vpop.xlane.xlu0 %2043
        %v2045 = vsel %vm842, %v2037, 0.0
        %2046 = vadd.xlane.f32.xlu0 %v2045
        %v2047 = vpop.xlane.xlu0 %2046
        %v2048 = vsel %vm842, %v2038, 0.0
        %2049 = vadd.xlane.f32.xlu0 %v2048
        %v2050 = vpop.xlane.xlu0 %2049
        %v2051 = vmul.f32 %v2041, %v1567
        %v2052 = vmul.f32 %v2044, %v1567
        %v2053 = vmul.f32 %v2047, %v1567
        %v2054 = vmul.f32 %v2050, %v1567
        %v2055 = vadd.f32 %v2051, 1e-05
        %v2056 = vadd.f32 %v2052, 1e-05
        %v2057 = vadd.f32 %v2053, 1e-05
        %v2058 = vadd.f32 %v2054, 1e-05
        %v2059 = vrsqrt.pop %v2055
        %v2060 = vrsqrt.pop %v2056
        %v2061 = vrsqrt.pop %v2057
        %v2062 = vrsqrt.pop %v2058
        %v2063 = vmul.f32 %v2031, %v2059
        %v2064 = vmul.f32 %v2032, %v2060
        %v2065 = vmul.f32 %v2033, %v2061
        %v2066 = vmul.f32 %v2034, %v2062
        %v2068 = vlaneseq
        %v2069 = vshrl.u32 %v2068, 7
        %v2070 = vsub.s32 0, %v2069
        %v2071 = vrot.slane %v2013, %v2070
        %v2073 = vmul.f32 %v2063, %v2071
        %v2074 = vmul.f32 %v2064, %v2071
        %v2075 = vmul.f32 %v2065, %v2071
        %v2076 = vmul.f32 %v2066, %v2071
        %v2078 = vlaneseq
        %v2079 = vshrl.u32 %v2078, 7
        %v2080 = vsub.s32 0, %v2079
        %v2081 = vrot.slane %v2014, %v2080
        %v2083 = vadd.f32 %v2073, %v2081
        %v2084 = vadd.f32 %v2074, %v2081
        %v2085 = vadd.f32 %v2075, %v2081
        %v2086 = vadd.f32 %v2076, %v2081
        %2087 = vst.msk [vmem:[#allocation2] sm:$0xff] %vm842, %v2083
        %2088 = vst.msk [vmem:[#allocation2 + $0x8] sm:$0xff] %vm842, %v2084
        %2089 = vst.msk [vmem:[#allocation2 + $0x10] sm:$0xff] %vm842, %v2085
        %2090 = vst.msk [vmem:[#allocation2 + $0x18] sm:$0xff] %vm842, %v2086
        %p2091 = scmp.eq.s32.totalorder %s36, 1
        // Predicated region
        $region93: #{vimpac_forward.3} parent=87 // pred_check
          %p2092 = pneg %p2091
        $region94: #{vimpac_forward.3} parent=87 // pred_check_branch
          %2094 = sbr.rel (%p2092) target = $region96
        $region95: #{vimpac_forward.3} parent=87 // pred_region
          %v2095 = vpack.c.bf16 %v2083, %v2083
          %v2096 = vpack.c.bf16 %v2085, %v2085
          %v2097 = vld [vmem:[%s13] sm:$0xf]
          %v2098 = vld [vmem:[%s13 + $0x4] sm:$0xf]
          %v2099 = vld [vmem:[%s13 + $0x8] sm:$0xf]
          %v2100 = vld [vmem:[%s13 + $0xc] sm:$0xf]
          %v2101 = vld [vmem:[%s13 + $0x10] sm:$0xf]
          %v2102 = vld [vmem:[%s13 + $0x14] sm:$0xf]
          %v2103 = vld [vmem:[%s13 + $0x18] sm:$0xf]
          %v2104 = vld [vmem:[%s13 + $0x1c] sm:$0xf]
          %v2105 = vld [vmem:[%s14] sm:$0x1]
          %v2107 = vlaneseq
          %v2108 = vshrl.u32 %v2107, 7
          %v2109 = vsub.s32 0, %v2108
          %v2110 = vrot.slane %v2105, %v2109
          %v2114 = vunpack.c.l.b16 %v2095
          %v2115 = vunpack.c.l.b16 %v2096
          %v2116 = vrot.slane %v2115, 7
          %vm2117 = vcmask 1041409
          %v2118 = vsel %vm2117, %v2116, %v2114
          %v2119 = vpack.c.b16 %v2118, %v2118
          %v2128 = vunpack.c.l.b16 %v2097
          %v2129 = vunpack.c.l.b16 %v2098
          %v2130 = vunpack.c.l.b16 %v2099
          %v2131 = vunpack.c.l.b16 %v2100
          %v2132 = vunpack.c.l.b16 %v2101
          %v2133 = vunpack.c.l.b16 %v2102
          %v2134 = vunpack.c.l.b16 %v2103
          %v2135 = vunpack.c.l.b16 %v2104
          %v2136 = vpack.c.b16 %v2129, %v2128
          %v2137 = vpack.c.b16 %v2131, %v2130
          %v2138 = vpack.c.b16 %v2133, %v2132
          %v2139 = vpack.c.b16 %v2135, %v2134
          %v2145 = vsel %vm842, %v2119, 0
          %2147 = vmatprep.subr.bf16.mxu0 0
          %2148 = vmatpush1.bf16.msra.mxu0 %v2136
          %2149 = vmatprep.subr.bf16.mxu0 0
          %2150 = vmatpush1.bf16.msra.mxu0 %v2137
          %2151 = vmatprep.subr.bf16.mxu0 0
          %2152 = vmatpush1.bf16.msra.mxu0 %v2138
          %2153 = vmatprep.subr.bf16.mxu0 0
          %2154 = vmatpush1.bf16.msra.mxu0 %v2139
          %2155 = vmatprep.subr.bf16.mxu0 0
          %2156 = vmatpush1.bf16.msra.mxu0 0
          %2157 = vmatprep.subr.bf16.mxu0 0
          %2158 = vmatpush1.bf16.msra.mxu0 0
          %2159 = vmatprep.subr.bf16.mxu0 0
          %2160 = vmatpush1.bf16.msra.mxu0 0
          %2161 = vmatprep.subr.bf16.mxu0 0
          %2162 = vmatpush1.bf16.msra.mxu0 0
          %2163 = vmatprep.subr.bf16.mxu0 0
          %2164 = vmatpush1.bf16.msra.mxu0 0
          %2165 = vmatprep.subr.bf16.mxu0 0
          %2166 = vmatpush1.bf16.msra.mxu0 0
          %2167 = vmatprep.subr.bf16.mxu0 0
          %2168 = vmatpush1.bf16.msra.mxu0 0
          %2169 = vmatprep.subr.bf16.mxu0 0
          %2170 = vmatpush1.bf16.msra.mxu0 0
          %2171 = vmatprep.subr.bf16.mxu0 0
          %2172 = vmatpush1.bf16.msra.mxu0 0
          %2173 = vmatprep.subr.bf16.mxu0 0
          %2174 = vmatpush1.bf16.msra.mxu0 0
          %2175 = vmatprep.subr.bf16.mxu0 0
          %2176 = vmatpush1.bf16.msra.mxu0 0
          %2177 = vmatprep.subr.bf16.mxu0 0
          %2178 = vmatpush1.bf16.msra.mxu0 0
          %2179 = vmatprep.mubr.bf16.mxu0 0
          %2180 = vmatmul.mubr.bf16.gmra.mrb[0].mxu0 %v2145
          %v2181 = vpop.f32.mrb[0].mxu0
          %v2182 = vadd.f32 %v2110, %v2181
          %v2183 = vpop.f32.mrb[0].mxu0
          %v2184 = vpop.f32.mrb[0].mxu0
          %v2185 = vpop.f32.mrb[0].mxu0
          %2186 = vdwg.mxu0
          %v2187 = vmax.f32 %v2182, 0.0
          %v2188 = vpack.c.bf16 %v2187, %v2187
          %v2189 = vld [vmem:[%s15] sm:$0xf]
          %v2190 = vld [vmem:[%s15 + $0x4] sm:$0xf]
          %v2191 = vld [vmem:[%s15 + $0x8] sm:$0xf]
          %v2192 = vld [vmem:[%s15 + $0xc] sm:$0xf]
          %v2193 = vld [vmem:[%s15 + $0x10] sm:$0xf]
          %v2194 = vld [vmem:[%s15 + $0x14] sm:$0xf]
          %v2195 = vld [vmem:[%s15 + $0x18] sm:$0xf]
          %v2196 = vld [vmem:[%s15 + $0x1c] sm:$0xf]
          %v2197 = vld [vmem:[%s15 + $0x20] sm:$0xf]
          %v2198 = vld [vmem:[%s15 + $0x24] sm:$0xf]
          %v2199 = vld [vmem:[%s15 + $0x28] sm:$0xf]
          %v2200 = vld [vmem:[%s15 + $0x2c] sm:$0xf]
          %v2201 = vld [vmem:[%s15 + $0x30] sm:$0xf]
          %v2202 = vld [vmem:[%s15 + $0x34] sm:$0xf]
          %v2203 = vld [vmem:[%s15 + $0x38] sm:$0xf]
          %v2204 = vld [vmem:[%s15 + $0x3c] sm:$0xf]
          %v2205 = vld [vmem:[%s16] sm:$0x1]
          %v2207 = vlaneseq
          %v2208 = vshrl.u32 %v2207, 7
          %v2209 = vsub.s32 0, %v2208
          %v2210 = vrot.slane %v2205, %v2209
          %v2228 = vunpack.c.l.b16 %v2189
          %v2229 = vunpack.c.l.b16 %v2190
          %v2230 = vunpack.c.l.b16 %v2191
          %v2231 = vunpack.c.l.b16 %v2192
          %v2232 = vunpack.c.l.b16 %v2193
          %v2233 = vunpack.c.l.b16 %v2194
          %v2234 = vunpack.c.l.b16 %v2195
          %v2235 = vunpack.c.l.b16 %v2196
          %v2236 = vunpack.c.l.b16 %v2197
          %v2237 = vunpack.c.l.b16 %v2198
          %v2238 = vunpack.c.l.b16 %v2199
          %v2239 = vunpack.c.l.b16 %v2200
          %v2240 = vunpack.c.l.b16 %v2201
          %v2241 = vunpack.c.l.b16 %v2202
          %v2242 = vunpack.c.l.b16 %v2203
          %v2243 = vunpack.c.l.b16 %v2204
          %v2244 = vpack.c.b16 %v2229, %v2228
          %v2245 = vpack.c.b16 %v2231, %v2230
          %v2246 = vpack.c.b16 %v2233, %v2232
          %v2247 = vpack.c.b16 %v2235, %v2234
          %v2248 = vpack.c.b16 %v2237, %v2236
          %v2249 = vpack.c.b16 %v2239, %v2238
          %v2250 = vpack.c.b16 %v2241, %v2240
          %v2251 = vpack.c.b16 %v2243, %v2242
          %2260 = vmatprep.subr.bf16.mxu0 0
          %2261 = vmatpush1.bf16.msra.mxu0 %v2244
          %2262 = vmatprep.subr.bf16.mxu0 0
          %2263 = vmatpush1.bf16.msra.mxu0 %v2245
          %2264 = vmatprep.subr.bf16.mxu0 0
          %2265 = vmatpush1.bf16.msra.mxu0 %v2246
          %2266 = vmatprep.subr.bf16.mxu0 0
          %2267 = vmatpush1.bf16.msra.mxu0 %v2247
          %2268 = vmatprep.subr.bf16.mxu0 0
          %2269 = vmatpush1.bf16.msra.mxu0 %v2248
          %2270 = vmatprep.subr.bf16.mxu0 0
          %2271 = vmatpush1.bf16.msra.mxu0 %v2249
          %2272 = vmatprep.subr.bf16.mxu0 0
          %2273 = vmatpush1.bf16.msra.mxu0 %v2250
          %2274 = vmatprep.subr.bf16.mxu0 0
          %2275 = vmatpush1.bf16.msra.mxu0 %v2251
          %2276 = vmatprep.subr.bf16.mxu0 0
          %2277 = vmatpush1.bf16.msra.mxu0 0
          %2278 = vmatprep.subr.bf16.mxu0 0
          %2279 = vmatpush1.bf16.msra.mxu0 0
          %2280 = vmatprep.subr.bf16.mxu0 0
          %2281 = vmatpush1.bf16.msra.mxu0 0
          %2282 = vmatprep.subr.bf16.mxu0 0
          %2283 = vmatpush1.bf16.msra.mxu0 0
          %2284 = vmatprep.subr.bf16.mxu0 0
          %2285 = vmatpush1.bf16.msra.mxu0 0
          %2286 = vmatprep.subr.bf16.mxu0 0
          %2287 = vmatpush1.bf16.msra.mxu0 0
          %2288 = vmatprep.subr.bf16.mxu0 0
          %2289 = vmatpush1.bf16.msra.mxu0 0
          %2290 = vmatprep.subr.bf16.mxu0 0
          %2291 = vmatpush1.bf16.msra.mxu0 0
          %2292 = vmatprep.mubr.bf16.mxu0 0
          %2293 = vmatmul.mubr.bf16.gmra.mrb[0].mxu0 %v2188
          %v2294 = vpop.f32.mrb[0].mxu0
          %v2295 = vadd.f32 %v2210, %v2294
          %v2296 = vpop.f32.mrb[0].mxu0
          %v2297 = vpop.f32.mrb[0].mxu0
          %v2298 = vpop.f32.mrb[0].mxu0
          %2299 = vdwg.mxu0
          %2300 = vst [vmem:[%s708] sm:$0x3] %v2295
        $region96: #{vimpac_forward.3} parent=87 // pred_fallthru
          _
        %s2301 = sand.u32 %s473, 1
        %s2302 = scalar_lea.sflag [#allocation4], %s2301
        %s2303 = sand.u32 %s473, 1
        %s2304 = smul.addr %s2303, 2
        %s2305 = scalar_lea.vmem [#allocation3], %s2304
        // Predicated region
        $region97: #{vimpac_forward.3} parent=87 // pred_check
          %p2306 = pneg %p483
        $region98: #{vimpac_forward.3} parent=87 // pred_check_branch
          %2308 = sbr.rel (%p2306) target = $region100
        $region99: #{vimpac_forward.3} parent=87 // pred_region
          %s2310 = ssub.s32 32, 32
          %2311 = vsyncadd %s2302, %s2310
          %s2312 = smul.addr %s35, 32
          %s2313 = scalar_lea.hbm %s17, %s2312
          %s2315 = sshll.u32 %s2305, 4
          %s2316 = int_to_ptr.vmem [resolvable:$true] %s2315
          %2318 = dma.vmem_to_hbm [thread:$0]  %s2316, 32, %s2313, %s2302
        $region100: #{vimpac_forward.3} parent=87 // pred_fallthru
          _
      $region88: #{vimpac_forward.3} parent=5 // pred_fallthru
        _
      %p2319 = scmp.le.s32.totalorder 2, %s26
      // Predicated region
      $region101: #{vimpac_forward.3} parent=5 // pred_check
        %p2320 = pneg %p2319
      $region102: #{vimpac_forward.3} parent=5 // pred_check_branch
        %2322 = sbr.rel (%p2320) target = $region104
      $region103: #{vimpac_forward.3} parent=5 // pred_region
        %s2323 = ssub.s32 %s26, 2
        // Predicated region
        $region105: #{vimpac_forward.3} parent=103 // pred_check
          %p2324 = pneg %p489
        $region106: #{vimpac_forward.3} parent=103 // pred_check_branch
          %2326 = sbr.rel (%p2324) target = $region108
        $region107: #{vimpac_forward.3} parent=103 // pred_region
          %s2327 = sand.u32 %s474, 1
          %s2328 = scalar_lea.sflag [#allocation4], %s2327
          %s2329 = sand.u32 %s474, 1
          %s2330 = smul.addr %s2329, 2
          %s2331 = scalar_lea.vmem [#allocation3], %s2330
          %2332 = dma.done %s2328, 32
        $region108: #{vimpac_forward.3} parent=103 // pred_fallthru
          _
      $region104: #{vimpac_forward.3} parent=5 // pred_fallthru
        _
    $region6: #{vimpac_forward.3} parent=1 // loop_footer
      %s30 = sadd.s32 1, %s26
    $region7: #{vimpac_forward.3} parent=1 // loop_footer_branch
      %25 = sbr.rel target = $region3
    $region8: #{vimpac_forward.3} parent=1 // loop_exit
      _
    %2333 = vsyncpa [#allocation4], 1
    %s2334 = scalar_lea.sflag [#allocation4], 1
    %2335 = vsyncpa %s2334, 1

</llo_original>
